<compile_context>
chip_gen: v7x
topology: tpu7x:2x2x1
jax: 0.10.0
libtpu: 0.0.40
codegen_flags: <defaults>
</compile_context>

<pallas_src>
import jax
import jax.numpy as jnp
from jax import lax
from jax.experimental import pallas as pl
from jax.experimental.pallas import tpu as pltpu

EPS = 1e-5  # PyTorch BatchNorm2d default


# ----------------------------------------------------------------------------- kernel
def _make_encode_a_kernel(H, W, K1, Cp, d2):
    """conv1 (im2col matmul) + BN + ReLU -> conv2 (kx-folded) + BN + ReLU -> maxpool 2x2."""

    def kernel(xcol_ref, w1_ref, s1_ref, t1_ref, w2_ref, s2_ref, t2_ref,
               out_ref, hcat_ref):
        # ---------- conv1: single MXU matmul, K = 9*Cin ----------
        lhs1 = xcol_ref[...].reshape(H * W, K1)                      # bf16
        acc1 = jnp.dot(lhs1, w1_ref[...],
                       preferred_element_type=jnp.float32)           # (H*W, Cp) f32
        h1 = jnp.maximum(acc1 * s1_ref[...] + t1_ref[...], 0.0)      # BN + ReLU in f32
        h1 = h1.reshape(H, W, Cp)

        # ---------- stage conv2 input: fold the 3 kx taps into the lane dim ----------
        # lane group kx (offset kx*Cp, multiple of 128 -> aligned stores) holds h1
        # shifted by (kx-1)*d2 along W, zero-filled at the W border.
        zcol = jnp.zeros((H, d2, Cp), jnp.float32)
        g0 = jnp.concatenate([zcol, h1[:, :W - d2, :]], axis=1)      # h1[y, x - d2]
        g2 = jnp.concatenate([h1[:, d2:, :], zcol], axis=1)          # h1[y, x + d2]

        # zero only the 2*d2 H-halo rows (interior is fully overwritten every step).
        zrow = jnp.zeros((d2, W, 3 * Cp), jnp.bfloat16)
        hcat_ref[0:d2, :, :] = zrow
        hcat_ref[d2 + H:2 * d2 + H, :, :] = zrow
        hcat_ref[d2:d2 + H, :, 0:Cp] = g0.astype(jnp.bfloat16)
        hcat_ref[d2:d2 + H, :, Cp:2 * Cp] = h1.astype(jnp.bfloat16)
        hcat_ref[d2:d2 + H, :, 2 * Cp:3 * Cp] = g2.astype(jnp.bfloat16)

        # ---------- conv2: 3 matmuls with K = 3*Cp; only free leading-dim (H) shifts ----------
        acc2 = jnp.zeros((H * W, Cp), jnp.float32)
        for ky in range(3):
            lhs2 = hcat_ref[ky * d2:ky * d2 + H, :, :].reshape(H * W, 3 * Cp)
            acc2 = acc2 + jnp.dot(lhs2, w2_ref[ky],
                                  preferred_element_type=jnp.float32)
        h2 = jnp.maximum(acc2 * s2_ref[...] + t2_ref[...], 0.0).reshape(H, W, Cp)

        # ---------- maxpool 2x2 stride 2 (H, W even -> ceil_mode == floor) ----------
        hp = jnp.max(h2.reshape(H // 2, 2, W, Cp), axis=1)            # pool rows
        hp = jnp.max(hp.reshape(H // 2, W // 2, 2, Cp), axis=2)       # pool cols
        out_ref[...] = hp.astype(out_ref.dtype)                       # lane-dense (Cp) store

    return kernel


# --------------------------------------------------------------------------- wrapper
def encode_a_forward(x_nchw, params, dilation=1, grid=(1, 1)):
    """Pallas implementation of Encode_A.forward. x_nchw: (N, Cin, H, W) float32."""
    d1 = dilation * grid[0]
    d2 = dilation * grid[1]

    N, Cin, H, W = x_nchw.shape
    Cout = params["w1"].shape[-1]
    assert H % 2 == 0 and W % 2 == 0, "even spatial dims assumed (ceil_mode==floor)"
    # TODO(synk): odd H/W with ceil_mode=True pooling padding not handled.
    # TODO(synk): for realistic VGG image sizes add an H-strip grid axis (d2-row halo)
    #             so the working set fits v7x's 64 MiB VMEM and feeds both TensorCores.

    Cp = ((Cout + 127) // 128) * 128          # lane-dense channel padding
    K1 = 9 * Cin

    # ---- NCHW -> NHWC, im2col for conv1 (fold the 9 taps into the contraction dim)
    x = jnp.transpose(x_nchw, (0, 2, 3, 1)).astype(jnp.float32)
    xp = jnp.pad(x, ((0, 0), (d1, d1), (d1, d1), (0, 0)))
    taps = [xp[:, ky * d1:ky * d1 + H, kx * d1:kx * d1 + W, :]
            for ky in range(3) for kx in range(3)]
    xcol = jnp.concatenate(taps, axis=-1).astype(jnp.bfloat16)        # (N, H, W, 9*Cin)

    # ---- fold conv bias + BN(eval) into per-channel scale/shift, pad Cout -> Cp
    def fold(b, g, beta, mean, var):
        s = (g / jnp.sqrt(var + EPS)).astype(jnp.float32)
        t = (beta + s * (b - mean)).astype(jnp.float32)
        s = jnp.pad(s, (0, Cp - Cout)).reshape(1, Cp)
        t = jnp.pad(t, (0, Cp - Cout)).reshape(1, Cp)
        return s, t

    s1, t1 = fold(params["b1"], params["g1"], params["beta1"], params["m1"], params["v1"])
    s2, t2 = fold(params["b2"], params["g2"], params["beta2"], params["m2"], params["v2"])

    # conv1 weight: (3,3,Cin,Cout) -> (9*Cin, Cp) bf16   (row = ky*3*Cin + kx*Cin + ci)
    w1r = params["w1"].astype(jnp.float32).reshape(K1, Cout)
    w1r = jnp.pad(w1r, ((0, 0), (0, Cp - Cout))).astype(jnp.bfloat16)
    # conv2 weight: (3,3,Cout,Cout) -> per-ky kx-stacked (3, 3*Cp, Cp) bf16
    w2p = jnp.pad(params["w2"].astype(jnp.float32),
                  ((0, 0), (0, 0), (0, Cp - Cout), (0, Cp - Cout)))
    w2r = w2p.reshape(3, 3 * Cp, Cp).astype(jnp.bfloat16)

    kernel = _make_encode_a_kernel(H, W, K1, Cp, d2)

    flops = 2 * N * H * W * (K1 * Cp + 9 * Cp * Cp)
    bytes_accessed = (xcol.size * 2 + w1r.size * 2 + w2r.size * 2
                      + 4 * Cp * 4 + N * (H // 2) * (W // 2) * Cp * 4)

    out_nhwc = pl.pallas_call(
        kernel,
        out_shape=jax.ShapeDtypeStruct((N, H // 2, W // 2, Cp), jnp.float32),
        grid_spec=pltpu.PrefetchScalarGridSpec(
            num_scalar_prefetch=0,
            grid=(N,),
            in_specs=[
                pl.BlockSpec((None, H, W, K1), lambda n: (n, 0, 0, 0)),
                pl.BlockSpec((K1, Cp), lambda n: (0, 0)),
                pl.BlockSpec((1, Cp), lambda n: (0, 0)),
                pl.BlockSpec((1, Cp), lambda n: (0, 0)),
                pl.BlockSpec((3, 3 * Cp, Cp), lambda n: (0, 0, 0)),
                pl.BlockSpec((1, Cp), lambda n: (0, 0)),
                pl.BlockSpec((1, Cp), lambda n: (0, 0)),
            ],
            out_specs=pl.BlockSpec((None, H // 2, W // 2, Cp), lambda n: (n, 0, 0, 0)),
            scratch_shapes=[pltpu.VMEM((H + 2 * d2, W, 3 * Cp), jnp.bfloat16)],
        ),
        compiler_params=pltpu.CompilerParams(
            dimension_semantics=("parallel",),
            vmem_limit_bytes=32 * 1024 * 1024,
        ),
        cost_estimate=pl.CostEstimate(flops=flops, transcendentals=0,
                                      bytes_accessed=bytes_accessed),
    )(xcol, w1r, s1, t1, w2r, s2, t2)

    # strip channel padding, NHWC -> NCHW (PyTorch convention)
    return jnp.transpose(out_nhwc[..., :Cout], (0, 3, 1, 2))


# ------------------------------------------------------------------------- reference
def encode_a_reference(x_nchw, params, dilation=1, grid=(1, 1)):
    """Pure-JAX reference (lax conv, f32) for validation."""
    d1 = dilation * grid[0]
    d2 = dilation * grid[1]
    x = jnp.transpose(x_nchw, (0, 2, 3, 1)).astype(jnp.float32)

    def conv_bn_relu(h, w, b, g, beta, mean, var, d):
        y = lax.conv_general_dilated(
            h, w, window_strides=(1, 1), padding=[(d, d), (d, d)],
            rhs_dilation=(d, d), dimension_numbers=("NHWC", "HWIO", "NHWC"))
        y = y + b
        y = g * (y - mean) / jnp.sqrt(var + EPS) + beta
        return jnp.maximum(y, 0.0)

    h = conv_bn_relu(x, params["w1"], params["b1"], params["g1"], params["beta1"],
                     params["m1"], params["v1"], d1)
    h = conv_bn_relu(h, params["w2"], params["b2"], params["g2"], params["beta2"],
                     params["m2"], params["v2"], d2)
    N, H, W, C = h.shape
    hp = h.reshape(N, H // 2, 2, W // 2, 2, C).max(axis=(2, 4))
    return jnp.transpose(hp, (0, 3, 1, 2))


# ----------------------------------------------------------------------------- setup
def init_params(key, in_c, out_c):
    ks = jax.random.split(key, 12)
    f32 = jnp.float32

    def conv_w(k, ci, co):
        return 0.1 * jax.random.normal(k, (3, 3, ci, co), f32)

    return dict(
        w1=conv_w(ks[0], in_c, out_c),
        b1=0.05 * jax.random.normal(ks[1], (out_c,), f32),
        g1=1.0 + 0.1 * jax.random.normal(ks[2], (out_c,), f32),
        beta1=0.05 * jax.random.normal(ks[3], (out_c,), f32),
        m1=0.1 * jax.random.normal(ks[4], (out_c,), f32),
        v1=1.0 + 0.5 * jax.random.uniform(ks[5], (out_c,), f32),
        w2=conv_w(ks[6], out_c, out_c),
        b2=0.05 * jax.random.normal(ks[7], (out_c,), f32),
        g2=1.0 + 0.1 * jax.random.normal(ks[8], (out_c,), f32),
        beta2=0.05 * jax.random.normal(ks[9], (out_c,), f32),
        m2=0.1 * jax.random.normal(ks[10], (out_c,), f32),
        v2=1.0 + 0.5 * jax.random.uniform(ks[11], (out_c,), f32),
    )


if __name__ == "__main__":
    key = jax.random.PRNGKey(0)
    k_param, k_x = jax.random.split(key)

    N, in_c, H, W = 2, 4, 16, 16
    out_c = 32
    dilation, grid_cfg = 1, (1, 1)

    params = init_params(k_param, in_c, out_c)
    x = jax.random.normal(k_x, (N, in_c, H, W), jnp.float32)

    out = encode_a_forward(x, params, dilation, grid_cfg)
    out = jax.block_until_ready(out)

    assert out.shape == (N, out_c, H // 2, W // 2), out.shape

    ref = encode_a_reference(x, params, dilation, grid_cfg)
    # bf16 MXU operands (f32 accumulation) -> loosened tolerance vs f32 reference.
    max_diff = jnp.max(jnp.abs(out - ref))
    if not jnp.allclose(out, ref, atol=5e-2, rtol=5e-2):
        raise AssertionError(f"mismatch: max abs diff = {max_diff}")

    print("KERNEL_OK")
</pallas_src>

<mosaic_0001>
module attributes {stable_mosaic.version = 11 : i64} {
  func.func @kernel(%arg0: i32, %arg1: memref<1x16x16x36xbf16, #tpu.memory_space<vmem>>, %arg2: memref<36x128xbf16, #tpu.memory_space<vmem>>, %arg3: memref<1x128xf32, #tpu.memory_space<vmem>>, %arg4: memref<1x128xf32, #tpu.memory_space<vmem>>, %arg5: memref<3x384x128xbf16, #tpu.memory_space<vmem>>, %arg6: memref<1x128xf32, #tpu.memory_space<vmem>>, %arg7: memref<1x128xf32, #tpu.memory_space<vmem>>, %arg8: memref<1x8x8x128xf32, #tpu.memory_space<vmem>>, %arg9: memref<18x16x384xbf16, #tpu.memory_space<vmem>>) attributes {dimension_semantics = [#tpu.dimension_semantics<parallel>], iteration_bounds = array<i64: 2>, scalar_prefetch = 0 : i64, scratch_operands = 1 : i64, tpu.core_type = #tpu.core_type<tc>, window_params = [{transform_indices = @transform_0, window_bounds = array<i64: 1, 16, 16, 36>}, {pipeline_mode = #tpu.pipeline_mode<synchronous>, transform_indices = @transform_1, window_bounds = array<i64: 36, 128>}, {pipeline_mode = #tpu.pipeline_mode<synchronous>, transform_indices = @transform_2, window_bounds = array<i64: 1, 128>}, {pipeline_mode = #tpu.pipeline_mode<synchronous>, transform_indices = @transform_3, window_bounds = array<i64: 1, 128>}, {pipeline_mode = #tpu.pipeline_mode<synchronous>, transform_indices = @transform_4, window_bounds = array<i64: 3, 384, 128>}, {pipeline_mode = #tpu.pipeline_mode<synchronous>, transform_indices = @transform_5, window_bounds = array<i64: 1, 128>}, {pipeline_mode = #tpu.pipeline_mode<synchronous>, transform_indices = @transform_6, window_bounds = array<i64: 1, 128>}, {transform_indices = @transform_7, window_bounds = array<i64: 1, 8, 8, 128>}]} {
    %c0 = arith.constant 0 : index
    %c0_0 = arith.constant 0 : index
    %c0_1 = arith.constant 0 : index
    %c0_2 = arith.constant 0 : index
    %0 = vector.load %arg1[%c0, %c0_0, %c0_1, %c0_2] : memref<1x16x16x36xbf16, #tpu.memory_space<vmem>>, vector<1x16x16x36xbf16>
    %1 = vector.shape_cast %0 : vector<1x16x16x36xbf16> to vector<16x16x36xbf16>
    %2 = vector.shape_cast %1 : vector<16x16x36xbf16> to vector<256x36xbf16>
    %c0_3 = arith.constant 0 : index
    %c0_4 = arith.constant 0 : index
    %3 = vector.load %arg2[%c0_3, %c0_4] : memref<36x128xbf16, #tpu.memory_space<vmem>>, vector<36x128xbf16>
    %cst = arith.constant dense<0.000000e+00> : vector<256x128xf32>
    %4 = tpu.matmul %2, %3, %cst {dimension_numbers = #tpu.dot_dimension_numbers<[1], [0], [0], [1], [0, 0, 1, 1], [], []>} : vector<256x36xbf16>, vector<36x128xbf16>, vector<256x128xf32> -> vector<256x128xf32>
    %c0_5 = arith.constant 0 : index
    %c0_6 = arith.constant 0 : index
    %5 = vector.load %arg3[%c0_5, %c0_6] : memref<1x128xf32, #tpu.memory_space<vmem>>, vector<1x128xf32>
    %6 = vector.broadcast %5 : vector<1x128xf32> to vector<256x128xf32>
    %7 = arith.mulf %4, %6 : vector<256x128xf32>
    %c0_7 = arith.constant 0 : index
    %c0_8 = arith.constant 0 : index
    %8 = vector.load %arg4[%c0_7, %c0_8] : memref<1x128xf32, #tpu.memory_space<vmem>>, vector<1x128xf32>
    %9 = vector.broadcast %8 : vector<1x128xf32> to vector<256x128xf32>
    %10 = arith.addf %7, %9 : vector<256x128xf32>
    %cst_9 = arith.constant 0.000000e+00 : f32
    %11 = vector.broadcast %cst_9 : f32 to vector<256x128xf32>
    %12 = arith.maximumf %10, %11 : vector<256x128xf32>
    %13 = vector.shape_cast %12 : vector<256x128xf32> to vector<16x16x128xf32>
    %cst_10 = arith.constant 0.000000e+00 : f32
    %14 = vector.broadcast %cst_10 : f32 to vector<16x1x128xf32>
    %15 = vector.extract_strided_slice %13 {offsets = [0, 0, 0], sizes = [16, 15, 128], strides = [1, 1, 1]} : vector<16x16x128xf32> to vector<16x15x128xf32>
    %16 = tpu.concatenate %14, %15 in 1 : vector<16x1x128xf32>, vector<16x15x128xf32> -> vector<16x16x128xf32>
    %17 = vector.extract_strided_slice %13 {offsets = [0, 1, 0], sizes = [16, 15, 128], strides = [1, 1, 1]} : vector<16x16x128xf32> to vector<16x15x128xf32>
    %18 = tpu.concatenate %17, %14 in 1 : vector<16x15x128xf32>, vector<16x1x128xf32> -> vector<16x16x128xf32>
    %cst_11 = arith.constant 0.000000e+00 : bf16
    %19 = vector.broadcast %cst_11 : bf16 to vector<1x16x384xbf16>
    %c0_12 = arith.constant 0 : index
    %c0_13 = arith.constant 0 : index
    %c0_14 = arith.constant 0 : index
    %20 = vector.load %arg9[%c0_12, %c0_13, %c0_14] : memref<18x16x384xbf16, #tpu.memory_space<vmem>>, vector<1x16x384xbf16>
    tpu.vector_store %arg9[%c0_12, %c0_13, %c0_14], %19 {strides = array<i32>} : memref<18x16x384xbf16, #tpu.memory_space<vmem>>, vector<1x16x384xbf16>,
    %c17 = arith.constant 17 : index
    %c0_15 = arith.constant 0 : index
    %c0_16 = arith.constant 0 : index
    %21 = vector.load %arg9[%c17, %c0_15, %c0_16] : memref<18x16x384xbf16, #tpu.memory_space<vmem>>, vector<1x16x384xbf16>
    tpu.vector_store %arg9[%c17, %c0_15, %c0_16], %19 {strides = array<i32>} : memref<18x16x384xbf16, #tpu.memory_space<vmem>>, vector<1x16x384xbf16>,
    %22 = arith.truncf %16 : vector<16x16x128xf32> to vector<16x16x128xbf16>
    %c1 = arith.constant 1 : index
    %c0_17 = arith.constant 0 : index
    %c0_18 = arith.constant 0 : index
    %23 = vector.load %arg9[%c1, %c0_17, %c0_18] : memref<18x16x384xbf16, #tpu.memory_space<vmem>>, vector<16x16x128xbf16>
    tpu.vector_store %arg9[%c1, %c0_17, %c0_18], %22 {strides = array<i32>} : memref<18x16x384xbf16, #tpu.memory_space<vmem>>, vector<16x16x128xbf16>,
    %24 = arith.truncf %13 : vector<16x16x128xf32> to vector<16x16x128xbf16>
    %c1_19 = arith.constant 1 : index
    %c0_20 = arith.constant 0 : index
    %c128 = arith.constant 128 : index
    %25 = vector.load %arg9[%c1_19, %c0_20, %c128] : memref<18x16x384xbf16, #tpu.memory_space<vmem>>, vector<16x16x128xbf16>
    tpu.vector_store %arg9[%c1_19, %c0_20, %c128], %24 {strides = array<i32>} : memref<18x16x384xbf16, #tpu.memory_space<vmem>>, vector<16x16x128xbf16>,
    %26 = arith.truncf %18 : vector<16x16x128xf32> to vector<16x16x128xbf16>
    %c1_21 = arith.constant 1 : index
    %c0_22 = arith.constant 0 : index
    %c256 = arith.constant 256 : index
    %27 = vector.load %arg9[%c1_21, %c0_22, %c256] : memref<18x16x384xbf16, #tpu.memory_space<vmem>>, vector<16x16x128xbf16>
    tpu.vector_store %arg9[%c1_21, %c0_22, %c256], %26 {strides = array<i32>} : memref<18x16x384xbf16, #tpu.memory_space<vmem>>, vector<16x16x128xbf16>,
    %cst_23 = arith.constant 0.000000e+00 : f32
    %28 = vector.broadcast %cst_23 : f32 to vector<256x128xf32>
    %c0_24 = arith.constant 0 : index
    %c0_25 = arith.constant 0 : index
    %c0_26 = arith.constant 0 : index
    %29 = vector.load %arg9[%c0_24, %c0_25, %c0_26] : memref<18x16x384xbf16, #tpu.memory_space<vmem>>, vector<16x16x384xbf16>
    %30 = vector.shape_cast %29 : vector<16x16x384xbf16> to vector<256x384xbf16>
    %c0_27 = arith.constant 0 : index
    %c0_28 = arith.constant 0 : index
    %c0_29 = arith.constant 0 : index
    %31 = vector.load %arg5[%c0_27, %c0_28, %c0_29] : memref<3x384x128xbf16, #tpu.memory_space<vmem>>, vector<1x384x128xbf16>
    %32 = vector.shape_cast %31 : vector<1x384x128xbf16> to vector<384x128xbf16>
    %cst_30 = arith.constant dense<0.000000e+00> : vector<256x128xf32>
    %33 = tpu.matmul %30, %32, %cst_30 {dimension_numbers = #tpu.dot_dimension_numbers<[1], [0], [0], [1], [0, 0, 1, 1], [], []>} : vector<256x384xbf16>, vector<384x128xbf16>, vector<256x128xf32> -> vector<256x128xf32>
    %34 = arith.addf %28, %33 : vector<256x128xf32>
    %c1_31 = arith.constant 1 : index
    %c0_32 = arith.constant 0 : index
    %c0_33 = arith.constant 0 : index
    %35 = vector.load %arg9[%c1_31, %c0_32, %c0_33] : memref<18x16x384xbf16, #tpu.memory_space<vmem>>, vector<16x16x384xbf16>
    %36 = vector.shape_cast %35 : vector<16x16x384xbf16> to vector<256x384xbf16>
    %c1_34 = arith.constant 1 : index
    %c0_35 = arith.constant 0 : index
    %c0_36 = arith.constant 0 : index
    %37 = vector.load %arg5[%c1_34, %c0_35, %c0_36] : memref<3x384x128xbf16, #tpu.memory_space<vmem>>, vector<1x384x128xbf16>
    %38 = vector.shape_cast %37 : vector<1x384x128xbf16> to vector<384x128xbf16>
    %cst_37 = arith.constant dense<0.000000e+00> : vector<256x128xf32>
    %39 = tpu.matmul %36, %38, %cst_37 {dimension_numbers = #tpu.dot_dimension_numbers<[1], [0], [0], [1], [0, 0, 1, 1], [], []>} : vector<256x384xbf16>, vector<384x128xbf16>, vector<256x128xf32> -> vector<256x128xf32>
    %40 = arith.addf %34, %39 : vector<256x128xf32>
    %c2 = arith.constant 2 : index
    %c0_38 = arith.constant 0 : index
    %c0_39 = arith.constant 0 : index
    %41 = vector.load %arg9[%c2, %c0_38, %c0_39] : memref<18x16x384xbf16, #tpu.memory_space<vmem>>, vector<16x16x384xbf16>
    %42 = vector.shape_cast %41 : vector<16x16x384xbf16> to vector<256x384xbf16>
    %c2_40 = arith.constant 2 : index
    %c0_41 = arith.constant 0 : index
    %c0_42 = arith.constant 0 : index
    %43 = vector.load %arg5[%c2_40, %c0_41, %c0_42] : memref<3x384x128xbf16, #tpu.memory_space<vmem>>, vector<1x384x128xbf16>
    %44 = vector.shape_cast %43 : vector<1x384x128xbf16> to vector<384x128xbf16>
    %cst_43 = arith.constant dense<0.000000e+00> : vector<256x128xf32>
    %45 = tpu.matmul %42, %44, %cst_43 {dimension_numbers = #tpu.dot_dimension_numbers<[1], [0], [0], [1], [0, 0, 1, 1], [], []>} : vector<256x384xbf16>, vector<384x128xbf16>, vector<256x128xf32> -> vector<256x128xf32>
    %46 = arith.addf %40, %45 : vector<256x128xf32>
    %c0_44 = arith.constant 0 : index
    %c0_45 = arith.constant 0 : index
    %47 = vector.load %arg6[%c0_44, %c0_45] : memref<1x128xf32, #tpu.memory_space<vmem>>, vector<1x128xf32>
    %48 = vector.broadcast %47 : vector<1x128xf32> to vector<256x128xf32>
    %49 = arith.mulf %46, %48 : vector<256x128xf32>
    %c0_46 = arith.constant 0 : index
    %c0_47 = arith.constant 0 : index
    %50 = vector.load %arg7[%c0_46, %c0_47] : memref<1x128xf32, #tpu.memory_space<vmem>>, vector<1x128xf32>
    %51 = vector.broadcast %50 : vector<1x128xf32> to vector<256x128xf32>
    %52 = arith.addf %49, %51 : vector<256x128xf32>
    %cst_48 = arith.constant 0.000000e+00 : f32
    %53 = vector.broadcast %cst_48 : f32 to vector<256x128xf32>
    %54 = arith.maximumf %52, %53 : vector<256x128xf32>
    %55 = vector.shape_cast %54 : vector<256x128xf32> to vector<16x16x128xf32>
    %56 = vector.shape_cast %55 : vector<16x16x128xf32> to vector<8x2x16x128xf32>
    %cst_49 = arith.constant dense<0xFF800000> : vector<8x16x128xf32>
    %57 = vector.multi_reduction <maximumf>, %56, %cst_49 [1] : vector<8x2x16x128xf32> to vector<8x16x128xf32>
    %58 = vector.shape_cast %57 : vector<8x16x128xf32> to vector<8x8x2x128xf32>
    %cst_50 = arith.constant dense<0xFF800000> : vector<8x8x128xf32>
    %59 = vector.multi_reduction <maximumf>, %58, %cst_50 [2] : vector<8x8x2x128xf32> to vector<8x8x128xf32>
    %c0_51 = arith.constant 0 : index
    %c0_52 = arith.constant 0 : index
    %c0_53 = arith.constant 0 : index
    %c0_54 = arith.constant 0 : index
    %60 = vector.load %arg8[%c0_51, %c0_52, %c0_53, %c0_54] : memref<1x8x8x128xf32, #tpu.memory_space<vmem>>, vector<1x8x8x128xf32>
    %61 = vector.shape_cast %60 : vector<1x8x8x128xf32> to vector<8x8x128xf32>
    %62 = vector.shape_cast %59 : vector<8x8x128xf32> to vector<1x8x8x128xf32>
    tpu.vector_store %arg8[%c0_51, %c0_52, %c0_53, %c0_54], %62 {strides = array<i32>} : memref<1x8x8x128xf32, #tpu.memory_space<vmem>>, vector<1x8x8x128xf32>,
    return
  }
  func.func @transform_0(%arg0: i32) -> (i32, i32, i32, i32) {
    %c0_i32 = arith.constant 0 : i32
    %c0_i32_0 = arith.constant 0 : i32
    %c0_i32_1 = arith.constant 0 : i32
    %c0_i32_2 = arith.constant 0 : i32
    return %arg0, %c0_i32, %c0_i32_0, %c0_i32_1 : i32, i32, i32, i32
  }
  func.func @transform_1(%arg0: i32) -> (i32, i32) {
    %c0_i32 = arith.constant 0 : i32
    %c0_i32_0 = arith.constant 0 : i32
    %c0_i32_1 = arith.constant 0 : i32
    return %c0_i32, %c0_i32_0 : i32, i32
  }
  func.func @transform_2(%arg0: i32) -> (i32, i32) {
    %c0_i32 = arith.constant 0 : i32
    %c0_i32_0 = arith.constant 0 : i32
    %c0_i32_1 = arith.constant 0 : i32
    return %c0_i32, %c0_i32_0 : i32, i32
  }
  func.func @transform_3(%arg0: i32) -> (i32, i32) {
    %c0_i32 = arith.constant 0 : i32
    %c0_i32_0 = arith.constant 0 : i32
    %c0_i32_1 = arith.constant 0 : i32
    return %c0_i32, %c0_i32_0 : i32, i32
  }
  func.func @transform_4(%arg0: i32) -> (i32, i32, i32) {
    %c0_i32 = arith.constant 0 : i32
    %c0_i32_0 = arith.constant 0 : i32
    %c0_i32_1 = arith.constant 0 : i32
    %c0_i32_2 = arith.constant 0 : i32
    return %c0_i32, %c0_i32_0, %c0_i32_1 : i32, i32, i32
  }
  func.func @transform_5(%arg0: i32) -> (i32, i32) {
    %c0_i32 = arith.constant 0 : i32
    %c0_i32_0 = arith.constant 0 : i32
    %c0_i32_1 = arith.constant 0 : i32
    return %c0_i32, %c0_i32_0 : i32, i32
  }
  func.func @transform_6(%arg0: i32) -> (i32, i32) {
    %c0_i32 = arith.constant 0 : i32
    %c0_i32_0 = arith.constant 0 : i32
    %c0_i32_1 = arith.constant 0 : i32
    return %c0_i32, %c0_i32_0 : i32, i32
  }
  func.func @transform_7(%arg0: i32) -> (i32, i32, i32, i32) {
    %c0_i32 = arith.constant 0 : i32
    %c0_i32_0 = arith.constant 0 : i32
    %c0_i32_1 = arith.constant 0 : i32
    %c0_i32_2 = arith.constant 0 : i32
    return %arg0, %c0_i32, %c0_i32_0, %c0_i32_1 : i32, i32, i32, i32
  }
}

</mosaic_0001>

<llo_original>
// kernel: tpu_custom_call.1
$region0: #{tpu_custom_call.1}
  #allocation0 [shape = 'u32[]', space=smem, size = 0x4, offset = 0x4, fixed_abs, tag = 'smem constant byte address 0x4 - core index']
  #allocation1 [shape = 'u32[144,128]{1,0:T(1,128)}', space=vmem, size = 0x12000, scoped, tag = 'internal scratch']
  #allocation2 [shape = 'bf16[18,16,384]{2,1,0:T(16,128)(2,1)}', space=vmem, size = 0x36000, scoped, tag = 'scratch operand']
  %s0 = inlined_call_operand.hbm [shape: bf16[2,16,16,36], index: 0, kind: input, shape index: {}]
  %s1 = inlined_call_operand.hbm [shape: bf16[36,128], index: 1, kind: input, shape index: {}]
  %s2 = inlined_call_operand.vmem [shape: f32[1,128], index: 2, kind: input, shape index: {}]
  %s3 = inlined_call_operand.vmem [shape: f32[1,128], index: 3, kind: input, shape index: {}]
  %s4 = inlined_call_operand.hbm [shape: bf16[3,384,128], index: 4, kind: input, shape index: {}]
  %s5 = inlined_call_operand.vmem [shape: f32[1,128], index: 5, kind: input, shape index: {}]
  %s6 = inlined_call_operand.vmem [shape: f32[1,128], index: 6, kind: input, shape index: {}]
  %s7 = inlined_call_operand.hbm [shape: f32[2,8,8,128], index: 7, kind: output, shape index: {}]
  %s8 = sld [smem:[#allocation0]]
  $region73: #{tpu_custom_call.1} parent=0
    _
  %s10 = ssub.s32 1, %s8
  %s11 = scalar_select 0, %s10, %s8
  $region1: #{tpu_custom_call.1} parent=0
    #allocation3 [shape = 'u8[131072]{0}', space=vmem, size = 0x20000, scoped, tag = 'input window, operand 0']
    #allocation4 [shape = 's32[2]{0}', space=sflag, size = 0x8, scoped, tag = 'scoped memory for tpu_custom_call.1']
    #allocation5 [shape = 's32[2]{0}', space=sflag, size = 0x8, scoped, tag = 'scoped memory for tpu_custom_call.1']
    #allocation6 [shape = 'u8[10240]{0}', space=vmem, size = 0x2800, scoped, tag = 'input window, operand 1, single buffered']
    #allocation7 [shape = 's32[1]{0}', space=sflag, size = 0x4, scoped, tag = 'scoped memory for tpu_custom_call.1']
    #allocation8 [shape = 'u8[294912]{0}', space=vmem, size = 0x48000, scoped, tag = 'input window, operand 4, single buffered']
    #allocation9 [shape = 'u8[65536]{0}', space=vmem, size = 0x10000, scoped, tag = 'output window, operand 0']
    %12 = vsyncpa [#allocation4], 0
    %s13 = scalar_lea.sflag [#allocation4], 1
    %14 = vsyncpa %s13, 0
    %15 = vsyncpa [#allocation7], 0
    %16 = vsyncpa [#allocation5], 0
    %s17 = scalar_lea.sflag [#allocation5], 1
    %18 = vsyncpa %s17, 0
    loop: start=0, step=1, limit=4
    $region2: #{tpu_custom_call.1} parent=1 // loop_pre_header
      _
    $region3: #{tpu_custom_call.1} parent=1 // loop_header
      %s20 = sphi 0, %s24
      %p21 = scmp.ge.s32.totalorder %s20, 4
      %s30 = sphi 0, %s32
      %s33 = sphi 0, %s30
      %s34 = sphi 0, %s33
      %s50 = sphi 0, %s34
      %s54 = sphi 0, %s54
      %s56 = sphi 0, %s54
      %s57 = sphi 0, %s56
      %s71 = sphi 0, %s57
      %s75 = sphi 0, %s75
      %s77 = sphi 0, %s75
      %s78 = sphi 0, %s77
      %s92 = sphi 0, %s78
      %s96 = sphi 0, %s96
      %s98 = sphi 0, %s96
      %s99 = sphi 0, %s98
      %s113 = sphi 0, %s99
      %s117 = sphi 0, %s117
      %s119 = sphi 0, %s117
      %s120 = sphi 0, %s119
      %s134 = sphi 0, %s120
      %s138 = sphi 0, %s138
      %s140 = sphi 0, %s138
      %s141 = sphi 0, %s140
      %s155 = sphi 0, %s141
      %s159 = sphi 0, %s159
      %s161 = sphi 0, %s159
      %s162 = sphi 0, %s161
      %s176 = sphi 0, %s162
      %s182 = sphi 0, %s184
      %s185 = sphi 0, %s182
      %s186 = sphi 0, %s185
      %s202 = sphi 0, %s186
    $region4: #{tpu_custom_call.1} parent=1 // loop_header_branch
      %23 = sbr.rel (%p21) target = $region8
    $region5: #{tpu_custom_call.1} parent=1 // loop_body
      %s25 = ssub.s32 %s20, 1
      %s26 = ssub.s32 %s20, 2
      %s27 = sadd.s32 %s20, 1
      %s28 = ssub.s32 %s20, %s27
      %p29 = scmp.eq.s32.totalorder %s28, 0
      %s31 = sadd.s32 %s30, 1
      %s32 = scalar_select %p29, %s30, %s31
      %p35 = pneg %p29
      %p36 = scmp.eq.s32.totalorder %s20, 1
      %p37 = por %p35, %p36
      %p38 = scmp.ne.s32.totalorder %s30, %s33
      %p39 = scmp.eq.s32.totalorder %s20, 0
      %p40 = por %p38, %p39
      %p41 = scmp.ne.s32.totalorder %s30, %s33
      %p42 = scmp.eq.s32.totalorder %s25, 1
      %p43 = por %p41, %p42
      %p44 = scmp.ne.s32.totalorder %s33, %s34
      %p45 = scmp.eq.s32.totalorder %s25, 0
      %p46 = por %p44, %p45
      %p47 = scmp.ne.s32.totalorder %s33, %s34
      %p48 = scmp.eq.s32.totalorder %s26, 1
      %p49 = por %p47, %p48
      %p51 = scmp.ne.s32.totalorder %s34, %s50
      %p52 = scmp.eq.s32.totalorder %s26, 0
      %p53 = por %p51, %p52
      %s55 = sadd.s32 %s54, 1
      %p58 = scmp.eq.s32.totalorder %s20, 1
      %p59 = scmp.ne.s32.totalorder %s54, %s56
      %p60 = scmp.eq.s32.totalorder %s20, 0
      %p61 = por %p59, %p60
      %p62 = scmp.ne.s32.totalorder %s54, %s56
      %p63 = scmp.eq.s32.totalorder %s25, 1
      %p64 = por %p62, %p63
      %p65 = scmp.ne.s32.totalorder %s56, %s57
      %p66 = scmp.eq.s32.totalorder %s25, 0
      %p67 = por %p65, %p66
      %p68 = scmp.ne.s32.totalorder %s56, %s57
      %p69 = scmp.eq.s32.totalorder %s26, 1
      %p70 = por %p68, %p69
      %p72 = scmp.ne.s32.totalorder %s57, %s71
      %p73 = scmp.eq.s32.totalorder %s26, 0
      %p74 = por %p72, %p73
      %s76 = sadd.s32 %s75, 1
      %p79 = scmp.eq.s32.totalorder %s20, 1
      %p80 = scmp.ne.s32.totalorder %s75, %s77
      %p81 = scmp.eq.s32.totalorder %s20, 0
      %p82 = por %p80, %p81
      %p83 = scmp.ne.s32.totalorder %s75, %s77
      %p84 = scmp.eq.s32.totalorder %s25, 1
      %p85 = por %p83, %p84
      %p86 = scmp.ne.s32.totalorder %s77, %s78
      %p87 = scmp.eq.s32.totalorder %s25, 0
      %p88 = por %p86, %p87
      %p89 = scmp.ne.s32.totalorder %s77, %s78
      %p90 = scmp.eq.s32.totalorder %s26, 1
      %p91 = por %p89, %p90
      %p93 = scmp.ne.s32.totalorder %s78, %s92
      %p94 = scmp.eq.s32.totalorder %s26, 0
      %p95 = por %p93, %p94
      %s97 = sadd.s32 %s96, 1
      %p100 = scmp.eq.s32.totalorder %s20, 1
      %p101 = scmp.ne.s32.totalorder %s96, %s98
      %p102 = scmp.eq.s32.totalorder %s20, 0
      %p103 = por %p101, %p102
      %p104 = scmp.ne.s32.totalorder %s96, %s98
      %p105 = scmp.eq.s32.totalorder %s25, 1
      %p106 = por %p104, %p105
      %p107 = scmp.ne.s32.totalorder %s98, %s99
      %p108 = scmp.eq.s32.totalorder %s25, 0
      %p109 = por %p107, %p108
      %p110 = scmp.ne.s32.totalorder %s98, %s99
      %p111 = scmp.eq.s32.totalorder %s26, 1
      %p112 = por %p110, %p111
      %p114 = scmp.ne.s32.totalorder %s99, %s113
      %p115 = scmp.eq.s32.totalorder %s26, 0
      %p116 = por %p114, %p115
      %s118 = sadd.s32 %s117, 1
      %p121 = scmp.eq.s32.totalorder %s20, 1
      %p122 = scmp.ne.s32.totalorder %s117, %s119
      %p123 = scmp.eq.s32.totalorder %s20, 0
      %p124 = por %p122, %p123
      %p125 = scmp.ne.s32.totalorder %s117, %s119
      %p126 = scmp.eq.s32.totalorder %s25, 1
      %p127 = por %p125, %p126
      %p128 = scmp.ne.s32.totalorder %s119, %s120
      %p129 = scmp.eq.s32.totalorder %s25, 0
      %p130 = por %p128, %p129
      %p131 = scmp.ne.s32.totalorder %s119, %s120
      %p132 = scmp.eq.s32.totalorder %s26, 1
      %p133 = por %p131, %p132
      %p135 = scmp.ne.s32.totalorder %s120, %s134
      %p136 = scmp.eq.s32.totalorder %s26, 0
      %p137 = por %p135, %p136
      %s139 = sadd.s32 %s138, 1
      %p142 = scmp.eq.s32.totalorder %s20, 1
      %p143 = scmp.ne.s32.totalorder %s138, %s140
      %p144 = scmp.eq.s32.totalorder %s20, 0
      %p145 = por %p143, %p144
      %p146 = scmp.ne.s32.totalorder %s138, %s140
      %p147 = scmp.eq.s32.totalorder %s25, 1
      %p148 = por %p146, %p147
      %p149 = scmp.ne.s32.totalorder %s140, %s141
      %p150 = scmp.eq.s32.totalorder %s25, 0
      %p151 = por %p149, %p150
      %p152 = scmp.ne.s32.totalorder %s140, %s141
      %p153 = scmp.eq.s32.totalorder %s26, 1
      %p154 = por %p152, %p153
      %p156 = scmp.ne.s32.totalorder %s141, %s155
      %p157 = scmp.eq.s32.totalorder %s26, 0
      %p158 = por %p156, %p157
      %s160 = sadd.s32 %s159, 1
      %p163 = scmp.eq.s32.totalorder %s20, 1
      %p164 = scmp.ne.s32.totalorder %s159, %s161
      %p165 = scmp.eq.s32.totalorder %s20, 0
      %p166 = por %p164, %p165
      %p167 = scmp.ne.s32.totalorder %s159, %s161
      %p168 = scmp.eq.s32.totalorder %s25, 1
      %p169 = por %p167, %p168
      %p170 = scmp.ne.s32.totalorder %s161, %s162
      %p171 = scmp.eq.s32.totalorder %s25, 0
      %p172 = por %p170, %p171
      %p173 = scmp.ne.s32.totalorder %s161, %s162
      %p174 = scmp.eq.s32.totalorder %s26, 1
      %p175 = por %p173, %p174
      %p177 = scmp.ne.s32.totalorder %s162, %s176
      %p178 = scmp.eq.s32.totalorder %s26, 0
      %p179 = por %p177, %p178
      %s180 = ssub.s32 %s20, %s27
      %p181 = scmp.eq.s32.totalorder %s180, 0
      %s183 = sadd.s32 %s182, 1
      %s184 = scalar_select %p181, %s182, %s183
      %p187 = pneg %p181
      %p188 = scmp.eq.s32.totalorder %s20, 1
      %p189 = por %p187, %p188
      %p190 = scmp.ne.s32.totalorder %s182, %s185
      %p191 = scmp.eq.s32.totalorder %s20, 0
      %p192 = por %p190, %p191
      %p193 = scmp.ne.s32.totalorder %s182, %s185
      %p194 = scmp.eq.s32.totalorder %s25, 1
      %p195 = por %p193, %p194
      %p196 = scmp.ne.s32.totalorder %s185, %s186
      %p197 = scmp.eq.s32.totalorder %s25, 0
      %p198 = por %p196, %p197
      %p199 = scmp.ne.s32.totalorder %s185, %s186
      %p200 = scmp.eq.s32.totalorder %s26, 1
      %p201 = por %p199, %p200
      %p203 = scmp.ne.s32.totalorder %s186, %s202
      %p204 = scmp.eq.s32.totalorder %s26, 0
      %p205 = por %p203, %p204
      %p206 = scmp.le.s32.totalorder 1, %s20
      %p207 = scmp.lt.s32.totalorder %s20, 3
      %p208 = pnand %p206, %p207
      %p209 = pneg %p208
      // Predicated region
      $region9: #{tpu_custom_call.1} parent=5 // pred_check
        _
      $region10: #{tpu_custom_call.1} parent=5 // pred_check_branch
        %211 = sbr.rel (%p208) target = $region12
      $region11: #{tpu_custom_call.1} parent=5 // pred_region
        %s212 = ssub.s32 %s20, 1
        // Predicated region
        $region13: #{tpu_custom_call.1} parent=11 // pred_check
          %p213 = pneg %p67
        $region14: #{tpu_custom_call.1} parent=11 // pred_check_branch
          %215 = sbr.rel (%p213) target = $region16
        $region15: #{tpu_custom_call.1} parent=11 // pred_region
          %s217 = ssub.s32 320, 320
          %218 = vsyncadd [#allocation7], %s217
          %s219 = sshll.u32 [#allocation6], 4
          %s220 = int_to_ptr.vmem [resolvable:$true] %s219
          %225 = dma.hbm_to_vmem [thread:$0]  %s1, 320, %s220, [#allocation7], 64, 64, 4
        $region16: #{tpu_custom_call.1} parent=11 // pred_fallthru
          _
        // Predicated region
        $region17: #{tpu_custom_call.1} parent=11 // pred_check
          %p226 = pneg %p88
        $region18: #{tpu_custom_call.1} parent=11 // pred_check_branch
          %228 = sbr.rel (%p226) target = $region20
        $region19: #{tpu_custom_call.1} parent=11 // pred_region
          _
        $region20: #{tpu_custom_call.1} parent=11 // pred_fallthru
          _
        // Predicated region
        $region21: #{tpu_custom_call.1} parent=11 // pred_check
          %p229 = pneg %p109
        $region22: #{tpu_custom_call.1} parent=11 // pred_check_branch
          %231 = sbr.rel (%p229) target = $region24
        $region23: #{tpu_custom_call.1} parent=11 // pred_region
          _
        $region24: #{tpu_custom_call.1} parent=11 // pred_fallthru
          _
        // Predicated region
        $region25: #{tpu_custom_call.1} parent=11 // pred_check
          %p232 = pneg %p130
        $region26: #{tpu_custom_call.1} parent=11 // pred_check_branch
          %234 = sbr.rel (%p232) target = $region28
        $region27: #{tpu_custom_call.1} parent=11 // pred_region
          %s236 = ssub.s32 9216, 9216
          %237 = vsyncadd [#allocation7], %s236
          %s238 = sshll.u32 [#allocation8], 4
          %s239 = int_to_ptr.vmem [resolvable:$true] %s238
          %244 = dma.hbm_to_vmem [thread:$0]  %s4, 9216, %s239, [#allocation7], 64, 64, 4
        $region28: #{tpu_custom_call.1} parent=11 // pred_fallthru
          _
        // Predicated region
        $region29: #{tpu_custom_call.1} parent=11 // pred_check
          %p245 = pneg %p151
        $region30: #{tpu_custom_call.1} parent=11 // pred_check_branch
          %247 = sbr.rel (%p245) target = $region32
        $region31: #{tpu_custom_call.1} parent=11 // pred_region
          _
        $region32: #{tpu_custom_call.1} parent=11 // pred_fallthru
          _
        // Predicated region
        $region33: #{tpu_custom_call.1} parent=11 // pred_check
          %p248 = pneg %p172
        $region34: #{tpu_custom_call.1} parent=11 // pred_check_branch
          %250 = sbr.rel (%p248) target = $region36
        $region35: #{tpu_custom_call.1} parent=11 // pred_region
          _
        $region36: #{tpu_custom_call.1} parent=11 // pred_fallthru
          _
      $region12: #{tpu_custom_call.1} parent=5 // pred_fallthru
        _
      %p251 = scmp.lt.s32.totalorder %s20, 2
      // Predicated region
      $region37: #{tpu_custom_call.1} parent=5 // pred_check
        %p252 = pneg %p251
      $region38: #{tpu_custom_call.1} parent=5 // pred_check_branch
        %254 = sbr.rel (%p252) target = $region40
      $region39: #{tpu_custom_call.1} parent=5 // pred_region
        // Predicated region
        $region41: #{tpu_custom_call.1} parent=39 // pred_check
          %p255 = pneg %p40
        $region42: #{tpu_custom_call.1} parent=39 // pred_check_branch
          %257 = sbr.rel (%p255) target = $region44
        $region43: #{tpu_custom_call.1} parent=39 // pred_region
          %s258 = sand.u32 %s30, 1
          %s259 = scalar_lea.sflag [#allocation4], %s258
          %s260 = sand.u32 %s30, 1
          %s261 = smul.addr %s260, 128
          %s262 = scalar_lea.vmem [#allocation3], %s261
          %s264 = ssub.s32 2048, 2048
          %265 = vsyncadd %s259, %s264
          %s266 = smul.addr %s20, 32
          %s267 = smul.addr %s266, 64
          %s268 = scalar_lea.hbm %s0, %s267
          %s269 = sshll.u32 %s262, 4
          %s270 = int_to_ptr.vmem [resolvable:$true] %s269
          %275 = dma.hbm_to_vmem [thread:$0]  %s268, 2048, %s270, %s259, 64, 64, 4
        $region44: #{tpu_custom_call.1} parent=39 // pred_fallthru
          _
      $region40: #{tpu_custom_call.1} parent=5 // pred_fallthru
        _
      %p276 = scmp.le.s32.totalorder 1, %s20
      %p277 = scmp.lt.s32.totalorder %s20, 3
      %p278 = pnand %p276, %p277
      %p279 = pneg %p278
      // Predicated region
      $region45: #{tpu_custom_call.1} parent=5 // pred_check
        _
      $region46: #{tpu_custom_call.1} parent=5 // pred_check_branch
        %281 = sbr.rel (%p278) target = $region48
      $region47: #{tpu_custom_call.1} parent=5 // pred_region
        %s282 = ssub.s32 %s20, 1
        %s283 = sand.u32 %s33, 1
        %s284 = scalar_lea.sflag [#allocation4], %s283
        %s285 = sand.u32 %s33, 1
        %s286 = smul.addr %s285, 128
        %s287 = scalar_lea.vmem [#allocation3], %s286
        // Predicated region
        $region49: #{tpu_custom_call.1} parent=47 // pred_check
          %p288 = pneg %p46
        $region50: #{tpu_custom_call.1} parent=47 // pred_check_branch
          %290 = sbr.rel (%p288) target = $region52
        $region51: #{tpu_custom_call.1} parent=47 // pred_region
          %291 = dma.done %s284, 2048
        $region52: #{tpu_custom_call.1} parent=47 // pred_fallthru
          _
        // Predicated region
        $region53: #{tpu_custom_call.1} parent=47 // pred_check
          %p292 = pneg %p67
        $region54: #{tpu_custom_call.1} parent=47 // pred_check_branch
          %294 = sbr.rel (%p292) target = $region56
        $region55: #{tpu_custom_call.1} parent=47 // pred_region
          %295 = dma.done [#allocation7], 320
        $region56: #{tpu_custom_call.1} parent=47 // pred_fallthru
          _
        // Predicated region
        $region57: #{tpu_custom_call.1} parent=47 // pred_check
          %p296 = pneg %p130
        $region58: #{tpu_custom_call.1} parent=47 // pred_check_branch
          %298 = sbr.rel (%p296) target = $region60
        $region59: #{tpu_custom_call.1} parent=47 // pred_region
          %299 = dma.done [#allocation7], 9216
        $region60: #{tpu_custom_call.1} parent=47 // pred_fallthru
          _
        %s300 = sand.u32 %s33, 1
        %s301 = scalar_lea.sflag [#allocation4], %s300
        %s302 = sand.u32 %s33, 1
        %s303 = smul.addr %s302, 128
        %s304 = scalar_lea.vmem [#allocation3], %s303
        %p305 = pneg %p46
        %p306 = pneg %p43
        %p307 = pneg %p67
        %p308 = pneg %p64
        %p309 = pneg %p88
        %p310 = pneg %p85
        %p311 = pneg %p109
        %p312 = pneg %p106
        %p313 = pneg %p130
        %p314 = pneg %p127
        %p315 = pneg %p151
        %p316 = pneg %p148
        %p317 = pneg %p172
        %p318 = pneg %p169
        %p319 = pneg %p198
        %p320 = pneg %p195
        %s321 = sand.u32 %s185, 1
        %s322 = scalar_lea.sflag [#allocation5], %s321
        %s323 = sand.u32 %s185, 1
        %s324 = smul.addr %s323, 64
        %s325 = scalar_lea.vmem [#allocation9], %s324
        %v327 = vld [vmem:[%s287] sm:$0xf]
        %v328 = vld [vmem:[%s287 + $0x4] sm:$0xf]
        %v329 = vld [vmem:[%s287 + $0x8] sm:$0xf]
        %v330 = vld [vmem:[%s287 + $0xc] sm:$0xf]
        %v331 = vld [vmem:[%s287 + $0x10] sm:$0xf]
        %v332 = vld [vmem:[%s287 + $0x14] sm:$0xf]
        %v333 = vld [vmem:[%s287 + $0x18] sm:$0xf]
        %v334 = vld [vmem:[%s287 + $0x1c] sm:$0xf]
        %v335 = vld [vmem:[%s287 + $0x20] sm:$0xf]
        %v336 = vld [vmem:[%s287 + $0x24] sm:$0xf]
        %v337 = vld [vmem:[%s287 + $0x28] sm:$0xf]
        %v338 = vld [vmem:[%s287 + $0x2c] sm:$0xf]
        %v339 = vld [vmem:[%s287 + $0x30] sm:$0xf]
        %v340 = vld [vmem:[%s287 + $0x34] sm:$0xf]
        %v341 = vld [vmem:[%s287 + $0x38] sm:$0xf]
        %v342 = vld [vmem:[%s287 + $0x3c] sm:$0xf]
        %v343 = vld [vmem:[%s287 + $0x40] sm:$0xf]
        %v344 = vld [vmem:[%s287 + $0x44] sm:$0xf]
        %v345 = vld [vmem:[%s287 + $0x48] sm:$0xf]
        %v346 = vld [vmem:[%s287 + $0x4c] sm:$0xf]
        %v347 = vld [vmem:[%s287 + $0x50] sm:$0xf]
        %v348 = vld [vmem:[%s287 + $0x54] sm:$0xf]
        %v349 = vld [vmem:[%s287 + $0x58] sm:$0xf]
        %v350 = vld [vmem:[%s287 + $0x5c] sm:$0xf]
        %v351 = vld [vmem:[%s287 + $0x60] sm:$0xf]
        %v352 = vld [vmem:[%s287 + $0x64] sm:$0xf]
        %v353 = vld [vmem:[%s287 + $0x68] sm:$0xf]
        %v354 = vld [vmem:[%s287 + $0x6c] sm:$0xf]
        %v355 = vld [vmem:[%s287 + $0x70] sm:$0xf]
        %v356 = vld [vmem:[%s287 + $0x74] sm:$0xf]
        %v357 = vld [vmem:[%s287 + $0x78] sm:$0xf]
        %v358 = vld [vmem:[%s287 + $0x7c] sm:$0xf]
        %v359 = vld [vmem:[#allocation6] sm:$0xf]
        %v360 = vld [vmem:[#allocation6 + $0x4] sm:$0xf]
        %v361 = vld [vmem:[#allocation6 + $0x8] sm:$0xf]
        %v362 = vld [vmem:[#allocation6 + $0xc] sm:$0xf]
        %v363 = vld [vmem:[#allocation6 + $0x10] sm:$0x3]
        %v396 = vunpack.c.l.b16 %v327
        %v397 = vunpack.c.l.b16 %v328
        %v398 = vunpack.c.l.b16 %v329
        %v399 = vunpack.c.l.b16 %v330
        %v400 = vunpack.c.l.b16 %v331
        %v401 = vunpack.c.l.b16 %v332
        %v402 = vunpack.c.l.b16 %v333
        %v403 = vunpack.c.l.b16 %v334
        %v404 = vunpack.c.l.b16 %v335
        %v405 = vunpack.c.l.b16 %v336
        %v406 = vunpack.c.l.b16 %v337
        %v407 = vunpack.c.l.b16 %v338
        %v408 = vunpack.c.l.b16 %v339
        %v409 = vunpack.c.l.b16 %v340
        %v410 = vunpack.c.l.b16 %v341
        %v411 = vunpack.c.l.b16 %v342
        %v412 = vunpack.c.l.b16 %v343
        %v413 = vunpack.c.l.b16 %v344
        %v414 = vunpack.c.l.b16 %v345
        %v415 = vunpack.c.l.b16 %v346
        %v416 = vunpack.c.l.b16 %v347
        %v417 = vunpack.c.l.b16 %v348
        %v418 = vunpack.c.l.b16 %v349
        %v419 = vunpack.c.l.b16 %v350
        %v420 = vunpack.c.l.b16 %v351
        %v421 = vunpack.c.l.b16 %v352
        %v422 = vunpack.c.l.b16 %v353
        %v423 = vunpack.c.l.b16 %v354
        %v424 = vunpack.c.l.b16 %v355
        %v425 = vunpack.c.l.b16 %v356
        %v426 = vunpack.c.l.b16 %v357
        %v427 = vunpack.c.l.b16 %v358
        %v428 = vpack.c.b16 %v397, %v396
        %v429 = vpack.c.b16 %v399, %v398
        %v430 = vpack.c.b16 %v401, %v400
        %v431 = vpack.c.b16 %v403, %v402
        %v432 = vpack.c.b16 %v405, %v404
        %v433 = vpack.c.b16 %v407, %v406
        %v434 = vpack.c.b16 %v409, %v408
        %v435 = vpack.c.b16 %v411, %v410
        %v436 = vpack.c.b16 %v413, %v412
        %v437 = vpack.c.b16 %v415, %v414
        %v438 = vpack.c.b16 %v417, %v416
        %v439 = vpack.c.b16 %v419, %v418
        %v440 = vpack.c.b16 %v421, %v420
        %v441 = vpack.c.b16 %v423, %v422
        %v442 = vpack.c.b16 %v425, %v424
        %v443 = vpack.c.b16 %v427, %v426
        %v449 = vunpack.c.l.b16 %v359
        %v450 = vunpack.c.l.b16 %v360
        %v451 = vunpack.c.l.b16 %v361
        %v452 = vunpack.c.l.b16 %v362
        %v453 = vunpack.c.l.b16 %v363
        %v454 = vpack.c.b16 %v450, %v449
        %v455 = vpack.c.b16 %v452, %v451
        %v456 = vpack.c.b16 %v453, %v453
        %vm459 = vcmask 293888
        %v461 = vsel %vm459, %v428, 0
        %v464 = vsel %vm459, %v429, 0
        %v467 = vsel %vm459, %v430, 0
        %v470 = vsel %vm459, %v431, 0
        %v473 = vsel %vm459, %v432, 0
        %v476 = vsel %vm459, %v433, 0
        %v479 = vsel %vm459, %v434, 0
        %v482 = vsel %vm459, %v435, 0
        %v485 = vsel %vm459, %v436, 0
        %v488 = vsel %vm459, %v437, 0
        %v491 = vsel %vm459, %v438, 0
        %v494 = vsel %vm459, %v439, 0
        %v497 = vsel %vm459, %v440, 0
        %v500 = vsel %vm459, %v441, 0
        %v503 = vsel %vm459, %v442, 0
        %v506 = vsel %vm459, %v443, 0
        %vm508 = vcmask 1041408
        %v510 = vsel %vm508, %v456, 0
        %512 = vmatprep.subr.bf16.mxu0 0
        %513 = vmatpush1.bf16.msra.mxu0 %v454
        %514 = vmatprep.subr.bf16.mxu0 0
        %515 = vmatpush1.bf16.msra.mxu0 %v455
        %516 = vmatprep.subr.bf16.mxu0 0
        %517 = vmatpush1.bf16.msra.mxu0 %v510
        %518 = vmatprep.subr.bf16.mxu0 0
        %519 = vmatpush1.bf16.msra.mxu0 0
        %520 = vmatprep.subr.bf16.mxu0 0
        %521 = vmatpush1.bf16.msra.mxu0 0
        %522 = vmatprep.subr.bf16.mxu0 0
        %523 = vmatpush1.bf16.msra.mxu0 0
        %524 = vmatprep.subr.bf16.mxu0 0
        %525 = vmatpush1.bf16.msra.mxu0 0
        %526 = vmatprep.subr.bf16.mxu0 0
        %527 = vmatpush1.bf16.msra.mxu0 0
        %528 = vmatprep.subr.bf16.mxu0 0
        %529 = vmatpush1.bf16.msra.mxu0 0
        %530 = vmatprep.subr.bf16.mxu0 0
        %531 = vmatpush1.bf16.msra.mxu0 0
        %532 = vmatprep.subr.bf16.mxu0 0
        %533 = vmatpush1.bf16.msra.mxu0 0
        %534 = vmatprep.subr.bf16.mxu0 0
        %535 = vmatpush1.bf16.msra.mxu0 0
        %536 = vmatprep.subr.bf16.mxu0 0
        %537 = vmatpush1.bf16.msra.mxu0 0
        %538 = vmatprep.subr.bf16.mxu0 0
        %539 = vmatpush1.bf16.msra.mxu0 0
        %540 = vmatprep.subr.bf16.mxu0 0
        %541 = vmatpush1.bf16.msra.mxu0 0
        %542 = vmatprep.subr.bf16.mxu0 0
        %543 = vmatpush1.bf16.msra.mxu0 0
        %544 = vmatprep.mubr.bf16.mxu0 0
        %545 = vmatmul.mubr.bf16.gmra.mrb[0].mxu0 %v461
        %v546 = vpop.f32.mrb[0].mxu0
        %v547 = vadd.f32 0.0, %v546
        %v548 = vpop.f32.mrb[0].mxu0
        %v549 = vpop.f32.mrb[0].mxu0
        %v550 = vadd.f32 0.0, %v549
        %v551 = vpop.f32.mrb[0].mxu0
        %552 = vmatprep.mubr.bf16.mxu0 0
        %553 = vmatmul.mubr.bf16.gmra.mrb[0].mxu0 %v464
        %v554 = vpop.f32.mrb[0].mxu0
        %v555 = vadd.f32 0.0, %v554
        %v556 = vpop.f32.mrb[0].mxu0
        %v557 = vpop.f32.mrb[0].mxu0
        %v558 = vadd.f32 0.0, %v557
        %v559 = vpop.f32.mrb[0].mxu0
        %560 = vmatprep.mubr.bf16.mxu0 0
        %561 = vmatmul.mubr.bf16.gmra.mrb[0].mxu0 %v467
        %v562 = vpop.f32.mrb[0].mxu0
        %v563 = vadd.f32 0.0, %v562
        %v564 = vpop.f32.mrb[0].mxu0
        %v565 = vpop.f32.mrb[0].mxu0
        %v566 = vadd.f32 0.0, %v565
        %v567 = vpop.f32.mrb[0].mxu0
        %568 = vmatprep.mubr.bf16.mxu0 0
        %569 = vmatmul.mubr.bf16.gmra.mrb[0].mxu0 %v470
        %v570 = vpop.f32.mrb[0].mxu0
        %v571 = vadd.f32 0.0, %v570
        %v572 = vpop.f32.mrb[0].mxu0
        %v573 = vpop.f32.mrb[0].mxu0
        %v574 = vadd.f32 0.0, %v573
        %v575 = vpop.f32.mrb[0].mxu0
        %576 = vmatprep.mubr.bf16.mxu0 0
        %577 = vmatmul.mubr.bf16.gmra.mrb[0].mxu0 %v473
        %v578 = vpop.f32.mrb[0].mxu0
        %v579 = vadd.f32 0.0, %v578
        %v580 = vpop.f32.mrb[0].mxu0
        %v581 = vpop.f32.mrb[0].mxu0
        %v582 = vadd.f32 0.0, %v581
        %v583 = vpop.f32.mrb[0].mxu0
        %584 = vmatprep.mubr.bf16.mxu0 0
        %585 = vmatmul.mubr.bf16.gmra.mrb[0].mxu0 %v476
        %v586 = vpop.f32.mrb[0].mxu0
        %v587 = vadd.f32 0.0, %v586
        %v588 = vpop.f32.mrb[0].mxu0
        %v589 = vpop.f32.mrb[0].mxu0
        %v590 = vadd.f32 0.0, %v589
        %v591 = vpop.f32.mrb[0].mxu0
        %592 = vmatprep.mubr.bf16.mxu0 0
        %593 = vmatmul.mubr.bf16.gmra.mrb[0].mxu0 %v479
        %v594 = vpop.f32.mrb[0].mxu0
        %v595 = vadd.f32 0.0, %v594
        %v596 = vpop.f32.mrb[0].mxu0
        %v597 = vpop.f32.mrb[0].mxu0
        %v598 = vadd.f32 0.0, %v597
        %v599 = vpop.f32.mrb[0].mxu0
        %600 = vmatprep.mubr.bf16.mxu0 0
        %601 = vmatmul.mubr.bf16.gmra.mrb[0].mxu0 %v482
        %v602 = vpop.f32.mrb[0].mxu0
        %v603 = vadd.f32 0.0, %v602
        %v604 = vpop.f32.mrb[0].mxu0
        %v605 = vpop.f32.mrb[0].mxu0
        %v606 = vadd.f32 0.0, %v605
        %v607 = vpop.f32.mrb[0].mxu0
        %608 = vmatprep.mubr.bf16.mxu0 0
        %609 = vmatmul.mubr.bf16.gmra.mrb[0].mxu0 %v485
        %v610 = vpop.f32.mrb[0].mxu0
        %v611 = vadd.f32 0.0, %v610
        %v612 = vpop.f32.mrb[0].mxu0
        %v613 = vpop.f32.mrb[0].mxu0
        %v614 = vadd.f32 0.0, %v613
        %v615 = vpop.f32.mrb[0].mxu0
        %616 = vmatprep.mubr.bf16.mxu0 0
        %617 = vmatmul.mubr.bf16.gmra.mrb[0].mxu0 %v488
        %v618 = vpop.f32.mrb[0].mxu0
        %v619 = vadd.f32 0.0, %v618
        %v620 = vpop.f32.mrb[0].mxu0
        %v621 = vpop.f32.mrb[0].mxu0
        %v622 = vadd.f32 0.0, %v621
        %v623 = vpop.f32.mrb[0].mxu0
        %624 = vmatprep.mubr.bf16.mxu0 0
        %625 = vmatmul.mubr.bf16.gmra.mrb[0].mxu0 %v491
        %v626 = vpop.f32.mrb[0].mxu0
        %v627 = vadd.f32 0.0, %v626
        %v628 = vpop.f32.mrb[0].mxu0
        %v629 = vpop.f32.mrb[0].mxu0
        %v630 = vadd.f32 0.0, %v629
        %v631 = vpop.f32.mrb[0].mxu0
        %632 = vmatprep.mubr.bf16.mxu0 0
        %633 = vmatmul.mubr.bf16.gmra.mrb[0].mxu0 %v494
        %v634 = vpop.f32.mrb[0].mxu0
        %v635 = vadd.f32 0.0, %v634
        %v636 = vpop.f32.mrb[0].mxu0
        %v637 = vpop.f32.mrb[0].mxu0
        %v638 = vadd.f32 0.0, %v637
        %v639 = vpop.f32.mrb[0].mxu0
        %640 = vmatprep.mubr.bf16.mxu0 0
        %641 = vmatmul.mubr.bf16.gmra.mrb[0].mxu0 %v497
        %v642 = vpop.f32.mrb[0].mxu0
        %v643 = vadd.f32 0.0, %v642
        %v644 = vpop.f32.mrb[0].mxu0
        %v645 = vpop.f32.mrb[0].mxu0
        %v646 = vadd.f32 0.0, %v645
        %v647 = vpop.f32.mrb[0].mxu0
        %648 = vmatprep.mubr.bf16.mxu0 0
        %649 = vmatmul.mubr.bf16.gmra.mrb[0].mxu0 %v500
        %v650 = vpop.f32.mrb[0].mxu0
        %v651 = vadd.f32 0.0, %v650
        %v652 = vpop.f32.mrb[0].mxu0
        %v653 = vpop.f32.mrb[0].mxu0
        %v654 = vadd.f32 0.0, %v653
        %v655 = vpop.f32.mrb[0].mxu0
        %656 = vmatprep.mubr.bf16.mxu0 0
        %657 = vmatmul.mubr.bf16.gmra.mrb[0].mxu0 %v503
        %v658 = vpop.f32.mrb[0].mxu0
        %v659 = vadd.f32 0.0, %v658
        %v660 = vpop.f32.mrb[0].mxu0
        %v661 = vpop.f32.mrb[0].mxu0
        %v662 = vadd.f32 0.0, %v661
        %v663 = vpop.f32.mrb[0].mxu0
        %664 = vmatprep.mubr.bf16.mxu0 0
        %665 = vmatmul.mubr.bf16.gmra.mrb[0].mxu0 %v506
        %v666 = vpop.f32.mrb[0].mxu0
        %v667 = vadd.f32 0.0, %v666
        %v668 = vpop.f32.mrb[0].mxu0
        %v669 = vpop.f32.mrb[0].mxu0
        %v670 = vadd.f32 0.0, %v669
        %v671 = vpop.f32.mrb[0].mxu0
        %672 = vdwg.mxu0
        %v673 = vld [vmem:[%s2] sm:$0x1]
        %v675 = vlaneseq
        %v676 = vshrl.u32 %v675, 7
        %v677 = vsub.s32 0, %v676
        %v678 = vrot.slane %v673, %v677
        %v680 = vmul.f32 %v547, %v678
        %v681 = vmul.f32 %v550, %v678
        %v682 = vmul.f32 %v555, %v678
        %v683 = vmul.f32 %v558, %v678
        %v684 = vmul.f32 %v563, %v678
        %v685 = vmul.f32 %v566, %v678
        %v686 = vmul.f32 %v571, %v678
        %v687 = vmul.f32 %v574, %v678
        %v688 = vmul.f32 %v579, %v678
        %v689 = vmul.f32 %v582, %v678
        %v690 = vmul.f32 %v587, %v678
        %v691 = vmul.f32 %v590, %v678
        %v692 = vmul.f32 %v595, %v678
        %v693 = vmul.f32 %v598, %v678
        %v694 = vmul.f32 %v603, %v678
        %v695 = vmul.f32 %v606, %v678
        %v696 = vmul.f32 %v611, %v678
        %v697 = vmul.f32 %v614, %v678
        %v698 = vmul.f32 %v619, %v678
        %v699 = vmul.f32 %v622, %v678
        %v700 = vmul.f32 %v627, %v678
        %v701 = vmul.f32 %v630, %v678
        %v702 = vmul.f32 %v635, %v678
        %v703 = vmul.f32 %v638, %v678
        %v704 = vmul.f32 %v643, %v678
        %v705 = vmul.f32 %v646, %v678
        %v706 = vmul.f32 %v651, %v678
        %v707 = vmul.f32 %v654, %v678
        %v708 = vmul.f32 %v659, %v678
        %v709 = vmul.f32 %v662, %v678
        %v710 = vmul.f32 %v667, %v678
        %v711 = vmul.f32 %v670, %v678
        %v712 = vld [vmem:[%s3] sm:$0x1]
        %v714 = vlaneseq
        %v715 = vshrl.u32 %v714, 7
        %v716 = vsub.s32 0, %v715
        %v717 = vrot.slane %v712, %v716
        %v719 = vadd.f32 %v680, %v717
        %v720 = vadd.f32 %v681, %v717
        %v721 = vadd.f32 %v682, %v717
        %v722 = vadd.f32 %v683, %v717
        %v723 = vadd.f32 %v684, %v717
        %v724 = vadd.f32 %v685, %v717
        %v725 = vadd.f32 %v686, %v717
        %v726 = vadd.f32 %v687, %v717
        %v727 = vadd.f32 %v688, %v717
        %v728 = vadd.f32 %v689, %v717
        %v729 = vadd.f32 %v690, %v717
        %v730 = vadd.f32 %v691, %v717
        %v731 = vadd.f32 %v692, %v717
        %v732 = vadd.f32 %v693, %v717
        %v733 = vadd.f32 %v694, %v717
        %v734 = vadd.f32 %v695, %v717
        %v735 = vadd.f32 %v696, %v717
        %v736 = vadd.f32 %v697, %v717
        %v737 = vadd.f32 %v698, %v717
        %v738 = vadd.f32 %v699, %v717
        %v739 = vadd.f32 %v700, %v717
        %v740 = vadd.f32 %v701, %v717
        %v741 = vadd.f32 %v702, %v717
        %v742 = vadd.f32 %v703, %v717
        %v743 = vadd.f32 %v704, %v717
        %v744 = vadd.f32 %v705, %v717
        %v745 = vadd.f32 %v706, %v717
        %v746 = vadd.f32 %v707, %v717
        %v747 = vadd.f32 %v708, %v717
        %v748 = vadd.f32 %v709, %v717
        %v749 = vadd.f32 %v710, %v717
        %v750 = vadd.f32 %v711, %v717
        %v751 = vmax.f32 %v719, 0.0
        %v752 = vmax.f32 %v720, 0.0
        %v753 = vmax.f32 %v721, 0.0
        %v754 = vmax.f32 %v722, 0.0
        %v755 = vmax.f32 %v723, 0.0
        %v756 = vmax.f32 %v724, 0.0
        %v757 = vmax.f32 %v725, 0.0
        %v758 = vmax.f32 %v726, 0.0
        %v759 = vmax.f32 %v727, 0.0
        %v760 = vmax.f32 %v728, 0.0
        %v761 = vmax.f32 %v729, 0.0
        %v762 = vmax.f32 %v730, 0.0
        %v763 = vmax.f32 %v731, 0.0
        %v764 = vmax.f32 %v732, 0.0
        %v765 = vmax.f32 %v733, 0.0
        %v766 = vmax.f32 %v734, 0.0
        %v767 = vmax.f32 %v735, 0.0
        %v768 = vmax.f32 %v736, 0.0
        %v769 = vmax.f32 %v737, 0.0
        %v770 = vmax.f32 %v738, 0.0
        %v771 = vmax.f32 %v739, 0.0
        %v772 = vmax.f32 %v740, 0.0
        %v773 = vmax.f32 %v741, 0.0
        %v774 = vmax.f32 %v742, 0.0
        %v775 = vmax.f32 %v743, 0.0
        %v776 = vmax.f32 %v744, 0.0
        %v777 = vmax.f32 %v745, 0.0
        %v778 = vmax.f32 %v746, 0.0
        %v779 = vmax.f32 %v747, 0.0
        %v780 = vmax.f32 %v748, 0.0
        %v781 = vmax.f32 %v749, 0.0
        %v782 = vmax.f32 %v750, 0.0
        %vm815 = vcmask 1040384
        %v816 = vrot.slane %v751, 7
        %v817 = vrot.slane %v752, 7
        %v818 = vsel %vm815, %v816, %v817
        %v819 = vrot.slane %v753, 7
        %v820 = vrot.slane %v754, 7
        %v821 = vsel %vm815, %v819, %v820
        %v822 = vrot.slane %v755, 7
        %v823 = vrot.slane %v756, 7
        %v824 = vsel %vm815, %v822, %v823
        %v825 = vrot.slane %v757, 7
        %v826 = vrot.slane %v758, 7
        %v827 = vsel %vm815, %v825, %v826
        %v828 = vrot.slane %v759, 7
        %v829 = vrot.slane %v760, 7
        %v830 = vsel %vm815, %v828, %v829
        %v831 = vrot.slane %v761, 7
        %v832 = vrot.slane %v762, 7
        %v833 = vsel %vm815, %v831, %v832
        %v834 = vrot.slane %v763, 7
        %v835 = vrot.slane %v764, 7
        %v836 = vsel %vm815, %v834, %v835
        %v837 = vrot.slane %v765, 7
        %v838 = vrot.slane %v766, 7
        %v839 = vsel %vm815, %v837, %v838
        %v840 = vrot.slane %v767, 7
        %v841 = vrot.slane %v768, 7
        %v842 = vsel %vm815, %v840, %v841
        %v843 = vrot.slane %v769, 7
        %v844 = vrot.slane %v770, 7
        %v845 = vsel %vm815, %v843, %v844
        %v846 = vrot.slane %v771, 7
        %v847 = vrot.slane %v772, 7
        %v848 = vsel %vm815, %v846, %v847
        %v849 = vrot.slane %v773, 7
        %v850 = vrot.slane %v774, 7
        %v851 = vsel %vm815, %v849, %v850
        %v852 = vrot.slane %v775, 7
        %v853 = vrot.slane %v776, 7
        %v854 = vsel %vm815, %v852, %v853
        %v855 = vrot.slane %v777, 7
        %v856 = vrot.slane %v778, 7
        %v857 = vsel %vm815, %v855, %v856
        %v858 = vrot.slane %v779, 7
        %v859 = vrot.slane %v780, 7
        %v860 = vsel %vm815, %v858, %v859
        %v861 = vrot.slane %v781, 7
        %v862 = vrot.slane %v782, 7
        %v863 = vsel %vm815, %v861, %v862
        %v896 = vsel %vm815, 0.0, %v816
        %v897 = vsel %vm815, 0.0, %v819
        %v898 = vsel %vm815, 0.0, %v822
        %v899 = vsel %vm815, 0.0, %v825
        %v900 = vsel %vm815, 0.0, %v828
        %v901 = vsel %vm815, 0.0, %v831
        %v902 = vsel %vm815, 0.0, %v834
        %v903 = vsel %vm815, 0.0, %v837
        %v904 = vsel %vm815, 0.0, %v840
        %v905 = vsel %vm815, 0.0, %v843
        %v906 = vsel %vm815, 0.0, %v846
        %v907 = vsel %vm815, 0.0, %v849
        %v908 = vsel %vm815, 0.0, %v852
        %v909 = vsel %vm815, 0.0, %v855
        %v910 = vsel %vm815, 0.0, %v858
        %v911 = vsel %vm815, 0.0, %v861
        %vm912 = vcmask 1046528
        %v913 = vrot.slane %v751, 1
        %v914 = vrot.slane %v752, 1
        %v915 = vsel %vm912, %v913, %v914
        %v916 = vrot.slane %v753, 1
        %v917 = vrot.slane %v754, 1
        %v918 = vsel %vm912, %v916, %v917
        %v919 = vrot.slane %v755, 1
        %v920 = vrot.slane %v756, 1
        %v921 = vsel %vm912, %v919, %v920
        %v922 = vrot.slane %v757, 1
        %v923 = vrot.slane %v758, 1
        %v924 = vsel %vm912, %v922, %v923
        %v925 = vrot.slane %v759, 1
        %v926 = vrot.slane %v760, 1
        %v927 = vsel %vm912, %v925, %v926
        %v928 = vrot.slane %v761, 1
        %v929 = vrot.slane %v762, 1
        %v930 = vsel %vm912, %v928, %v929
        %v931 = vrot.slane %v763, 1
        %v932 = vrot.slane %v764, 1
        %v933 = vsel %vm912, %v931, %v932
        %v934 = vrot.slane %v765, 1
        %v935 = vrot.slane %v766, 1
        %v936 = vsel %vm912, %v934, %v935
        %v937 = vrot.slane %v767, 1
        %v938 = vrot.slane %v768, 1
        %v939 = vsel %vm912, %v937, %v938
        %v940 = vrot.slane %v769, 1
        %v941 = vrot.slane %v770, 1
        %v942 = vsel %vm912, %v940, %v941
        %v943 = vrot.slane %v771, 1
        %v944 = vrot.slane %v772, 1
        %v945 = vsel %vm912, %v943, %v944
        %v946 = vrot.slane %v773, 1
        %v947 = vrot.slane %v774, 1
        %v948 = vsel %vm912, %v946, %v947
        %v949 = vrot.slane %v775, 1
        %v950 = vrot.slane %v776, 1
        %v951 = vsel %vm912, %v949, %v950
        %v952 = vrot.slane %v777, 1
        %v953 = vrot.slane %v778, 1
        %v954 = vsel %vm912, %v952, %v953
        %v955 = vrot.slane %v779, 1
        %v956 = vrot.slane %v780, 1
        %v957 = vsel %vm912, %v955, %v956
        %v958 = vrot.slane %v781, 1
        %v959 = vrot.slane %v782, 1
        %v960 = vsel %vm912, %v958, %v959
        %v993 = vsel %vm912, %v914, 0.0
        %v994 = vsel %vm912, %v917, 0.0
        %v995 = vsel %vm912, %v920, 0.0
        %v996 = vsel %vm912, %v923, 0.0
        %v997 = vsel %vm912, %v926, 0.0
        %v998 = vsel %vm912, %v929, 0.0
        %v999 = vsel %vm912, %v932, 0.0
        %v1000 = vsel %vm912, %v935, 0.0
        %v1001 = vsel %vm912, %v938, 0.0
        %v1002 = vsel %vm912, %v941, 0.0
        %v1003 = vsel %vm912, %v944, 0.0
        %v1004 = vsel %vm912, %v947, 0.0
        %v1005 = vsel %vm912, %v950, 0.0
        %v1006 = vsel %vm912, %v953, 0.0
        %v1007 = vsel %vm912, %v956, 0.0
        %v1008 = vsel %vm912, %v959, 0.0
        %1009 = vst [vmem:[#allocation2] sm:$0xff] 0
        %1010 = vst [vmem:[#allocation2 + $0x8] sm:$0xff] 0
        %1011 = vst [vmem:[#allocation2 + $0x10] sm:$0xff] 0
        %s1012 = scalar_lea.vmem [#allocation2], 408
        %1013 = vst [vmem:[%s1012] sm:$0xff] 0
        %1014 = vst [vmem:[%s1012 + $0x8] sm:$0xff] 0
        %1015 = vst [vmem:[%s1012 + $0x10] sm:$0xff] 0
        %v1016 = vpack.c.bf16 %v818, %v896
        %v1017 = vpack.c.bf16 %v821, %v897
        %v1018 = vpack.c.bf16 %v824, %v898
        %v1019 = vpack.c.bf16 %v827, %v899
        %v1020 = vpack.c.bf16 %v830, %v900
        %v1021 = vpack.c.bf16 %v833, %v901
        %v1022 = vpack.c.bf16 %v836, %v902
        %v1023 = vpack.c.bf16 %v839, %v903
        %v1024 = vpack.c.bf16 %v842, %v904
        %v1025 = vpack.c.bf16 %v845, %v905
        %v1026 = vpack.c.bf16 %v848, %v906
        %v1027 = vpack.c.bf16 %v851, %v907
        %v1028 = vpack.c.bf16 %v854, %v908
        %v1029 = vpack.c.bf16 %v857, %v909
        %v1030 = vpack.c.bf16 %v860, %v910
        %v1031 = vpack.c.bf16 %v863, %v911
        %s1032 = scalar_lea.vmem [#allocation2], 24
        %1033 = vst [vmem:[%s1032] sm:$0xff] %v1016
        %1034 = vst [vmem:[%s1032 + $0x18] sm:$0xff] %v1017
        %1035 = vst [vmem:[%s1032 + $0x30] sm:$0xff] %v1018
        %1036 = vst [vmem:[%s1032 + $0x48] sm:$0xff] %v1019
        %1037 = vst [vmem:[%s1032 + $0x60] sm:$0xff] %v1020
        %1038 = vst [vmem:[%s1032 + $0x78] sm:$0xff] %v1021
        %1039 = vst [vmem:[%s1032 + $0x90] sm:$0xff] %v1022
        %1040 = vst [vmem:[%s1032 + $0xa8] sm:$0xff] %v1023
        %1041 = vst [vmem:[%s1032 + $0xc0] sm:$0xff] %v1024
        %1042 = vst [vmem:[%s1032 + $0xd8] sm:$0xff] %v1025
        %1043 = vst [vmem:[%s1032 + $0xf0] sm:$0xff] %v1026
        %1044 = vst [vmem:[%s1032 + $0x108] sm:$0xff] %v1027
        %1045 = vst [vmem:[%s1032 + $0x120] sm:$0xff] %v1028
        %1046 = vst [vmem:[%s1032 + $0x138] sm:$0xff] %v1029
        %1047 = vst [vmem:[%s1032 + $0x150] sm:$0xff] %v1030
        %1048 = vst [vmem:[%s1032 + $0x168] sm:$0xff] %v1031
        %v1049 = vpack.c.bf16 %v752, %v751
        %v1050 = vpack.c.bf16 %v754, %v753
        %v1051 = vpack.c.bf16 %v756, %v755
        %v1052 = vpack.c.bf16 %v758, %v757
        %v1053 = vpack.c.bf16 %v760, %v759
        %v1054 = vpack.c.bf16 %v762, %v761
        %v1055 = vpack.c.bf16 %v764, %v763
        %v1056 = vpack.c.bf16 %v766, %v765
        %v1057 = vpack.c.bf16 %v768, %v767
        %v1058 = vpack.c.bf16 %v770, %v769
        %v1059 = vpack.c.bf16 %v772, %v771
        %v1060 = vpack.c.bf16 %v774, %v773
        %v1061 = vpack.c.bf16 %v776, %v775
        %v1062 = vpack.c.bf16 %v778, %v777
        %v1063 = vpack.c.bf16 %v780, %v779
        %v1064 = vpack.c.bf16 %v782, %v781
        %1065 = vst [vmem:[%s1032 + $0x8] sm:$0xff] %v1049
        %1066 = vst [vmem:[%s1032 + $0x20] sm:$0xff] %v1050
        %1067 = vst [vmem:[%s1032 + $0x38] sm:$0xff] %v1051
        %1068 = vst [vmem:[%s1032 + $0x50] sm:$0xff] %v1052
        %1069 = vst [vmem:[%s1032 + $0x68] sm:$0xff] %v1053
        %1070 = vst [vmem:[%s1032 + $0x80] sm:$0xff] %v1054
        %1071 = vst [vmem:[%s1032 + $0x98] sm:$0xff] %v1055
        %1072 = vst [vmem:[%s1032 + $0xb0] sm:$0xff] %v1056
        %1073 = vst [vmem:[%s1032 + $0xc8] sm:$0xff] %v1057
        %1074 = vst [vmem:[%s1032 + $0xe0] sm:$0xff] %v1058
        %1075 = vst [vmem:[%s1032 + $0xf8] sm:$0xff] %v1059
        %1076 = vst [vmem:[%s1032 + $0x110] sm:$0xff] %v1060
        %1077 = vst [vmem:[%s1032 + $0x128] sm:$0xff] %v1061
        %1078 = vst [vmem:[%s1032 + $0x140] sm:$0xff] %v1062
        %1079 = vst [vmem:[%s1032 + $0x158] sm:$0xff] %v1063
        %1080 = vst [vmem:[%s1032 + $0x170] sm:$0xff] %v1064
        %v1081 = vpack.c.bf16 %v993, %v915
        %v1082 = vpack.c.bf16 %v994, %v918
        %v1083 = vpack.c.bf16 %v995, %v921
        %v1084 = vpack.c.bf16 %v996, %v924
        %v1085 = vpack.c.bf16 %v997, %v927
        %v1086 = vpack.c.bf16 %v998, %v930
        %v1087 = vpack.c.bf16 %v999, %v933
        %v1088 = vpack.c.bf16 %v1000, %v936
        %v1089 = vpack.c.bf16 %v1001, %v939
        %v1090 = vpack.c.bf16 %v1002, %v942
        %v1091 = vpack.c.bf16 %v1003, %v945
        %v1092 = vpack.c.bf16 %v1004, %v948
        %v1093 = vpack.c.bf16 %v1005, %v951
        %v1094 = vpack.c.bf16 %v1006, %v954
        %v1095 = vpack.c.bf16 %v1007, %v957
        %v1096 = vpack.c.bf16 %v1008, %v960
        %1097 = vst [vmem:[%s1032 + $0x10] sm:$0xff] %v1081
        %1098 = vst [vmem:[%s1032 + $0x28] sm:$0xff] %v1082
        %1099 = vst [vmem:[%s1032 + $0x40] sm:$0xff] %v1083
        %1100 = vst [vmem:[%s1032 + $0x58] sm:$0xff] %v1084
        %1101 = vst [vmem:[%s1032 + $0x70] sm:$0xff] %v1085
        %1102 = vst [vmem:[%s1032 + $0x88] sm:$0xff] %v1086
        %1103 = vst [vmem:[%s1032 + $0xa0] sm:$0xff] %v1087
        %1104 = vst [vmem:[%s1032 + $0xb8] sm:$0xff] %v1088
        %1105 = vst [vmem:[%s1032 + $0xd0] sm:$0xff] %v1089
        %1106 = vst [vmem:[%s1032 + $0xe8] sm:$0xff] %v1090
        %1107 = vst [vmem:[%s1032 + $0x100] sm:$0xff] %v1091
        %1108 = vst [vmem:[%s1032 + $0x118] sm:$0xff] %v1092
        %1109 = vst [vmem:[%s1032 + $0x130] sm:$0xff] %v1093
        %1110 = vst [vmem:[%s1032 + $0x148] sm:$0xff] %v1094
        %1111 = vst [vmem:[%s1032 + $0x160] sm:$0xff] %v1095
        %1112 = vst [vmem:[%s1032 + $0x178] sm:$0xff] %v1096
        %v1113 = vld [vmem:[#allocation2] sm:$0xff]
        %v1114 = vld [vmem:[#allocation2 + $0x8] sm:$0xff]
        %v1115 = vld [vmem:[#allocation2 + $0x10] sm:$0xff]
        %v1116 = vld [vmem:[#allocation2 + $0x18] sm:$0xff]
        %v1117 = vld [vmem:[#allocation2 + $0x20] sm:$0xff]
        %v1118 = vld [vmem:[#allocation2 + $0x28] sm:$0xff]
        %v1119 = vld [vmem:[#allocation2 + $0x30] sm:$0xff]
        %v1120 = vld [vmem:[#allocation2 + $0x38] sm:$0xff]
        %v1121 = vld [vmem:[#allocation2 + $0x40] sm:$0xff]
        %v1122 = vld [vmem:[#allocation2 + $0x48] sm:$0xff]
        %v1123 = vld [vmem:[#allocation2 + $0x50] sm:$0xff]
        %v1124 = vld [vmem:[#allocation2 + $0x58] sm:$0xff]
        %v1125 = vld [vmem:[#allocation2 + $0x60] sm:$0xff]
        %v1126 = vld [vmem:[#allocation2 + $0x68] sm:$0xff]
        %v1127 = vld [vmem:[#allocation2 + $0x70] sm:$0xff]
        %v1128 = vld [vmem:[#allocation2 + $0x78] sm:$0xff]
        %v1129 = vld [vmem:[#allocation2 + $0x80] sm:$0xff]
        %v1130 = vld [vmem:[#allocation2 + $0x88] sm:$0xff]
        %v1131 = vld [vmem:[#allocation2 + $0x90] sm:$0xff]
        %v1132 = vld [vmem:[#allocation2 + $0x98] sm:$0xff]
        %v1133 = vld [vmem:[#allocation2 + $0xa0] sm:$0xff]
        %v1134 = vld [vmem:[#allocation2 + $0xa8] sm:$0xff]
        %v1135 = vld [vmem:[#allocation2 + $0xb0] sm:$0xff]
        %v1136 = vld [vmem:[#allocation2 + $0xb8] sm:$0xff]
        %v1137 = vld [vmem:[#allocation2 + $0xc0] sm:$0xff]
        %v1138 = vld [vmem:[#allocation2 + $0xc8] sm:$0xff]
        %v1139 = vld [vmem:[#allocation2 + $0xd0] sm:$0xff]
        %v1140 = vld [vmem:[#allocation2 + $0xd8] sm:$0xff]
        %v1141 = vld [vmem:[#allocation2 + $0xe0] sm:$0xff]
        %v1142 = vld [vmem:[#allocation2 + $0xe8] sm:$0xff]
        %v1143 = vld [vmem:[#allocation2 + $0xf0] sm:$0xff]
        %v1144 = vld [vmem:[#allocation2 + $0xf8] sm:$0xff]
        %v1145 = vld [vmem:[#allocation2 + $0x100] sm:$0xff]
        %v1146 = vld [vmem:[#allocation2 + $0x108] sm:$0xff]
        %v1147 = vld [vmem:[#allocation2 + $0x110] sm:$0xff]
        %v1148 = vld [vmem:[#allocation2 + $0x118] sm:$0xff]
        %v1149 = vld [vmem:[#allocation2 + $0x120] sm:$0xff]
        %v1150 = vld [vmem:[#allocation2 + $0x128] sm:$0xff]
        %v1151 = vld [vmem:[#allocation2 + $0x130] sm:$0xff]
        %v1152 = vld [vmem:[#allocation2 + $0x138] sm:$0xff]
        %v1153 = vld [vmem:[#allocation2 + $0x140] sm:$0xff]
        %v1154 = vld [vmem:[#allocation2 + $0x148] sm:$0xff]
        %v1155 = vld [vmem:[#allocation2 + $0x150] sm:$0xff]
        %v1156 = vld [vmem:[#allocation2 + $0x158] sm:$0xff]
        %v1157 = vld [vmem:[#allocation2 + $0x160] sm:$0xff]
        %v1158 = vld [vmem:[#allocation2 + $0x168] sm:$0xff]
        %v1159 = vld [vmem:[#allocation2 + $0x170] sm:$0xff]
        %v1160 = vld [vmem:[#allocation2 + $0x178] sm:$0xff]
        %v1161 = vld [vmem:[#allocation8] sm:$0xf]
        %v1162 = vld [vmem:[#allocation8 + $0x4] sm:$0xf]
        %v1163 = vld [vmem:[#allocation8 + $0x8] sm:$0xf]
        %v1164 = vld [vmem:[#allocation8 + $0xc] sm:$0xf]
        %v1165 = vld [vmem:[#allocation8 + $0x10] sm:$0xf]
        %v1166 = vld [vmem:[#allocation8 + $0x14] sm:$0xf]
        %v1167 = vld [vmem:[#allocation8 + $0x18] sm:$0xf]
        %v1168 = vld [vmem:[#allocation8 + $0x1c] sm:$0xf]
        %v1169 = vld [vmem:[#allocation8 + $0x20] sm:$0xf]
        %v1170 = vld [vmem:[#allocation8 + $0x24] sm:$0xf]
        %v1171 = vld [vmem:[#allocation8 + $0x28] sm:$0xf]
        %v1172 = vld [vmem:[#allocation8 + $0x2c] sm:$0xf]
        %v1173 = vld [vmem:[#allocation8 + $0x30] sm:$0xf]
        %v1174 = vld [vmem:[#allocation8 + $0x34] sm:$0xf]
        %v1175 = vld [vmem:[#allocation8 + $0x38] sm:$0xf]
        %v1176 = vld [vmem:[#allocation8 + $0x3c] sm:$0xf]
        %v1177 = vld [vmem:[#allocation8 + $0x40] sm:$0xf]
        %v1178 = vld [vmem:[#allocation8 + $0x44] sm:$0xf]
        %v1179 = vld [vmem:[#allocation8 + $0x48] sm:$0xf]
        %v1180 = vld [vmem:[#allocation8 + $0x4c] sm:$0xf]
        %v1181 = vld [vmem:[#allocation8 + $0x50] sm:$0xf]
        %v1182 = vld [vmem:[#allocation8 + $0x54] sm:$0xf]
        %v1183 = vld [vmem:[#allocation8 + $0x58] sm:$0xf]
        %v1184 = vld [vmem:[#allocation8 + $0x5c] sm:$0xf]
        %v1185 = vld [vmem:[#allocation8 + $0x60] sm:$0xf]
        %v1186 = vld [vmem:[#allocation8 + $0x64] sm:$0xf]
        %v1187 = vld [vmem:[#allocation8 + $0x68] sm:$0xf]
        %v1188 = vld [vmem:[#allocation8 + $0x6c] sm:$0xf]
        %v1189 = vld [vmem:[#allocation8 + $0x70] sm:$0xf]
        %v1190 = vld [vmem:[#allocation8 + $0x74] sm:$0xf]
        %v1191 = vld [vmem:[#allocation8 + $0x78] sm:$0xf]
        %v1192 = vld [vmem:[#allocation8 + $0x7c] sm:$0xf]
        %v1193 = vld [vmem:[#allocation8 + $0x80] sm:$0xf]
        %v1194 = vld [vmem:[#allocation8 + $0x84] sm:$0xf]
        %v1195 = vld [vmem:[#allocation8 + $0x88] sm:$0xf]
        %v1196 = vld [vmem:[#allocation8 + $0x8c] sm:$0xf]
        %v1197 = vld [vmem:[#allocation8 + $0x90] sm:$0xf]
        %v1198 = vld [vmem:[#allocation8 + $0x94] sm:$0xf]
        %v1199 = vld [vmem:[#allocation8 + $0x98] sm:$0xf]
        %v1200 = vld [vmem:[#allocation8 + $0x9c] sm:$0xf]
        %v1201 = vld [vmem:[#allocation8 + $0xa0] sm:$0xf]
        %v1202 = vld [vmem:[#allocation8 + $0xa4] sm:$0xf]
        %v1203 = vld [vmem:[#allocation8 + $0xa8] sm:$0xf]
        %v1204 = vld [vmem:[#allocation8 + $0xac] sm:$0xf]
        %v1205 = vld [vmem:[#allocation8 + $0xb0] sm:$0xf]
        %v1206 = vld [vmem:[#allocation8 + $0xb4] sm:$0xf]
        %v1207 = vld [vmem:[#allocation8 + $0xb8] sm:$0xf]
        %v1208 = vld [vmem:[#allocation8 + $0xbc] sm:$0xf]
        %v1209 = vld [vmem:[%s1032] sm:$0xff]
        %v1210 = vld [vmem:[%s1032 + $0x8] sm:$0xff]
        %v1211 = vld [vmem:[%s1032 + $0x10] sm:$0xff]
        %v1212 = vld [vmem:[%s1032 + $0x18] sm:$0xff]
        %v1213 = vld [vmem:[%s1032 + $0x20] sm:$0xff]
        %v1214 = vld [vmem:[%s1032 + $0x28] sm:$0xff]
        %v1215 = vld [vmem:[%s1032 + $0x30] sm:$0xff]
        %v1216 = vld [vmem:[%s1032 + $0x38] sm:$0xff]
        %v1217 = vld [vmem:[%s1032 + $0x40] sm:$0xff]
        %v1218 = vld [vmem:[%s1032 + $0x48] sm:$0xff]
        %v1219 = vld [vmem:[%s1032 + $0x50] sm:$0xff]
        %v1220 = vld [vmem:[%s1032 + $0x58] sm:$0xff]
        %v1221 = vld [vmem:[%s1032 + $0x60] sm:$0xff]
        %v1222 = vld [vmem:[%s1032 + $0x68] sm:$0xff]
        %v1223 = vld [vmem:[%s1032 + $0x70] sm:$0xff]
        %v1224 = vld [vmem:[%s1032 + $0x78] sm:$0xff]
        %v1225 = vld [vmem:[%s1032 + $0x80] sm:$0xff]
        %v1226 = vld [vmem:[%s1032 + $0x88] sm:$0xff]
        %v1227 = vld [vmem:[%s1032 + $0x90] sm:$0xff]
        %v1228 = vld [vmem:[%s1032 + $0x98] sm:$0xff]
        %v1229 = vld [vmem:[%s1032 + $0xa0] sm:$0xff]
        %v1230 = vld [vmem:[%s1032 + $0xa8] sm:$0xff]
        %v1231 = vld [vmem:[%s1032 + $0xb0] sm:$0xff]
        %v1232 = vld [vmem:[%s1032 + $0xb8] sm:$0xff]
        %v1233 = vld [vmem:[%s1032 + $0xc0] sm:$0xff]
        %v1234 = vld [vmem:[%s1032 + $0xc8] sm:$0xff]
        %v1235 = vld [vmem:[%s1032 + $0xd0] sm:$0xff]
        %v1236 = vld [vmem:[%s1032 + $0xd8] sm:$0xff]
        %v1237 = vld [vmem:[%s1032 + $0xe0] sm:$0xff]
        %v1238 = vld [vmem:[%s1032 + $0xe8] sm:$0xff]
        %v1239 = vld [vmem:[%s1032 + $0xf0] sm:$0xff]
        %v1240 = vld [vmem:[%s1032 + $0xf8] sm:$0xff]
        %v1241 = vld [vmem:[%s1032 + $0x100] sm:$0xff]
        %v1242 = vld [vmem:[%s1032 + $0x108] sm:$0xff]
        %v1243 = vld [vmem:[%s1032 + $0x110] sm:$0xff]
        %v1244 = vld [vmem:[%s1032 + $0x118] sm:$0xff]
        %v1245 = vld [vmem:[%s1032 + $0x120] sm:$0xff]
        %v1246 = vld [vmem:[%s1032 + $0x128] sm:$0xff]
        %v1247 = vld [vmem:[%s1032 + $0x130] sm:$0xff]
        %v1248 = vld [vmem:[%s1032 + $0x138] sm:$0xff]
        %v1249 = vld [vmem:[%s1032 + $0x140] sm:$0xff]
        %v1250 = vld [vmem:[%s1032 + $0x148] sm:$0xff]
        %v1251 = vld [vmem:[%s1032 + $0x150] sm:$0xff]
        %v1252 = vld [vmem:[%s1032 + $0x158] sm:$0xff]
        %v1253 = vld [vmem:[%s1032 + $0x160] sm:$0xff]
        %v1254 = vld [vmem:[%s1032 + $0x168] sm:$0xff]
        %v1255 = vld [vmem:[%s1032 + $0x170] sm:$0xff]
        %v1256 = vld [vmem:[%s1032 + $0x178] sm:$0xff]
        %s1257 = scalar_lea.vmem [#allocation8], 192
        %v1258 = vld [vmem:[%s1257] sm:$0xf]
        %v1259 = vld [vmem:[%s1257 + $0x4] sm:$0xf]
        %v1260 = vld [vmem:[%s1257 + $0x8] sm:$0xf]
        %v1261 = vld [vmem:[%s1257 + $0xc] sm:$0xf]
        %v1262 = vld [vmem:[%s1257 + $0x10] sm:$0xf]
        %v1263 = vld [vmem:[%s1257 + $0x14] sm:$0xf]
        %v1264 = vld [vmem:[%s1257 + $0x18] sm:$0xf]
        %v1265 = vld [vmem:[%s1257 + $0x1c] sm:$0xf]
        %v1266 = vld [vmem:[%s1257 + $0x20] sm:$0xf]
        %v1267 = vld [vmem:[%s1257 + $0x24] sm:$0xf]
        %v1268 = vld [vmem:[%s1257 + $0x28] sm:$0xf]
        %v1269 = vld [vmem:[%s1257 + $0x2c] sm:$0xf]
        %v1270 = vld [vmem:[%s1257 + $0x30] sm:$0xf]
        %v1271 = vld [vmem:[%s1257 + $0x34] sm:$0xf]
        %v1272 = vld [vmem:[%s1257 + $0x38] sm:$0xf]
        %v1273 = vld [vmem:[%s1257 + $0x3c] sm:$0xf]
        %v1274 = vld [vmem:[%s1257 + $0x40] sm:$0xf]
        %v1275 = vld [vmem:[%s1257 + $0x44] sm:$0xf]
        %v1276 = vld [vmem:[%s1257 + $0x48] sm:$0xf]
        %v1277 = vld [vmem:[%s1257 + $0x4c] sm:$0xf]
        %v1278 = vld [vmem:[%s1257 + $0x50] sm:$0xf]
        %v1279 = vld [vmem:[%s1257 + $0x54] sm:$0xf]
        %v1280 = vld [vmem:[%s1257 + $0x58] sm:$0xf]
        %v1281 = vld [vmem:[%s1257 + $0x5c] sm:$0xf]
        %v1282 = vld [vmem:[%s1257 + $0x60] sm:$0xf]
        %v1283 = vld [vmem:[%s1257 + $0x64] sm:$0xf]
        %v1284 = vld [vmem:[%s1257 + $0x68] sm:$0xf]
        %v1285 = vld [vmem:[%s1257 + $0x6c] sm:$0xf]
        %v1286 = vld [vmem:[%s1257 + $0x70] sm:$0xf]
        %v1287 = vld [vmem:[%s1257 + $0x74] sm:$0xf]
        %v1288 = vld [vmem:[%s1257 + $0x78] sm:$0xf]
        %v1289 = vld [vmem:[%s1257 + $0x7c] sm:$0xf]
        %v1290 = vld [vmem:[%s1257 + $0x80] sm:$0xf]
        %v1291 = vld [vmem:[%s1257 + $0x84] sm:$0xf]
        %v1292 = vld [vmem:[%s1257 + $0x88] sm:$0xf]
        %v1293 = vld [vmem:[%s1257 + $0x8c] sm:$0xf]
        %v1294 = vld [vmem:[%s1257 + $0x90] sm:$0xf]
        %v1295 = vld [vmem:[%s1257 + $0x94] sm:$0xf]
        %v1296 = vld [vmem:[%s1257 + $0x98] sm:$0xf]
        %v1297 = vld [vmem:[%s1257 + $0x9c] sm:$0xf]
        %v1298 = vld [vmem:[%s1257 + $0xa0] sm:$0xf]
        %v1299 = vld [vmem:[%s1257 + $0xa4] sm:$0xf]
        %v1300 = vld [vmem:[%s1257 + $0xa8] sm:$0xf]
        %v1301 = vld [vmem:[%s1257 + $0xac] sm:$0xf]
        %v1302 = vld [vmem:[%s1257 + $0xb0] sm:$0xf]
        %v1303 = vld [vmem:[%s1257 + $0xb4] sm:$0xf]
        %v1304 = vld [vmem:[%s1257 + $0xb8] sm:$0xf]
        %v1305 = vld [vmem:[%s1257 + $0xbc] sm:$0xf]
        %v1354 = vunpack.c.l.b16 %v1258
        %v1355 = vunpack.c.l.b16 %v1259
        %v1356 = vunpack.c.l.b16 %v1260
        %v1357 = vunpack.c.l.b16 %v1261
        %v1358 = vunpack.c.l.b16 %v1262
        %v1359 = vunpack.c.l.b16 %v1263
        %v1360 = vunpack.c.l.b16 %v1264
        %v1361 = vunpack.c.l.b16 %v1265
        %v1362 = vunpack.c.l.b16 %v1266
        %v1363 = vunpack.c.l.b16 %v1267
        %v1364 = vunpack.c.l.b16 %v1268
        %v1365 = vunpack.c.l.b16 %v1269
        %v1366 = vunpack.c.l.b16 %v1270
        %v1367 = vunpack.c.l.b16 %v1271
        %v1368 = vunpack.c.l.b16 %v1272
        %v1369 = vunpack.c.l.b16 %v1273
        %v1370 = vunpack.c.l.b16 %v1274
        %v1371 = vunpack.c.l.b16 %v1275
        %v1372 = vunpack.c.l.b16 %v1276
        %v1373 = vunpack.c.l.b16 %v1277
        %v1374 = vunpack.c.l.b16 %v1278
        %v1375 = vunpack.c.l.b16 %v1279
        %v1376 = vunpack.c.l.b16 %v1280
        %v1377 = vunpack.c.l.b16 %v1281
        %v1378 = vunpack.c.l.b16 %v1282
        %v1379 = vunpack.c.l.b16 %v1283
        %v1380 = vunpack.c.l.b16 %v1284
        %v1381 = vunpack.c.l.b16 %v1285
        %v1382 = vunpack.c.l.b16 %v1286
        %v1383 = vunpack.c.l.b16 %v1287
        %v1384 = vunpack.c.l.b16 %v1288
        %v1385 = vunpack.c.l.b16 %v1289
        %v1386 = vunpack.c.l.b16 %v1290
        %v1387 = vunpack.c.l.b16 %v1291
        %v1388 = vunpack.c.l.b16 %v1292
        %v1389 = vunpack.c.l.b16 %v1293
        %v1390 = vunpack.c.l.b16 %v1294
        %v1391 = vunpack.c.l.b16 %v1295
        %v1392 = vunpack.c.l.b16 %v1296
        %v1393 = vunpack.c.l.b16 %v1297
        %v1394 = vunpack.c.l.b16 %v1298
        %v1395 = vunpack.c.l.b16 %v1299
        %v1396 = vunpack.c.l.b16 %v1300
        %v1397 = vunpack.c.l.b16 %v1301
        %v1398 = vunpack.c.l.b16 %v1302
        %v1399 = vunpack.c.l.b16 %v1303
        %v1400 = vunpack.c.l.b16 %v1304
        %v1401 = vunpack.c.l.b16 %v1305
        %v1402 = vpack.c.b16 %v1355, %v1354
        %v1403 = vpack.c.b16 %v1357, %v1356
        %v1404 = vpack.c.b16 %v1359, %v1358
        %v1405 = vpack.c.b16 %v1361, %v1360
        %v1406 = vpack.c.b16 %v1363, %v1362
        %v1407 = vpack.c.b16 %v1365, %v1364
        %v1408 = vpack.c.b16 %v1367, %v1366
        %v1409 = vpack.c.b16 %v1369, %v1368
        %v1410 = vpack.c.b16 %v1371, %v1370
        %v1411 = vpack.c.b16 %v1373, %v1372
        %v1412 = vpack.c.b16 %v1375, %v1374
        %v1413 = vpack.c.b16 %v1377, %v1376
        %v1414 = vpack.c.b16 %v1379, %v1378
        %v1415 = vpack.c.b16 %v1381, %v1380
        %v1416 = vpack.c.b16 %v1383, %v1382
        %v1417 = vpack.c.b16 %v1385, %v1384
        %v1418 = vpack.c.b16 %v1387, %v1386
        %v1419 = vpack.c.b16 %v1389, %v1388
        %v1420 = vpack.c.b16 %v1391, %v1390
        %v1421 = vpack.c.b16 %v1393, %v1392
        %v1422 = vpack.c.b16 %v1395, %v1394
        %v1423 = vpack.c.b16 %v1397, %v1396
        %v1424 = vpack.c.b16 %v1399, %v1398
        %v1425 = vpack.c.b16 %v1401, %v1400
        %1450 = vmatprep.subr.bf16.mxu0 0
        %1451 = vmatpush1.bf16.msra.mxu0 %v1402
        %1452 = vmatprep.subr.bf16.mxu0 0
        %1453 = vmatpush1.bf16.msra.mxu0 %v1403
        %1454 = vmatprep.subr.bf16.mxu0 0
        %1455 = vmatpush1.bf16.msra.mxu0 %v1404
        %1456 = vmatprep.subr.bf16.mxu0 0
        %1457 = vmatpush1.bf16.msra.mxu0 %v1405
        %1458 = vmatprep.subr.bf16.mxu0 0
        %1459 = vmatpush1.bf16.msra.mxu0 %v1406
        %1460 = vmatprep.subr.bf16.mxu0 0
        %1461 = vmatpush1.bf16.msra.mxu0 %v1407
        %1462 = vmatprep.subr.bf16.mxu0 0
        %1463 = vmatpush1.bf16.msra.mxu0 %v1408
        %1464 = vmatprep.subr.bf16.mxu0 0
        %1465 = vmatpush1.bf16.msra.mxu0 %v1409
        %1466 = vmatprep.subr.bf16.mxu0 0
        %1467 = vmatpush1.bf16.msra.mxu0 %v1410
        %1468 = vmatprep.subr.bf16.mxu0 0
        %1469 = vmatpush1.bf16.msra.mxu0 %v1411
        %1470 = vmatprep.subr.bf16.mxu0 0
        %1471 = vmatpush1.bf16.msra.mxu0 %v1412
        %1472 = vmatprep.subr.bf16.mxu0 0
        %1473 = vmatpush1.bf16.msra.mxu0 %v1413
        %1474 = vmatprep.subr.bf16.mxu0 0
        %1475 = vmatpush1.bf16.msra.mxu0 %v1414
        %1476 = vmatprep.subr.bf16.mxu0 0
        %1477 = vmatpush1.bf16.msra.mxu0 %v1415
        %1478 = vmatprep.subr.bf16.mxu0 0
        %1479 = vmatpush1.bf16.msra.mxu0 %v1416
        %1480 = vmatprep.subr.bf16.mxu0 0
        %1481 = vmatpush1.bf16.msra.mxu0 %v1417
        %1482 = vmatprep.mubr.bf16.mxu0 %v1210
        %1483 = vmatmul.mubr.bf16.gmra.mrb[0].mxu0 %v1209
        %v1484 = vpop.f32.mrb[0].mxu0
        %v1485 = vadd.f32 0.0, %v1484
        %v1486 = vpop.f32.mrb[0].mxu0
        %v1487 = vpop.f32.mrb[0].mxu0
        %v1488 = vadd.f32 0.0, %v1487
        %v1489 = vpop.f32.mrb[0].mxu0
        %1490 = vmatprep.mubr.bf16.mxu0 %v1213
        %1491 = vmatmul.mubr.bf16.gmra.mrb[0].mxu0 %v1212
        %v1492 = vpop.f32.mrb[0].mxu0
        %v1493 = vadd.f32 0.0, %v1492
        %v1494 = vpop.f32.mrb[0].mxu0
        %v1495 = vpop.f32.mrb[0].mxu0
        %v1496 = vadd.f32 0.0, %v1495
        %v1497 = vpop.f32.mrb[0].mxu0
        %1498 = vmatprep.mubr.bf16.mxu0 %v1216
        %1499 = vmatmul.mubr.bf16.gmra.mrb[0].mxu0 %v1215
        %v1500 = vpop.f32.mrb[0].mxu0
        %v1501 = vadd.f32 0.0, %v1500
        %v1502 = vpop.f32.mrb[0].mxu0
        %v1503 = vpop.f32.mrb[0].mxu0
        %v1504 = vadd.f32 0.0, %v1503
        %v1505 = vpop.f32.mrb[0].mxu0
        %1506 = vmatprep.mubr.bf16.mxu0 %v1219
        %1507 = vmatmul.mubr.bf16.gmra.mrb[0].mxu0 %v1218
        %v1508 = vpop.f32.mrb[0].mxu0
        %v1509 = vadd.f32 0.0, %v1508
        %v1510 = vpop.f32.mrb[0].mxu0
        %v1511 = vpop.f32.mrb[0].mxu0
        %v1512 = vadd.f32 0.0, %v1511
        %v1513 = vpop.f32.mrb[0].mxu0
        %1514 = vmatprep.mubr.bf16.mxu0 %v1222
        %1515 = vmatmul.mubr.bf16.gmra.mrb[0].mxu0 %v1221
        %v1516 = vpop.f32.mrb[0].mxu0
        %v1517 = vadd.f32 0.0, %v1516
        %v1518 = vpop.f32.mrb[0].mxu0
        %v1519 = vpop.f32.mrb[0].mxu0
        %v1520 = vadd.f32 0.0, %v1519
        %v1521 = vpop.f32.mrb[0].mxu0
        %1522 = vmatprep.mubr.bf16.mxu0 %v1225
        %1523 = vmatmul.mubr.bf16.gmra.mrb[0].mxu0 %v1224
        %v1524 = vpop.f32.mrb[0].mxu0
        %v1525 = vadd.f32 0.0, %v1524
        %v1526 = vpop.f32.mrb[0].mxu0
        %v1527 = vpop.f32.mrb[0].mxu0
        %v1528 = vadd.f32 0.0, %v1527
        %v1529 = vpop.f32.mrb[0].mxu0
        %1530 = vmatprep.mubr.bf16.mxu0 %v1228
        %1531 = vmatmul.mubr.bf16.gmra.mrb[0].mxu0 %v1227
        %v1532 = vpop.f32.mrb[0].mxu0
        %v1533 = vadd.f32 0.0, %v1532
        %v1534 = vpop.f32.mrb[0].mxu0
        %v1535 = vpop.f32.mrb[0].mxu0
        %v1536 = vadd.f32 0.0, %v1535
        %v1537 = vpop.f32.mrb[0].mxu0
        %1538 = vmatprep.mubr.bf16.mxu0 %v1231
        %1539 = vmatmul.mubr.bf16.gmra.mrb[0].mxu0 %v1230
        %v1540 = vpop.f32.mrb[0].mxu0
        %v1541 = vadd.f32 0.0, %v1540
        %v1542 = vpop.f32.mrb[0].mxu0
        %v1543 = vpop.f32.mrb[0].mxu0
        %v1544 = vadd.f32 0.0, %v1543
        %v1545 = vpop.f32.mrb[0].mxu0
        %1546 = vmatprep.mubr.bf16.mxu0 %v1234
        %1547 = vmatmul.mubr.bf16.gmra.mrb[0].mxu0 %v1233
        %v1548 = vpop.f32.mrb[0].mxu0
        %v1549 = vadd.f32 0.0, %v1548
        %v1550 = vpop.f32.mrb[0].mxu0
        %v1551 = vpop.f32.mrb[0].mxu0
        %v1552 = vadd.f32 0.0, %v1551
        %v1553 = vpop.f32.mrb[0].mxu0
        %1554 = vmatprep.mubr.bf16.mxu0 %v1237
        %1555 = vmatmul.mubr.bf16.gmra.mrb[0].mxu0 %v1236
        %v1556 = vpop.f32.mrb[0].mxu0
        %v1557 = vadd.f32 0.0, %v1556
        %v1558 = vpop.f32.mrb[0].mxu0
        %v1559 = vpop.f32.mrb[0].mxu0
        %v1560 = vadd.f32 0.0, %v1559
        %v1561 = vpop.f32.mrb[0].mxu0
        %1562 = vmatprep.mubr.bf16.mxu0 %v1240
        %1563 = vmatmul.mubr.bf16.gmra.mrb[0].mxu0 %v1239
        %v1564 = vpop.f32.mrb[0].mxu0
        %v1565 = vadd.f32 0.0, %v1564
        %v1566 = vpop.f32.mrb[0].mxu0
        %v1567 = vpop.f32.mrb[0].mxu0
        %v1568 = vadd.f32 0.0, %v1567
        %v1569 = vpop.f32.mrb[0].mxu0
        %1570 = vmatprep.mubr.bf16.mxu0 %v1243
        %1571 = vmatmul.mubr.bf16.gmra.mrb[0].mxu0 %v1242
        %v1572 = vpop.f32.mrb[0].mxu0
        %v1573 = vadd.f32 0.0, %v1572
        %v1574 = vpop.f32.mrb[0].mxu0
        %v1575 = vpop.f32.mrb[0].mxu0
        %v1576 = vadd.f32 0.0, %v1575
        %v1577 = vpop.f32.mrb[0].mxu0
        %1578 = vmatprep.mubr.bf16.mxu0 %v1246
        %1579 = vmatmul.mubr.bf16.gmra.mrb[0].mxu0 %v1245
        %v1580 = vpop.f32.mrb[0].mxu0
        %v1581 = vadd.f32 0.0, %v1580
        %v1582 = vpop.f32.mrb[0].mxu0
        %v1583 = vpop.f32.mrb[0].mxu0
        %v1584 = vadd.f32 0.0, %v1583
        %v1585 = vpop.f32.mrb[0].mxu0
        %1586 = vmatprep.mubr.bf16.mxu0 %v1249
        %1587 = vmatmul.mubr.bf16.gmra.mrb[0].mxu0 %v1248
        %v1588 = vpop.f32.mrb[0].mxu0
        %v1589 = vadd.f32 0.0, %v1588
        %v1590 = vpop.f32.mrb[0].mxu0
        %v1591 = vpop.f32.mrb[0].mxu0
        %v1592 = vadd.f32 0.0, %v1591
        %v1593 = vpop.f32.mrb[0].mxu0
        %1594 = vmatprep.mubr.bf16.mxu0 %v1252
        %1595 = vmatmul.mubr.bf16.gmra.mrb[0].mxu0 %v1251
        %v1596 = vpop.f32.mrb[0].mxu0
        %v1597 = vadd.f32 0.0, %v1596
        %v1598 = vpop.f32.mrb[0].mxu0
        %v1599 = vpop.f32.mrb[0].mxu0
        %v1600 = vadd.f32 0.0, %v1599
        %v1601 = vpop.f32.mrb[0].mxu0
        %1602 = vmatprep.mubr.bf16.mxu0 %v1255
        %1603 = vmatmul.mubr.bf16.gmra.mrb[0].mxu0 %v1254
        %v1604 = vpop.f32.mrb[0].mxu0
        %v1605 = vadd.f32 0.0, %v1604
        %v1606 = vpop.f32.mrb[0].mxu0
        %v1607 = vpop.f32.mrb[0].mxu0
        %v1608 = vadd.f32 0.0, %v1607
        %v1609 = vpop.f32.mrb[0].mxu0
        %1610 = vdwg.mxu0
        %1611 = vmatprep.subr.bf16.mxu0 0
        %1612 = vmatpush1.bf16.msra.mxu0 %v1418
        %1613 = vmatprep.subr.bf16.mxu0 0
        %1614 = vmatpush1.bf16.msra.mxu0 %v1419
        %1615 = vmatprep.subr.bf16.mxu0 0
        %1616 = vmatpush1.bf16.msra.mxu0 %v1420
        %1617 = vmatprep.subr.bf16.mxu0 0
        %1618 = vmatpush1.bf16.msra.mxu0 %v1421
        %1619 = vmatprep.subr.bf16.mxu0 0
        %1620 = vmatpush1.bf16.msra.mxu0 %v1422
        %1621 = vmatprep.subr.bf16.mxu0 0
        %1622 = vmatpush1.bf16.msra.mxu0 %v1423
        %1623 = vmatprep.subr.bf16.mxu0 0
        %1624 = vmatpush1.bf16.msra.mxu0 %v1424
        %1625 = vmatprep.subr.bf16.mxu0 0
        %1626 = vmatpush1.bf16.msra.mxu0 %v1425
        %1627 = vmatprep.subr.bf16.mxu0 0
        %1628 = vmatpush1.bf16.msra.mxu0 0
        %1629 = vmatprep.subr.bf16.mxu0 0
        %1630 = vmatpush1.bf16.msra.mxu0 0
        %1631 = vmatprep.subr.bf16.mxu0 0
        %1632 = vmatpush1.bf16.msra.mxu0 0
        %1633 = vmatprep.subr.bf16.mxu0 0
        %1634 = vmatpush1.bf16.msra.mxu0 0
        %1635 = vmatprep.subr.bf16.mxu0 0
        %1636 = vmatpush1.bf16.msra.mxu0 0
        %1637 = vmatprep.subr.bf16.mxu0 0
        %1638 = vmatpush1.bf16.msra.mxu0 0
        %1639 = vmatprep.subr.bf16.mxu0 0
        %1640 = vmatpush1.bf16.msra.mxu0 0
        %1641 = vmatprep.subr.bf16.mxu0 0
        %1642 = vmatpush1.bf16.msra.mxu0 0
        %1643 = vmatprep.mubr.bf16.mxu0 0
        %1644 = vmatmul.mubr.bf16.gmra.mrb[0].mxu0 %v1211
        %v1645 = vpop.f32.mrb[0].mxu0
        %v1646 = vadd.f32 %v1485, %v1645
        %v1647 = vpop.f32.mrb[0].mxu0
        %v1648 = vpop.f32.mrb[0].mxu0
        %v1649 = vadd.f32 %v1488, %v1648
        %v1650 = vpop.f32.mrb[0].mxu0
        %1651 = vmatprep.mubr.bf16.mxu0 0
        %1652 = vmatmul.mubr.bf16.gmra.mrb[0].mxu0 %v1214
        %v1653 = vpop.f32.mrb[0].mxu0
        %v1654 = vadd.f32 %v1493, %v1653
        %v1655 = vpop.f32.mrb[0].mxu0
        %v1656 = vpop.f32.mrb[0].mxu0
        %v1657 = vadd.f32 %v1496, %v1656
        %v1658 = vpop.f32.mrb[0].mxu0
        %1659 = vmatprep.mubr.bf16.mxu0 0
        %1660 = vmatmul.mubr.bf16.gmra.mrb[0].mxu0 %v1217
        %v1661 = vpop.f32.mrb[0].mxu0
        %v1662 = vadd.f32 %v1501, %v1661
        %v1663 = vpop.f32.mrb[0].mxu0
        %v1664 = vpop.f32.mrb[0].mxu0
        %v1665 = vadd.f32 %v1504, %v1664
        %v1666 = vpop.f32.mrb[0].mxu0
        %1667 = vmatprep.mubr.bf16.mxu0 0
        %1668 = vmatmul.mubr.bf16.gmra.mrb[0].mxu0 %v1220
        %v1669 = vpop.f32.mrb[0].mxu0
        %v1670 = vadd.f32 %v1509, %v1669
        %v1671 = vpop.f32.mrb[0].mxu0
        %v1672 = vpop.f32.mrb[0].mxu0
        %v1673 = vadd.f32 %v1512, %v1672
        %v1674 = vpop.f32.mrb[0].mxu0
        %1675 = vmatprep.mubr.bf16.mxu0 0
        %1676 = vmatmul.mubr.bf16.gmra.mrb[0].mxu0 %v1223
        %v1677 = vpop.f32.mrb[0].mxu0
        %v1678 = vadd.f32 %v1517, %v1677
        %v1679 = vpop.f32.mrb[0].mxu0
        %v1680 = vpop.f32.mrb[0].mxu0
        %v1681 = vadd.f32 %v1520, %v1680
        %v1682 = vpop.f32.mrb[0].mxu0
        %1683 = vmatprep.mubr.bf16.mxu0 0
        %1684 = vmatmul.mubr.bf16.gmra.mrb[0].mxu0 %v1226
        %v1685 = vpop.f32.mrb[0].mxu0
        %v1686 = vadd.f32 %v1525, %v1685
        %v1687 = vpop.f32.mrb[0].mxu0
        %v1688 = vpop.f32.mrb[0].mxu0
        %v1689 = vadd.f32 %v1528, %v1688
        %v1690 = vpop.f32.mrb[0].mxu0
        %1691 = vmatprep.mubr.bf16.mxu0 0
        %1692 = vmatmul.mubr.bf16.gmra.mrb[0].mxu0 %v1229
        %v1693 = vpop.f32.mrb[0].mxu0
        %v1694 = vadd.f32 %v1533, %v1693
        %v1695 = vpop.f32.mrb[0].mxu0
        %v1696 = vpop.f32.mrb[0].mxu0
        %v1697 = vadd.f32 %v1536, %v1696
        %v1698 = vpop.f32.mrb[0].mxu0
        %1699 = vmatprep.mubr.bf16.mxu0 0
        %1700 = vmatmul.mubr.bf16.gmra.mrb[0].mxu0 %v1232
        %v1701 = vpop.f32.mrb[0].mxu0
        %v1702 = vadd.f32 %v1541, %v1701
        %v1703 = vpop.f32.mrb[0].mxu0
        %v1704 = vpop.f32.mrb[0].mxu0
        %v1705 = vadd.f32 %v1544, %v1704
        %v1706 = vpop.f32.mrb[0].mxu0
        %1707 = vmatprep.mubr.bf16.mxu0 0
        %1708 = vmatmul.mubr.bf16.gmra.mrb[0].mxu0 %v1235
        %v1709 = vpop.f32.mrb[0].mxu0
        %v1710 = vadd.f32 %v1549, %v1709
        %v1711 = vpop.f32.mrb[0].mxu0
        %v1712 = vpop.f32.mrb[0].mxu0
        %v1713 = vadd.f32 %v1552, %v1712
        %v1714 = vpop.f32.mrb[0].mxu0
        %1715 = vmatprep.mubr.bf16.mxu0 0
        %1716 = vmatmul.mubr.bf16.gmra.mrb[0].mxu0 %v1238
        %v1717 = vpop.f32.mrb[0].mxu0
        %v1718 = vadd.f32 %v1557, %v1717
        %v1719 = vpop.f32.mrb[0].mxu0
        %v1720 = vpop.f32.mrb[0].mxu0
        %v1721 = vadd.f32 %v1560, %v1720
        %v1722 = vpop.f32.mrb[0].mxu0
        %1723 = vmatprep.mubr.bf16.mxu0 0
        %1724 = vmatmul.mubr.bf16.gmra.mrb[0].mxu0 %v1241
        %v1725 = vpop.f32.mrb[0].mxu0
        %v1726 = vadd.f32 %v1565, %v1725
        %v1727 = vpop.f32.mrb[0].mxu0
        %v1728 = vpop.f32.mrb[0].mxu0
        %v1729 = vadd.f32 %v1568, %v1728
        %v1730 = vpop.f32.mrb[0].mxu0
        %1731 = vmatprep.mubr.bf16.mxu0 0
        %1732 = vmatmul.mubr.bf16.gmra.mrb[0].mxu0 %v1244
        %v1733 = vpop.f32.mrb[0].mxu0
        %v1734 = vadd.f32 %v1573, %v1733
        %v1735 = vpop.f32.mrb[0].mxu0
        %v1736 = vpop.f32.mrb[0].mxu0
        %v1737 = vadd.f32 %v1576, %v1736
        %v1738 = vpop.f32.mrb[0].mxu0
        %1739 = vmatprep.mubr.bf16.mxu0 0
        %1740 = vmatmul.mubr.bf16.gmra.mrb[0].mxu0 %v1247
        %v1741 = vpop.f32.mrb[0].mxu0
        %v1742 = vadd.f32 %v1581, %v1741
        %v1743 = vpop.f32.mrb[0].mxu0
        %v1744 = vpop.f32.mrb[0].mxu0
        %v1745 = vadd.f32 %v1584, %v1744
        %v1746 = vpop.f32.mrb[0].mxu0
        %1747 = vmatprep.mubr.bf16.mxu0 0
        %1748 = vmatmul.mubr.bf16.gmra.mrb[0].mxu0 %v1250
        %v1749 = vpop.f32.mrb[0].mxu0
        %v1750 = vadd.f32 %v1589, %v1749
        %v1751 = vpop.f32.mrb[0].mxu0
        %v1752 = vpop.f32.mrb[0].mxu0
        %v1753 = vadd.f32 %v1592, %v1752
        %v1754 = vpop.f32.mrb[0].mxu0
        %1755 = vmatprep.mubr.bf16.mxu0 0
        %1756 = vmatmul.mubr.bf16.gmra.mrb[0].mxu0 %v1253
        %v1757 = vpop.f32.mrb[0].mxu0
        %v1758 = vadd.f32 %v1597, %v1757
        %v1759 = vpop.f32.mrb[0].mxu0
        %v1760 = vpop.f32.mrb[0].mxu0
        %v1761 = vadd.f32 %v1600, %v1760
        %v1762 = vpop.f32.mrb[0].mxu0
        %1763 = vmatprep.mubr.bf16.mxu0 0
        %1764 = vmatmul.mubr.bf16.gmra.mrb[0].mxu0 %v1256
        %v1765 = vpop.f32.mrb[0].mxu0
        %v1766 = vadd.f32 %v1605, %v1765
        %v1767 = vpop.f32.mrb[0].mxu0
        %v1768 = vpop.f32.mrb[0].mxu0
        %v1769 = vadd.f32 %v1608, %v1768
        %v1770 = vpop.f32.mrb[0].mxu0
        %1771 = vdwg.mxu0
        %v1820 = vunpack.c.l.b16 %v1161
        %v1821 = vunpack.c.l.b16 %v1162
        %v1822 = vunpack.c.l.b16 %v1163
        %v1823 = vunpack.c.l.b16 %v1164
        %v1824 = vunpack.c.l.b16 %v1165
        %v1825 = vunpack.c.l.b16 %v1166
        %v1826 = vunpack.c.l.b16 %v1167
        %v1827 = vunpack.c.l.b16 %v1168
        %v1828 = vunpack.c.l.b16 %v1169
        %v1829 = vunpack.c.l.b16 %v1170
        %v1830 = vunpack.c.l.b16 %v1171
        %v1831 = vunpack.c.l.b16 %v1172
        %v1832 = vunpack.c.l.b16 %v1173
        %v1833 = vunpack.c.l.b16 %v1174
        %v1834 = vunpack.c.l.b16 %v1175
        %v1835 = vunpack.c.l.b16 %v1176
        %v1836 = vunpack.c.l.b16 %v1177
        %v1837 = vunpack.c.l.b16 %v1178
        %v1838 = vunpack.c.l.b16 %v1179
        %v1839 = vunpack.c.l.b16 %v1180
        %v1840 = vunpack.c.l.b16 %v1181
        %v1841 = vunpack.c.l.b16 %v1182
        %v1842 = vunpack.c.l.b16 %v1183
        %v1843 = vunpack.c.l.b16 %v1184
        %v1844 = vunpack.c.l.b16 %v1185
        %v1845 = vunpack.c.l.b16 %v1186
        %v1846 = vunpack.c.l.b16 %v1187
        %v1847 = vunpack.c.l.b16 %v1188
        %v1848 = vunpack.c.l.b16 %v1189
        %v1849 = vunpack.c.l.b16 %v1190
        %v1850 = vunpack.c.l.b16 %v1191
        %v1851 = vunpack.c.l.b16 %v1192
        %v1852 = vunpack.c.l.b16 %v1193
        %v1853 = vunpack.c.l.b16 %v1194
        %v1854 = vunpack.c.l.b16 %v1195
        %v1855 = vunpack.c.l.b16 %v1196
        %v1856 = vunpack.c.l.b16 %v1197
        %v1857 = vunpack.c.l.b16 %v1198
        %v1858 = vunpack.c.l.b16 %v1199
        %v1859 = vunpack.c.l.b16 %v1200
        %v1860 = vunpack.c.l.b16 %v1201
        %v1861 = vunpack.c.l.b16 %v1202
        %v1862 = vunpack.c.l.b16 %v1203
        %v1863 = vunpack.c.l.b16 %v1204
        %v1864 = vunpack.c.l.b16 %v1205
        %v1865 = vunpack.c.l.b16 %v1206
        %v1866 = vunpack.c.l.b16 %v1207
        %v1867 = vunpack.c.l.b16 %v1208
        %v1868 = vpack.c.b16 %v1821, %v1820
        %v1869 = vpack.c.b16 %v1823, %v1822
        %v1870 = vpack.c.b16 %v1825, %v1824
        %v1871 = vpack.c.b16 %v1827, %v1826
        %v1872 = vpack.c.b16 %v1829, %v1828
        %v1873 = vpack.c.b16 %v1831, %v1830
        %v1874 = vpack.c.b16 %v1833, %v1832
        %v1875 = vpack.c.b16 %v1835, %v1834
        %v1876 = vpack.c.b16 %v1837, %v1836
        %v1877 = vpack.c.b16 %v1839, %v1838
        %v1878 = vpack.c.b16 %v1841, %v1840
        %v1879 = vpack.c.b16 %v1843, %v1842
        %v1880 = vpack.c.b16 %v1845, %v1844
        %v1881 = vpack.c.b16 %v1847, %v1846
        %v1882 = vpack.c.b16 %v1849, %v1848
        %v1883 = vpack.c.b16 %v1851, %v1850
        %v1884 = vpack.c.b16 %v1853, %v1852
        %v1885 = vpack.c.b16 %v1855, %v1854
        %v1886 = vpack.c.b16 %v1857, %v1856
        %v1887 = vpack.c.b16 %v1859, %v1858
        %v1888 = vpack.c.b16 %v1861, %v1860
        %v1889 = vpack.c.b16 %v1863, %v1862
        %v1890 = vpack.c.b16 %v1865, %v1864
        %v1891 = vpack.c.b16 %v1867, %v1866
        %1916 = vmatprep.subr.bf16.mxu0 0
        %1917 = vmatpush1.bf16.msra.mxu0 %v1868
        %1918 = vmatprep.subr.bf16.mxu0 0
        %1919 = vmatpush1.bf16.msra.mxu0 %v1869
        %1920 = vmatprep.subr.bf16.mxu0 0
        %1921 = vmatpush1.bf16.msra.mxu0 %v1870
        %1922 = vmatprep.subr.bf16.mxu0 0
        %1923 = vmatpush1.bf16.msra.mxu0 %v1871
        %1924 = vmatprep.subr.bf16.mxu0 0
        %1925 = vmatpush1.bf16.msra.mxu0 %v1872
        %1926 = vmatprep.subr.bf16.mxu0 0
        %1927 = vmatpush1.bf16.msra.mxu0 %v1873
        %1928 = vmatprep.subr.bf16.mxu0 0
        %1929 = vmatpush1.bf16.msra.mxu0 %v1874
        %1930 = vmatprep.subr.bf16.mxu0 0
        %1931 = vmatpush1.bf16.msra.mxu0 %v1875
        %1932 = vmatprep.subr.bf16.mxu0 0
        %1933 = vmatpush1.bf16.msra.mxu0 %v1876
        %1934 = vmatprep.subr.bf16.mxu0 0
        %1935 = vmatpush1.bf16.msra.mxu0 %v1877
        %1936 = vmatprep.subr.bf16.mxu0 0
        %1937 = vmatpush1.bf16.msra.mxu0 %v1878
        %1938 = vmatprep.subr.bf16.mxu0 0
        %1939 = vmatpush1.bf16.msra.mxu0 %v1879
        %1940 = vmatprep.subr.bf16.mxu0 0
        %1941 = vmatpush1.bf16.msra.mxu0 %v1880
        %1942 = vmatprep.subr.bf16.mxu0 0
        %1943 = vmatpush1.bf16.msra.mxu0 %v1881
        %1944 = vmatprep.subr.bf16.mxu0 0
        %1945 = vmatpush1.bf16.msra.mxu0 %v1882
        %1946 = vmatprep.subr.bf16.mxu0 0
        %1947 = vmatpush1.bf16.msra.mxu0 %v1883
        %1948 = vmatprep.mubr.bf16.mxu0 %v1114
        %1949 = vmatmul.mubr.bf16.gmra.mrb[0].mxu0 %v1113
        %v1950 = vpop.f32.mrb[0].mxu0
        %v1951 = vadd.f32 %v1646, %v1950
        %v1952 = vpop.f32.mrb[0].mxu0
        %v1953 = vpop.f32.mrb[0].mxu0
        %v1954 = vadd.f32 %v1649, %v1953
        %v1955 = vpop.f32.mrb[0].mxu0
        %1956 = vmatprep.mubr.bf16.mxu0 %v1117
        %1957 = vmatmul.mubr.bf16.gmra.mrb[0].mxu0 %v1116
        %v1958 = vpop.f32.mrb[0].mxu0
        %v1959 = vadd.f32 %v1654, %v1958
        %v1960 = vpop.f32.mrb[0].mxu0
        %v1961 = vpop.f32.mrb[0].mxu0
        %v1962 = vadd.f32 %v1657, %v1961
        %v1963 = vpop.f32.mrb[0].mxu0
        %1964 = vmatprep.mubr.bf16.mxu0 %v1120
        %1965 = vmatmul.mubr.bf16.gmra.mrb[0].mxu0 %v1119
        %v1966 = vpop.f32.mrb[0].mxu0
        %v1967 = vadd.f32 %v1662, %v1966
        %v1968 = vpop.f32.mrb[0].mxu0
        %v1969 = vpop.f32.mrb[0].mxu0
        %v1970 = vadd.f32 %v1665, %v1969
        %v1971 = vpop.f32.mrb[0].mxu0
        %1972 = vmatprep.mubr.bf16.mxu0 %v1123
        %1973 = vmatmul.mubr.bf16.gmra.mrb[0].mxu0 %v1122
        %v1974 = vpop.f32.mrb[0].mxu0
        %v1975 = vadd.f32 %v1670, %v1974
        %v1976 = vpop.f32.mrb[0].mxu0
        %v1977 = vpop.f32.mrb[0].mxu0
        %v1978 = vadd.f32 %v1673, %v1977
        %v1979 = vpop.f32.mrb[0].mxu0
        %1980 = vmatprep.mubr.bf16.mxu0 %v1126
        %1981 = vmatmul.mubr.bf16.gmra.mrb[0].mxu0 %v1125
        %v1982 = vpop.f32.mrb[0].mxu0
        %v1983 = vadd.f32 %v1678, %v1982
        %v1984 = vpop.f32.mrb[0].mxu0
        %v1985 = vpop.f32.mrb[0].mxu0
        %v1986 = vadd.f32 %v1681, %v1985
        %v1987 = vpop.f32.mrb[0].mxu0
        %1988 = vmatprep.mubr.bf16.mxu0 %v1129
        %1989 = vmatmul.mubr.bf16.gmra.mrb[0].mxu0 %v1128
        %v1990 = vpop.f32.mrb[0].mxu0
        %v1991 = vadd.f32 %v1686, %v1990
        %v1992 = vpop.f32.mrb[0].mxu0
        %v1993 = vpop.f32.mrb[0].mxu0
        %v1994 = vadd.f32 %v1689, %v1993
        %v1995 = vpop.f32.mrb[0].mxu0
        %1996 = vmatprep.mubr.bf16.mxu0 %v1132
        %1997 = vmatmul.mubr.bf16.gmra.mrb[0].mxu0 %v1131
        %v1998 = vpop.f32.mrb[0].mxu0
        %v1999 = vadd.f32 %v1694, %v1998
        %v2000 = vpop.f32.mrb[0].mxu0
        %v2001 = vpop.f32.mrb[0].mxu0
        %v2002 = vadd.f32 %v1697, %v2001
        %v2003 = vpop.f32.mrb[0].mxu0
        %2004 = vmatprep.mubr.bf16.mxu0 %v1135
        %2005 = vmatmul.mubr.bf16.gmra.mrb[0].mxu0 %v1134
        %v2006 = vpop.f32.mrb[0].mxu0
        %v2007 = vadd.f32 %v1702, %v2006
        %v2008 = vpop.f32.mrb[0].mxu0
        %v2009 = vpop.f32.mrb[0].mxu0
        %v2010 = vadd.f32 %v1705, %v2009
        %v2011 = vpop.f32.mrb[0].mxu0
        %2012 = vmatprep.mubr.bf16.mxu0 %v1138
        %2013 = vmatmul.mubr.bf16.gmra.mrb[0].mxu0 %v1137
        %v2014 = vpop.f32.mrb[0].mxu0
        %v2015 = vadd.f32 %v1710, %v2014
        %v2016 = vpop.f32.mrb[0].mxu0
        %v2017 = vpop.f32.mrb[0].mxu0
        %v2018 = vadd.f32 %v1713, %v2017
        %v2019 = vpop.f32.mrb[0].mxu0
        %2020 = vmatprep.mubr.bf16.mxu0 %v1141
        %2021 = vmatmul.mubr.bf16.gmra.mrb[0].mxu0 %v1140
        %v2022 = vpop.f32.mrb[0].mxu0
        %v2023 = vadd.f32 %v1718, %v2022
        %v2024 = vpop.f32.mrb[0].mxu0
        %v2025 = vpop.f32.mrb[0].mxu0
        %v2026 = vadd.f32 %v1721, %v2025
        %v2027 = vpop.f32.mrb[0].mxu0
        %2028 = vmatprep.mubr.bf16.mxu0 %v1144
        %2029 = vmatmul.mubr.bf16.gmra.mrb[0].mxu0 %v1143
        %v2030 = vpop.f32.mrb[0].mxu0
        %v2031 = vadd.f32 %v1726, %v2030
        %v2032 = vpop.f32.mrb[0].mxu0
        %v2033 = vpop.f32.mrb[0].mxu0
        %v2034 = vadd.f32 %v1729, %v2033
        %v2035 = vpop.f32.mrb[0].mxu0
        %2036 = vmatprep.mubr.bf16.mxu0 %v1147
        %2037 = vmatmul.mubr.bf16.gmra.mrb[0].mxu0 %v1146
        %v2038 = vpop.f32.mrb[0].mxu0
        %v2039 = vadd.f32 %v1734, %v2038
        %v2040 = vpop.f32.mrb[0].mxu0
        %v2041 = vpop.f32.mrb[0].mxu0
        %v2042 = vadd.f32 %v1737, %v2041
        %v2043 = vpop.f32.mrb[0].mxu0
        %2044 = vmatprep.mubr.bf16.mxu0 %v1150
        %2045 = vmatmul.mubr.bf16.gmra.mrb[0].mxu0 %v1149
        %v2046 = vpop.f32.mrb[0].mxu0
        %v2047 = vadd.f32 %v1742, %v2046
        %v2048 = vpop.f32.mrb[0].mxu0
        %v2049 = vpop.f32.mrb[0].mxu0
        %v2050 = vadd.f32 %v1745, %v2049
        %v2051 = vpop.f32.mrb[0].mxu0
        %2052 = vmatprep.mubr.bf16.mxu0 %v1153
        %2053 = vmatmul.mubr.bf16.gmra.mrb[0].mxu0 %v1152
        %v2054 = vpop.f32.mrb[0].mxu0
        %v2055 = vadd.f32 %v1750, %v2054
        %v2056 = vpop.f32.mrb[0].mxu0
        %v2057 = vpop.f32.mrb[0].mxu0
        %v2058 = vadd.f32 %v1753, %v2057
        %v2059 = vpop.f32.mrb[0].mxu0
        %2060 = vmatprep.mubr.bf16.mxu0 %v1156
        %2061 = vmatmul.mubr.bf16.gmra.mrb[0].mxu0 %v1155
        %v2062 = vpop.f32.mrb[0].mxu0
        %v2063 = vadd.f32 %v1758, %v2062
        %v2064 = vpop.f32.mrb[0].mxu0
        %v2065 = vpop.f32.mrb[0].mxu0
        %v2066 = vadd.f32 %v1761, %v2065
        %v2067 = vpop.f32.mrb[0].mxu0
        %2068 = vmatprep.mubr.bf16.mxu0 %v1159
        %2069 = vmatmul.mubr.bf16.gmra.mrb[0].mxu0 %v1158
        %v2070 = vpop.f32.mrb[0].mxu0
        %v2071 = vadd.f32 %v1766, %v2070
        %v2072 = vpop.f32.mrb[0].mxu0
        %v2073 = vpop.f32.mrb[0].mxu0
        %v2074 = vadd.f32 %v1769, %v2073
        %v2075 = vpop.f32.mrb[0].mxu0
        %2076 = vdwg.mxu0
        %2077 = vmatprep.subr.bf16.mxu0 0
        %2078 = vmatpush1.bf16.msra.mxu0 %v1884
        %2079 = vmatprep.subr.bf16.mxu0 0
        %2080 = vmatpush1.bf16.msra.mxu0 %v1885
        %2081 = vmatprep.subr.bf16.mxu0 0
        %2082 = vmatpush1.bf16.msra.mxu0 %v1886
        %2083 = vmatprep.subr.bf16.mxu0 0
        %2084 = vmatpush1.bf16.msra.mxu0 %v1887
        %2085 = vmatprep.subr.bf16.mxu0 0
        %2086 = vmatpush1.bf16.msra.mxu0 %v1888
        %2087 = vmatprep.subr.bf16.mxu0 0
        %2088 = vmatpush1.bf16.msra.mxu0 %v1889
        %2089 = vmatprep.subr.bf16.mxu0 0
        %2090 = vmatpush1.bf16.msra.mxu0 %v1890
        %2091 = vmatprep.subr.bf16.mxu0 0
        %2092 = vmatpush1.bf16.msra.mxu0 %v1891
        %2093 = vmatprep.subr.bf16.mxu0 0
        %2094 = vmatpush1.bf16.msra.mxu0 0
        %2095 = vmatprep.subr.bf16.mxu0 0
        %2096 = vmatpush1.bf16.msra.mxu0 0
        %2097 = vmatprep.subr.bf16.mxu0 0
        %2098 = vmatpush1.bf16.msra.mxu0 0
        %2099 = vmatprep.subr.bf16.mxu0 0
        %2100 = vmatpush1.bf16.msra.mxu0 0
        %2101 = vmatprep.subr.bf16.mxu0 0
        %2102 = vmatpush1.bf16.msra.mxu0 0
        %2103 = vmatprep.subr.bf16.mxu0 0
        %2104 = vmatpush1.bf16.msra.mxu0 0
        %2105 = vmatprep.subr.bf16.mxu0 0
        %2106 = vmatpush1.bf16.msra.mxu0 0
        %2107 = vmatprep.subr.bf16.mxu0 0
        %2108 = vmatpush1.bf16.msra.mxu0 0
        %2109 = vmatprep.mubr.bf16.mxu0 0
        %2110 = vmatmul.mubr.bf16.gmra.mrb[0].mxu0 %v1115
        %v2111 = vpop.f32.mrb[0].mxu0
        %v2112 = vadd.f32 %v1951, %v2111
        %v2113 = vpop.f32.mrb[0].mxu0
        %v2114 = vpop.f32.mrb[0].mxu0
        %v2115 = vadd.f32 %v1954, %v2114
        %v2116 = vpop.f32.mrb[0].mxu0
        %2117 = vmatprep.mubr.bf16.mxu0 0
        %2118 = vmatmul.mubr.bf16.gmra.mrb[0].mxu0 %v1118
        %v2119 = vpop.f32.mrb[0].mxu0
        %v2120 = vadd.f32 %v1959, %v2119
        %v2121 = vpop.f32.mrb[0].mxu0
        %v2122 = vpop.f32.mrb[0].mxu0
        %v2123 = vadd.f32 %v1962, %v2122
        %v2124 = vpop.f32.mrb[0].mxu0
        %2125 = vmatprep.mubr.bf16.mxu0 0
        %2126 = vmatmul.mubr.bf16.gmra.mrb[0].mxu0 %v1121
        %v2127 = vpop.f32.mrb[0].mxu0
        %v2128 = vadd.f32 %v1967, %v2127
        %v2129 = vpop.f32.mrb[0].mxu0
        %v2130 = vpop.f32.mrb[0].mxu0
        %v2131 = vadd.f32 %v1970, %v2130
        %v2132 = vpop.f32.mrb[0].mxu0
        %2133 = vmatprep.mubr.bf16.mxu0 0
        %2134 = vmatmul.mubr.bf16.gmra.mrb[0].mxu0 %v1124
        %v2135 = vpop.f32.mrb[0].mxu0
        %v2136 = vadd.f32 %v1975, %v2135
        %v2137 = vpop.f32.mrb[0].mxu0
        %v2138 = vpop.f32.mrb[0].mxu0
        %v2139 = vadd.f32 %v1978, %v2138
        %v2140 = vpop.f32.mrb[0].mxu0
        %2141 = vmatprep.mubr.bf16.mxu0 0
        %2142 = vmatmul.mubr.bf16.gmra.mrb[0].mxu0 %v1127
        %v2143 = vpop.f32.mrb[0].mxu0
        %v2144 = vadd.f32 %v1983, %v2143
        %v2145 = vpop.f32.mrb[0].mxu0
        %v2146 = vpop.f32.mrb[0].mxu0
        %v2147 = vadd.f32 %v1986, %v2146
        %v2148 = vpop.f32.mrb[0].mxu0
        %2149 = vmatprep.mubr.bf16.mxu0 0
        %2150 = vmatmul.mubr.bf16.gmra.mrb[0].mxu0 %v1130
        %v2151 = vpop.f32.mrb[0].mxu0
        %v2152 = vadd.f32 %v1991, %v2151
        %v2153 = vpop.f32.mrb[0].mxu0
        %v2154 = vpop.f32.mrb[0].mxu0
        %v2155 = vadd.f32 %v1994, %v2154
        %v2156 = vpop.f32.mrb[0].mxu0
        %2157 = vmatprep.mubr.bf16.mxu0 0
        %2158 = vmatmul.mubr.bf16.gmra.mrb[0].mxu0 %v1133
        %v2159 = vpop.f32.mrb[0].mxu0
        %v2160 = vadd.f32 %v1999, %v2159
        %v2161 = vpop.f32.mrb[0].mxu0
        %v2162 = vpop.f32.mrb[0].mxu0
        %v2163 = vadd.f32 %v2002, %v2162
        %v2164 = vpop.f32.mrb[0].mxu0
        %2165 = vmatprep.mubr.bf16.mxu0 0
        %2166 = vmatmul.mubr.bf16.gmra.mrb[0].mxu0 %v1136
        %v2167 = vpop.f32.mrb[0].mxu0
        %v2168 = vadd.f32 %v2007, %v2167
        %v2169 = vpop.f32.mrb[0].mxu0
        %v2170 = vpop.f32.mrb[0].mxu0
        %v2171 = vadd.f32 %v2010, %v2170
        %v2172 = vpop.f32.mrb[0].mxu0
        %2173 = vmatprep.mubr.bf16.mxu0 0
        %2174 = vmatmul.mubr.bf16.gmra.mrb[0].mxu0 %v1139
        %v2175 = vpop.f32.mrb[0].mxu0
        %v2176 = vadd.f32 %v2015, %v2175
        %v2177 = vpop.f32.mrb[0].mxu0
        %v2178 = vpop.f32.mrb[0].mxu0
        %v2179 = vadd.f32 %v2018, %v2178
        %v2180 = vpop.f32.mrb[0].mxu0
        %2181 = vmatprep.mubr.bf16.mxu0 0
        %2182 = vmatmul.mubr.bf16.gmra.mrb[0].mxu0 %v1142
        %v2183 = vpop.f32.mrb[0].mxu0
        %v2184 = vadd.f32 %v2023, %v2183
        %v2185 = vpop.f32.mrb[0].mxu0
        %v2186 = vpop.f32.mrb[0].mxu0
        %v2187 = vadd.f32 %v2026, %v2186
        %v2188 = vpop.f32.mrb[0].mxu0
        %2189 = vmatprep.mubr.bf16.mxu0 0
        %2190 = vmatmul.mubr.bf16.gmra.mrb[0].mxu0 %v1145
        %v2191 = vpop.f32.mrb[0].mxu0
        %v2192 = vadd.f32 %v2031, %v2191
        %v2193 = vpop.f32.mrb[0].mxu0
        %v2194 = vpop.f32.mrb[0].mxu0
        %v2195 = vadd.f32 %v2034, %v2194
        %v2196 = vpop.f32.mrb[0].mxu0
        %2197 = vmatprep.mubr.bf16.mxu0 0
        %2198 = vmatmul.mubr.bf16.gmra.mrb[0].mxu0 %v1148
        %v2199 = vpop.f32.mrb[0].mxu0
        %v2200 = vadd.f32 %v2039, %v2199
        %v2201 = vpop.f32.mrb[0].mxu0
        %v2202 = vpop.f32.mrb[0].mxu0
        %v2203 = vadd.f32 %v2042, %v2202
        %v2204 = vpop.f32.mrb[0].mxu0
        %2205 = vmatprep.mubr.bf16.mxu0 0
        %2206 = vmatmul.mubr.bf16.gmra.mrb[0].mxu0 %v1151
        %v2207 = vpop.f32.mrb[0].mxu0
        %v2208 = vadd.f32 %v2047, %v2207
        %v2209 = vpop.f32.mrb[0].mxu0
        %v2210 = vpop.f32.mrb[0].mxu0
        %v2211 = vadd.f32 %v2050, %v2210
        %v2212 = vpop.f32.mrb[0].mxu0
        %2213 = vmatprep.mubr.bf16.mxu0 0
        %2214 = vmatmul.mubr.bf16.gmra.mrb[0].mxu0 %v1154
        %v2215 = vpop.f32.mrb[0].mxu0
        %v2216 = vadd.f32 %v2055, %v2215
        %v2217 = vpop.f32.mrb[0].mxu0
        %v2218 = vpop.f32.mrb[0].mxu0
        %v2219 = vadd.f32 %v2058, %v2218
        %v2220 = vpop.f32.mrb[0].mxu0
        %2221 = vmatprep.mubr.bf16.mxu0 0
        %2222 = vmatmul.mubr.bf16.gmra.mrb[0].mxu0 %v1157
        %v2223 = vpop.f32.mrb[0].mxu0
        %v2224 = vadd.f32 %v2063, %v2223
        %v2225 = vpop.f32.mrb[0].mxu0
        %v2226 = vpop.f32.mrb[0].mxu0
        %v2227 = vadd.f32 %v2066, %v2226
        %v2228 = vpop.f32.mrb[0].mxu0
        %2229 = vmatprep.mubr.bf16.mxu0 0
        %2230 = vmatmul.mubr.bf16.gmra.mrb[0].mxu0 %v1160
        %v2231 = vpop.f32.mrb[0].mxu0
        %v2232 = vadd.f32 %v2071, %v2231
        %v2233 = vpop.f32.mrb[0].mxu0
        %v2234 = vpop.f32.mrb[0].mxu0
        %v2235 = vadd.f32 %v2074, %v2234
        %v2236 = vpop.f32.mrb[0].mxu0
        %2237 = vdwg.mxu0
        %s2238 = scalar_lea.vmem [#allocation2], 48
        %v2239 = vld [vmem:[%s2238] sm:$0xff]
        %v2240 = vld [vmem:[%s2238 + $0x8] sm:$0xff]
        %v2241 = vld [vmem:[%s2238 + $0x10] sm:$0xff]
        %v2242 = vld [vmem:[%s2238 + $0x18] sm:$0xff]
        %v2243 = vld [vmem:[%s2238 + $0x20] sm:$0xff]
        %v2244 = vld [vmem:[%s2238 + $0x28] sm:$0xff]
        %v2245 = vld [vmem:[%s2238 + $0x30] sm:$0xff]
        %v2246 = vld [vmem:[%s2238 + $0x38] sm:$0xff]
        %v2247 = vld [vmem:[%s2238 + $0x40] sm:$0xff]
        %v2248 = vld [vmem:[%s2238 + $0x48] sm:$0xff]
        %v2249 = vld [vmem:[%s2238 + $0x50] sm:$0xff]
        %v2250 = vld [vmem:[%s2238 + $0x58] sm:$0xff]
        %v2251 = vld [vmem:[%s2238 + $0x60] sm:$0xff]
        %v2252 = vld [vmem:[%s2238 + $0x68] sm:$0xff]
        %v2253 = vld [vmem:[%s2238 + $0x70] sm:$0xff]
        %v2254 = vld [vmem:[%s2238 + $0x78] sm:$0xff]
        %v2255 = vld [vmem:[%s2238 + $0x80] sm:$0xff]
        %v2256 = vld [vmem:[%s2238 + $0x88] sm:$0xff]
        %v2257 = vld [vmem:[%s2238 + $0x90] sm:$0xff]
        %v2258 = vld [vmem:[%s2238 + $0x98] sm:$0xff]
        %v2259 = vld [vmem:[%s2238 + $0xa0] sm:$0xff]
        %v2260 = vld [vmem:[%s2238 + $0xa8] sm:$0xff]
        %v2261 = vld [vmem:[%s2238 + $0xb0] sm:$0xff]
        %v2262 = vld [vmem:[%s2238 + $0xb8] sm:$0xff]
        %v2263 = vld [vmem:[%s2238 + $0xc0] sm:$0xff]
        %v2264 = vld [vmem:[%s2238 + $0xc8] sm:$0xff]
        %v2265 = vld [vmem:[%s2238 + $0xd0] sm:$0xff]
        %v2266 = vld [vmem:[%s2238 + $0xd8] sm:$0xff]
        %v2267 = vld [vmem:[%s2238 + $0xe0] sm:$0xff]
        %v2268 = vld [vmem:[%s2238 + $0xe8] sm:$0xff]
        %v2269 = vld [vmem:[%s2238 + $0xf0] sm:$0xff]
        %v2270 = vld [vmem:[%s2238 + $0xf8] sm:$0xff]
        %v2271 = vld [vmem:[%s2238 + $0x100] sm:$0xff]
        %v2272 = vld [vmem:[%s2238 + $0x108] sm:$0xff]
        %v2273 = vld [vmem:[%s2238 + $0x110] sm:$0xff]
        %v2274 = vld [vmem:[%s2238 + $0x118] sm:$0xff]
        %v2275 = vld [vmem:[%s2238 + $0x120] sm:$0xff]
        %v2276 = vld [vmem:[%s2238 + $0x128] sm:$0xff]
        %v2277 = vld [vmem:[%s2238 + $0x130] sm:$0xff]
        %v2278 = vld [vmem:[%s2238 + $0x138] sm:$0xff]
        %v2279 = vld [vmem:[%s2238 + $0x140] sm:$0xff]
        %v2280 = vld [vmem:[%s2238 + $0x148] sm:$0xff]
        %v2281 = vld [vmem:[%s2238 + $0x150] sm:$0xff]
        %v2282 = vld [vmem:[%s2238 + $0x158] sm:$0xff]
        %v2283 = vld [vmem:[%s2238 + $0x160] sm:$0xff]
        %v2284 = vld [vmem:[%s2238 + $0x168] sm:$0xff]
        %v2285 = vld [vmem:[%s2238 + $0x170] sm:$0xff]
        %v2286 = vld [vmem:[%s2238 + $0x178] sm:$0xff]
        %s2287 = scalar_lea.vmem [#allocation8], 384
        %v2288 = vld [vmem:[%s2287] sm:$0xf]
        %v2289 = vld [vmem:[%s2287 + $0x4] sm:$0xf]
        %v2290 = vld [vmem:[%s2287 + $0x8] sm:$0xf]
        %v2291 = vld [vmem:[%s2287 + $0xc] sm:$0xf]
        %v2292 = vld [vmem:[%s2287 + $0x10] sm:$0xf]
        %v2293 = vld [vmem:[%s2287 + $0x14] sm:$0xf]
        %v2294 = vld [vmem:[%s2287 + $0x18] sm:$0xf]
        %v2295 = vld [vmem:[%s2287 + $0x1c] sm:$0xf]
        %v2296 = vld [vmem:[%s2287 + $0x20] sm:$0xf]
        %v2297 = vld [vmem:[%s2287 + $0x24] sm:$0xf]
        %v2298 = vld [vmem:[%s2287 + $0x28] sm:$0xf]
        %v2299 = vld [vmem:[%s2287 + $0x2c] sm:$0xf]
        %v2300 = vld [vmem:[%s2287 + $0x30] sm:$0xf]
        %v2301 = vld [vmem:[%s2287 + $0x34] sm:$0xf]
        %v2302 = vld [vmem:[%s2287 + $0x38] sm:$0xf]
        %v2303 = vld [vmem:[%s2287 + $0x3c] sm:$0xf]
        %v2304 = vld [vmem:[%s2287 + $0x40] sm:$0xf]
        %v2305 = vld [vmem:[%s2287 + $0x44] sm:$0xf]
        %v2306 = vld [vmem:[%s2287 + $0x48] sm:$0xf]
        %v2307 = vld [vmem:[%s2287 + $0x4c] sm:$0xf]
        %v2308 = vld [vmem:[%s2287 + $0x50] sm:$0xf]
        %v2309 = vld [vmem:[%s2287 + $0x54] sm:$0xf]
        %v2310 = vld [vmem:[%s2287 + $0x58] sm:$0xf]
        %v2311 = vld [vmem:[%s2287 + $0x5c] sm:$0xf]
        %v2312 = vld [vmem:[%s2287 + $0x60] sm:$0xf]
        %v2313 = vld [vmem:[%s2287 + $0x64] sm:$0xf]
        %v2314 = vld [vmem:[%s2287 + $0x68] sm:$0xf]
        %v2315 = vld [vmem:[%s2287 + $0x6c] sm:$0xf]
        %v2316 = vld [vmem:[%s2287 + $0x70] sm:$0xf]
        %v2317 = vld [vmem:[%s2287 + $0x74] sm:$0xf]
        %v2318 = vld [vmem:[%s2287 + $0x78] sm:$0xf]
        %v2319 = vld [vmem:[%s2287 + $0x7c] sm:$0xf]
        %v2320 = vld [vmem:[%s2287 + $0x80] sm:$0xf]
        %v2321 = vld [vmem:[%s2287 + $0x84] sm:$0xf]
        %v2322 = vld [vmem:[%s2287 + $0x88] sm:$0xf]
        %v2323 = vld [vmem:[%s2287 + $0x8c] sm:$0xf]
        %v2324 = vld [vmem:[%s2287 + $0x90] sm:$0xf]
        %v2325 = vld [vmem:[%s2287 + $0x94] sm:$0xf]
        %v2326 = vld [vmem:[%s2287 + $0x98] sm:$0xf]
        %v2327 = vld [vmem:[%s2287 + $0x9c] sm:$0xf]
        %v2328 = vld [vmem:[%s2287 + $0xa0] sm:$0xf]
        %v2329 = vld [vmem:[%s2287 + $0xa4] sm:$0xf]
        %v2330 = vld [vmem:[%s2287 + $0xa8] sm:$0xf]
        %v2331 = vld [vmem:[%s2287 + $0xac] sm:$0xf]
        %v2332 = vld [vmem:[%s2287 + $0xb0] sm:$0xf]
        %v2333 = vld [vmem:[%s2287 + $0xb4] sm:$0xf]
        %v2334 = vld [vmem:[%s2287 + $0xb8] sm:$0xf]
        %v2335 = vld [vmem:[%s2287 + $0xbc] sm:$0xf]
        %v2384 = vunpack.c.l.b16 %v2288
        %v2385 = vunpack.c.l.b16 %v2289
        %v2386 = vunpack.c.l.b16 %v2290
        %v2387 = vunpack.c.l.b16 %v2291
        %v2388 = vunpack.c.l.b16 %v2292
        %v2389 = vunpack.c.l.b16 %v2293
        %v2390 = vunpack.c.l.b16 %v2294
        %v2391 = vunpack.c.l.b16 %v2295
        %v2392 = vunpack.c.l.b16 %v2296
        %v2393 = vunpack.c.l.b16 %v2297
        %v2394 = vunpack.c.l.b16 %v2298
        %v2395 = vunpack.c.l.b16 %v2299
        %v2396 = vunpack.c.l.b16 %v2300
        %v2397 = vunpack.c.l.b16 %v2301
        %v2398 = vunpack.c.l.b16 %v2302
        %v2399 = vunpack.c.l.b16 %v2303
        %v2400 = vunpack.c.l.b16 %v2304
        %v2401 = vunpack.c.l.b16 %v2305
        %v2402 = vunpack.c.l.b16 %v2306
        %v2403 = vunpack.c.l.b16 %v2307
        %v2404 = vunpack.c.l.b16 %v2308
        %v2405 = vunpack.c.l.b16 %v2309
        %v2406 = vunpack.c.l.b16 %v2310
        %v2407 = vunpack.c.l.b16 %v2311
        %v2408 = vunpack.c.l.b16 %v2312
        %v2409 = vunpack.c.l.b16 %v2313
        %v2410 = vunpack.c.l.b16 %v2314
        %v2411 = vunpack.c.l.b16 %v2315
        %v2412 = vunpack.c.l.b16 %v2316
        %v2413 = vunpack.c.l.b16 %v2317
        %v2414 = vunpack.c.l.b16 %v2318
        %v2415 = vunpack.c.l.b16 %v2319
        %v2416 = vunpack.c.l.b16 %v2320
        %v2417 = vunpack.c.l.b16 %v2321
        %v2418 = vunpack.c.l.b16 %v2322
        %v2419 = vunpack.c.l.b16 %v2323
        %v2420 = vunpack.c.l.b16 %v2324
        %v2421 = vunpack.c.l.b16 %v2325
        %v2422 = vunpack.c.l.b16 %v2326
        %v2423 = vunpack.c.l.b16 %v2327
        %v2424 = vunpack.c.l.b16 %v2328
        %v2425 = vunpack.c.l.b16 %v2329
        %v2426 = vunpack.c.l.b16 %v2330
        %v2427 = vunpack.c.l.b16 %v2331
        %v2428 = vunpack.c.l.b16 %v2332
        %v2429 = vunpack.c.l.b16 %v2333
        %v2430 = vunpack.c.l.b16 %v2334
        %v2431 = vunpack.c.l.b16 %v2335
        %v2432 = vpack.c.b16 %v2385, %v2384
        %v2433 = vpack.c.b16 %v2387, %v2386
        %v2434 = vpack.c.b16 %v2389, %v2388
        %v2435 = vpack.c.b16 %v2391, %v2390
        %v2436 = vpack.c.b16 %v2393, %v2392
        %v2437 = vpack.c.b16 %v2395, %v2394
        %v2438 = vpack.c.b16 %v2397, %v2396
        %v2439 = vpack.c.b16 %v2399, %v2398
        %v2440 = vpack.c.b16 %v2401, %v2400
        %v2441 = vpack.c.b16 %v2403, %v2402
        %v2442 = vpack.c.b16 %v2405, %v2404
        %v2443 = vpack.c.b16 %v2407, %v2406
        %v2444 = vpack.c.b16 %v2409, %v2408
        %v2445 = vpack.c.b16 %v2411, %v2410
        %v2446 = vpack.c.b16 %v2413, %v2412
        %v2447 = vpack.c.b16 %v2415, %v2414
        %v2448 = vpack.c.b16 %v2417, %v2416
        %v2449 = vpack.c.b16 %v2419, %v2418
        %v2450 = vpack.c.b16 %v2421, %v2420
        %v2451 = vpack.c.b16 %v2423, %v2422
        %v2452 = vpack.c.b16 %v2425, %v2424
        %v2453 = vpack.c.b16 %v2427, %v2426
        %v2454 = vpack.c.b16 %v2429, %v2428
        %v2455 = vpack.c.b16 %v2431, %v2430
        %2480 = vmatprep.subr.bf16.mxu0 0
        %2481 = vmatpush1.bf16.msra.mxu0 %v2432
        %2482 = vmatprep.subr.bf16.mxu0 0
        %2483 = vmatpush1.bf16.msra.mxu0 %v2433
        %2484 = vmatprep.subr.bf16.mxu0 0
        %2485 = vmatpush1.bf16.msra.mxu0 %v2434
        %2486 = vmatprep.subr.bf16.mxu0 0
        %2487 = vmatpush1.bf16.msra.mxu0 %v2435
        %2488 = vmatprep.subr.bf16.mxu0 0
        %2489 = vmatpush1.bf16.msra.mxu0 %v2436
        %2490 = vmatprep.subr.bf16.mxu0 0
        %2491 = vmatpush1.bf16.msra.mxu0 %v2437
        %2492 = vmatprep.subr.bf16.mxu0 0
        %2493 = vmatpush1.bf16.msra.mxu0 %v2438
        %2494 = vmatprep.subr.bf16.mxu0 0
        %2495 = vmatpush1.bf16.msra.mxu0 %v2439
        %2496 = vmatprep.subr.bf16.mxu0 0
        %2497 = vmatpush1.bf16.msra.mxu0 %v2440
        %2498 = vmatprep.subr.bf16.mxu0 0
        %2499 = vmatpush1.bf16.msra.mxu0 %v2441
        %2500 = vmatprep.subr.bf16.mxu0 0
        %2501 = vmatpush1.bf16.msra.mxu0 %v2442
        %2502 = vmatprep.subr.bf16.mxu0 0
        %2503 = vmatpush1.bf16.msra.mxu0 %v2443
        %2504 = vmatprep.subr.bf16.mxu0 0
        %2505 = vmatpush1.bf16.msra.mxu0 %v2444
        %2506 = vmatprep.subr.bf16.mxu0 0
        %2507 = vmatpush1.bf16.msra.mxu0 %v2445
        %2508 = vmatprep.subr.bf16.mxu0 0
        %2509 = vmatpush1.bf16.msra.mxu0 %v2446
        %2510 = vmatprep.subr.bf16.mxu0 0
        %2511 = vmatpush1.bf16.msra.mxu0 %v2447
        %2512 = vmatprep.mubr.bf16.mxu0 %v2240
        %2513 = vmatmul.mubr.bf16.gmra.mrb[0].mxu0 %v2239
        %v2514 = vpop.f32.mrb[0].mxu0
        %v2515 = vadd.f32 0.0, %v2514
        %v2516 = vpop.f32.mrb[0].mxu0
        %v2517 = vpop.f32.mrb[0].mxu0
        %v2518 = vadd.f32 0.0, %v2517
        %v2519 = vpop.f32.mrb[0].mxu0
        %2520 = vmatprep.mubr.bf16.mxu0 %v2243
        %2521 = vmatmul.mubr.bf16.gmra.mrb[0].mxu0 %v2242
        %v2522 = vpop.f32.mrb[0].mxu0
        %v2523 = vadd.f32 0.0, %v2522
        %v2524 = vpop.f32.mrb[0].mxu0
        %v2525 = vpop.f32.mrb[0].mxu0
        %v2526 = vadd.f32 0.0, %v2525
        %v2527 = vpop.f32.mrb[0].mxu0
        %2528 = vmatprep.mubr.bf16.mxu0 %v2246
        %2529 = vmatmul.mubr.bf16.gmra.mrb[0].mxu0 %v2245
        %v2530 = vpop.f32.mrb[0].mxu0
        %v2531 = vadd.f32 0.0, %v2530
        %v2532 = vpop.f32.mrb[0].mxu0
        %v2533 = vpop.f32.mrb[0].mxu0
        %v2534 = vadd.f32 0.0, %v2533
        %v2535 = vpop.f32.mrb[0].mxu0
        %2536 = vmatprep.mubr.bf16.mxu0 %v2249
        %2537 = vmatmul.mubr.bf16.gmra.mrb[0].mxu0 %v2248
        %v2538 = vpop.f32.mrb[0].mxu0
        %v2539 = vadd.f32 0.0, %v2538
        %v2540 = vpop.f32.mrb[0].mxu0
        %v2541 = vpop.f32.mrb[0].mxu0
        %v2542 = vadd.f32 0.0, %v2541
        %v2543 = vpop.f32.mrb[0].mxu0
        %2544 = vmatprep.mubr.bf16.mxu0 %v2252
        %2545 = vmatmul.mubr.bf16.gmra.mrb[0].mxu0 %v2251
        %v2546 = vpop.f32.mrb[0].mxu0
        %v2547 = vadd.f32 0.0, %v2546
        %v2548 = vpop.f32.mrb[0].mxu0
        %v2549 = vpop.f32.mrb[0].mxu0
        %v2550 = vadd.f32 0.0, %v2549
        %v2551 = vpop.f32.mrb[0].mxu0
        %2552 = vmatprep.mubr.bf16.mxu0 %v2255
        %2553 = vmatmul.mubr.bf16.gmra.mrb[0].mxu0 %v2254
        %v2554 = vpop.f32.mrb[0].mxu0
        %v2555 = vadd.f32 0.0, %v2554
        %v2556 = vpop.f32.mrb[0].mxu0
        %v2557 = vpop.f32.mrb[0].mxu0
        %v2558 = vadd.f32 0.0, %v2557
        %v2559 = vpop.f32.mrb[0].mxu0
        %2560 = vmatprep.mubr.bf16.mxu0 %v2258
        %2561 = vmatmul.mubr.bf16.gmra.mrb[0].mxu0 %v2257
        %v2562 = vpop.f32.mrb[0].mxu0
        %v2563 = vadd.f32 0.0, %v2562
        %v2564 = vpop.f32.mrb[0].mxu0
        %v2565 = vpop.f32.mrb[0].mxu0
        %v2566 = vadd.f32 0.0, %v2565
        %v2567 = vpop.f32.mrb[0].mxu0
        %2568 = vmatprep.mubr.bf16.mxu0 %v2261
        %2569 = vmatmul.mubr.bf16.gmra.mrb[0].mxu0 %v2260
        %v2570 = vpop.f32.mrb[0].mxu0
        %v2571 = vadd.f32 0.0, %v2570
        %v2572 = vpop.f32.mrb[0].mxu0
        %v2573 = vpop.f32.mrb[0].mxu0
        %v2574 = vadd.f32 0.0, %v2573
        %v2575 = vpop.f32.mrb[0].mxu0
        %2576 = vmatprep.mubr.bf16.mxu0 %v2264
        %2577 = vmatmul.mubr.bf16.gmra.mrb[0].mxu0 %v2263
        %v2578 = vpop.f32.mrb[0].mxu0
        %v2579 = vadd.f32 0.0, %v2578
        %v2580 = vpop.f32.mrb[0].mxu0
        %v2581 = vpop.f32.mrb[0].mxu0
        %v2582 = vadd.f32 0.0, %v2581
        %v2583 = vpop.f32.mrb[0].mxu0
        %2584 = vmatprep.mubr.bf16.mxu0 %v2267
        %2585 = vmatmul.mubr.bf16.gmra.mrb[0].mxu0 %v2266
        %v2586 = vpop.f32.mrb[0].mxu0
        %v2587 = vadd.f32 0.0, %v2586
        %v2588 = vpop.f32.mrb[0].mxu0
        %v2589 = vpop.f32.mrb[0].mxu0
        %v2590 = vadd.f32 0.0, %v2589
        %v2591 = vpop.f32.mrb[0].mxu0
        %2592 = vmatprep.mubr.bf16.mxu0 %v2270
        %2593 = vmatmul.mubr.bf16.gmra.mrb[0].mxu0 %v2269
        %v2594 = vpop.f32.mrb[0].mxu0
        %v2595 = vadd.f32 0.0, %v2594
        %v2596 = vpop.f32.mrb[0].mxu0
        %v2597 = vpop.f32.mrb[0].mxu0
        %v2598 = vadd.f32 0.0, %v2597
        %v2599 = vpop.f32.mrb[0].mxu0
        %2600 = vmatprep.mubr.bf16.mxu0 %v2273
        %2601 = vmatmul.mubr.bf16.gmra.mrb[0].mxu0 %v2272
        %v2602 = vpop.f32.mrb[0].mxu0
        %v2603 = vadd.f32 0.0, %v2602
        %v2604 = vpop.f32.mrb[0].mxu0
        %v2605 = vpop.f32.mrb[0].mxu0
        %v2606 = vadd.f32 0.0, %v2605
        %v2607 = vpop.f32.mrb[0].mxu0
        %2608 = vmatprep.mubr.bf16.mxu0 %v2276
        %2609 = vmatmul.mubr.bf16.gmra.mrb[0].mxu0 %v2275
        %v2610 = vpop.f32.mrb[0].mxu0
        %v2611 = vadd.f32 0.0, %v2610
        %v2612 = vpop.f32.mrb[0].mxu0
        %v2613 = vpop.f32.mrb[0].mxu0
        %v2614 = vadd.f32 0.0, %v2613
        %v2615 = vpop.f32.mrb[0].mxu0
        %2616 = vmatprep.mubr.bf16.mxu0 %v2279
        %2617 = vmatmul.mubr.bf16.gmra.mrb[0].mxu0 %v2278
        %v2618 = vpop.f32.mrb[0].mxu0
        %v2619 = vadd.f32 0.0, %v2618
        %v2620 = vpop.f32.mrb[0].mxu0
        %v2621 = vpop.f32.mrb[0].mxu0
        %v2622 = vadd.f32 0.0, %v2621
        %v2623 = vpop.f32.mrb[0].mxu0
        %2624 = vmatprep.mubr.bf16.mxu0 %v2282
        %2625 = vmatmul.mubr.bf16.gmra.mrb[0].mxu0 %v2281
        %v2626 = vpop.f32.mrb[0].mxu0
        %v2627 = vadd.f32 0.0, %v2626
        %v2628 = vpop.f32.mrb[0].mxu0
        %v2629 = vpop.f32.mrb[0].mxu0
        %v2630 = vadd.f32 0.0, %v2629
        %v2631 = vpop.f32.mrb[0].mxu0
        %2632 = vmatprep.mubr.bf16.mxu0 %v2285
        %2633 = vmatmul.mubr.bf16.gmra.mrb[0].mxu0 %v2284
        %v2634 = vpop.f32.mrb[0].mxu0
        %v2635 = vadd.f32 0.0, %v2634
        %v2636 = vpop.f32.mrb[0].mxu0
        %v2637 = vpop.f32.mrb[0].mxu0
        %v2638 = vadd.f32 0.0, %v2637
        %v2639 = vpop.f32.mrb[0].mxu0
        %2640 = vdwg.mxu0
        %2641 = vmatprep.subr.bf16.mxu0 0
        %2642 = vmatpush1.bf16.msra.mxu0 %v2448
        %2643 = vmatprep.subr.bf16.mxu0 0
        %2644 = vmatpush1.bf16.msra.mxu0 %v2449
        %2645 = vmatprep.subr.bf16.mxu0 0
        %2646 = vmatpush1.bf16.msra.mxu0 %v2450
        %2647 = vmatprep.subr.bf16.mxu0 0
        %2648 = vmatpush1.bf16.msra.mxu0 %v2451
        %2649 = vmatprep.subr.bf16.mxu0 0
        %2650 = vmatpush1.bf16.msra.mxu0 %v2452
        %2651 = vmatprep.subr.bf16.mxu0 0
        %2652 = vmatpush1.bf16.msra.mxu0 %v2453
        %2653 = vmatprep.subr.bf16.mxu0 0
        %2654 = vmatpush1.bf16.msra.mxu0 %v2454
        %2655 = vmatprep.subr.bf16.mxu0 0
        %2656 = vmatpush1.bf16.msra.mxu0 %v2455
        %2657 = vmatprep.subr.bf16.mxu0 0
        %2658 = vmatpush1.bf16.msra.mxu0 0
        %2659 = vmatprep.subr.bf16.mxu0 0
        %2660 = vmatpush1.bf16.msra.mxu0 0
        %2661 = vmatprep.subr.bf16.mxu0 0
        %2662 = vmatpush1.bf16.msra.mxu0 0
        %2663 = vmatprep.subr.bf16.mxu0 0
        %2664 = vmatpush1.bf16.msra.mxu0 0
        %2665 = vmatprep.subr.bf16.mxu0 0
        %2666 = vmatpush1.bf16.msra.mxu0 0
        %2667 = vmatprep.subr.bf16.mxu0 0
        %2668 = vmatpush1.bf16.msra.mxu0 0
        %2669 = vmatprep.subr.bf16.mxu0 0
        %2670 = vmatpush1.bf16.msra.mxu0 0
        %2671 = vmatprep.subr.bf16.mxu0 0
        %2672 = vmatpush1.bf16.msra.mxu0 0
        %2673 = vmatprep.mubr.bf16.mxu0 0
        %2674 = vmatmul.mubr.bf16.gmra.mrb[0].mxu0 %v2241
        %v2675 = vpop.f32.mrb[0].mxu0
        %v2676 = vadd.f32 %v2515, %v2675
        %v2677 = vpop.f32.mrb[0].mxu0
        %v2678 = vpop.f32.mrb[0].mxu0
        %v2679 = vadd.f32 %v2518, %v2678
        %v2680 = vpop.f32.mrb[0].mxu0
        %2681 = vmatprep.mubr.bf16.mxu0 0
        %2682 = vmatmul.mubr.bf16.gmra.mrb[0].mxu0 %v2244
        %v2683 = vpop.f32.mrb[0].mxu0
        %v2684 = vadd.f32 %v2523, %v2683
        %v2685 = vpop.f32.mrb[0].mxu0
        %v2686 = vpop.f32.mrb[0].mxu0
        %v2687 = vadd.f32 %v2526, %v2686
        %v2688 = vpop.f32.mrb[0].mxu0
        %2689 = vmatprep.mubr.bf16.mxu0 0
        %2690 = vmatmul.mubr.bf16.gmra.mrb[0].mxu0 %v2247
        %v2691 = vpop.f32.mrb[0].mxu0
        %v2692 = vadd.f32 %v2531, %v2691
        %v2693 = vpop.f32.mrb[0].mxu0
        %v2694 = vpop.f32.mrb[0].mxu0
        %v2695 = vadd.f32 %v2534, %v2694
        %v2696 = vpop.f32.mrb[0].mxu0
        %2697 = vmatprep.mubr.bf16.mxu0 0
        %2698 = vmatmul.mubr.bf16.gmra.mrb[0].mxu0 %v2250
        %v2699 = vpop.f32.mrb[0].mxu0
        %v2700 = vadd.f32 %v2539, %v2699
        %v2701 = vpop.f32.mrb[0].mxu0
        %v2702 = vpop.f32.mrb[0].mxu0
        %v2703 = vadd.f32 %v2542, %v2702
        %v2704 = vpop.f32.mrb[0].mxu0
        %2705 = vmatprep.mubr.bf16.mxu0 0
        %2706 = vmatmul.mubr.bf16.gmra.mrb[0].mxu0 %v2253
        %v2707 = vpop.f32.mrb[0].mxu0
        %v2708 = vadd.f32 %v2547, %v2707
        %v2709 = vpop.f32.mrb[0].mxu0
        %v2710 = vpop.f32.mrb[0].mxu0
        %v2711 = vadd.f32 %v2550, %v2710
        %v2712 = vpop.f32.mrb[0].mxu0
        %2713 = vmatprep.mubr.bf16.mxu0 0
        %2714 = vmatmul.mubr.bf16.gmra.mrb[0].mxu0 %v2256
        %v2715 = vpop.f32.mrb[0].mxu0
        %v2716 = vadd.f32 %v2555, %v2715
        %v2717 = vpop.f32.mrb[0].mxu0
        %v2718 = vpop.f32.mrb[0].mxu0
        %v2719 = vadd.f32 %v2558, %v2718
        %v2720 = vpop.f32.mrb[0].mxu0
        %2721 = vmatprep.mubr.bf16.mxu0 0
        %2722 = vmatmul.mubr.bf16.gmra.mrb[0].mxu0 %v2259
        %v2723 = vpop.f32.mrb[0].mxu0
        %v2724 = vadd.f32 %v2563, %v2723
        %v2725 = vpop.f32.mrb[0].mxu0
        %v2726 = vpop.f32.mrb[0].mxu0
        %v2727 = vadd.f32 %v2566, %v2726
        %v2728 = vpop.f32.mrb[0].mxu0
        %2729 = vmatprep.mubr.bf16.mxu0 0
        %2730 = vmatmul.mubr.bf16.gmra.mrb[0].mxu0 %v2262
        %v2731 = vpop.f32.mrb[0].mxu0
        %v2732 = vadd.f32 %v2571, %v2731
        %v2733 = vpop.f32.mrb[0].mxu0
        %v2734 = vpop.f32.mrb[0].mxu0
        %v2735 = vadd.f32 %v2574, %v2734
        %v2736 = vpop.f32.mrb[0].mxu0
        %2737 = vmatprep.mubr.bf16.mxu0 0
        %2738 = vmatmul.mubr.bf16.gmra.mrb[0].mxu0 %v2265
        %v2739 = vpop.f32.mrb[0].mxu0
        %v2740 = vadd.f32 %v2579, %v2739
        %v2741 = vpop.f32.mrb[0].mxu0
        %v2742 = vpop.f32.mrb[0].mxu0
        %v2743 = vadd.f32 %v2582, %v2742
        %v2744 = vpop.f32.mrb[0].mxu0
        %2745 = vmatprep.mubr.bf16.mxu0 0
        %2746 = vmatmul.mubr.bf16.gmra.mrb[0].mxu0 %v2268
        %v2747 = vpop.f32.mrb[0].mxu0
        %v2748 = vadd.f32 %v2587, %v2747
        %v2749 = vpop.f32.mrb[0].mxu0
        %v2750 = vpop.f32.mrb[0].mxu0
        %v2751 = vadd.f32 %v2590, %v2750
        %v2752 = vpop.f32.mrb[0].mxu0
        %2753 = vmatprep.mubr.bf16.mxu0 0
        %2754 = vmatmul.mubr.bf16.gmra.mrb[0].mxu0 %v2271
        %v2755 = vpop.f32.mrb[0].mxu0
        %v2756 = vadd.f32 %v2595, %v2755
        %v2757 = vpop.f32.mrb[0].mxu0
        %v2758 = vpop.f32.mrb[0].mxu0
        %v2759 = vadd.f32 %v2598, %v2758
        %v2760 = vpop.f32.mrb[0].mxu0
        %2761 = vmatprep.mubr.bf16.mxu0 0
        %2762 = vmatmul.mubr.bf16.gmra.mrb[0].mxu0 %v2274
        %v2763 = vpop.f32.mrb[0].mxu0
        %v2764 = vadd.f32 %v2603, %v2763
        %v2765 = vpop.f32.mrb[0].mxu0
        %v2766 = vpop.f32.mrb[0].mxu0
        %v2767 = vadd.f32 %v2606, %v2766
        %v2768 = vpop.f32.mrb[0].mxu0
        %2769 = vmatprep.mubr.bf16.mxu0 0
        %2770 = vmatmul.mubr.bf16.gmra.mrb[0].mxu0 %v2277
        %v2771 = vpop.f32.mrb[0].mxu0
        %v2772 = vadd.f32 %v2611, %v2771
        %v2773 = vpop.f32.mrb[0].mxu0
        %v2774 = vpop.f32.mrb[0].mxu0
        %v2775 = vadd.f32 %v2614, %v2774
        %v2776 = vpop.f32.mrb[0].mxu0
        %2777 = vmatprep.mubr.bf16.mxu0 0
        %2778 = vmatmul.mubr.bf16.gmra.mrb[0].mxu0 %v2280
        %v2779 = vpop.f32.mrb[0].mxu0
        %v2780 = vadd.f32 %v2619, %v2779
        %v2781 = vpop.f32.mrb[0].mxu0
        %v2782 = vpop.f32.mrb[0].mxu0
        %v2783 = vadd.f32 %v2622, %v2782
        %v2784 = vpop.f32.mrb[0].mxu0
        %2785 = vmatprep.mubr.bf16.mxu0 0
        %2786 = vmatmul.mubr.bf16.gmra.mrb[0].mxu0 %v2283
        %v2787 = vpop.f32.mrb[0].mxu0
        %v2788 = vadd.f32 %v2627, %v2787
        %v2789 = vpop.f32.mrb[0].mxu0
        %v2790 = vpop.f32.mrb[0].mxu0
        %v2791 = vadd.f32 %v2630, %v2790
        %v2792 = vpop.f32.mrb[0].mxu0
        %2793 = vmatprep.mubr.bf16.mxu0 0
        %2794 = vmatmul.mubr.bf16.gmra.mrb[0].mxu0 %v2286
        %v2795 = vpop.f32.mrb[0].mxu0
        %v2796 = vadd.f32 %v2635, %v2795
        %v2797 = vpop.f32.mrb[0].mxu0
        %v2798 = vpop.f32.mrb[0].mxu0
        %v2799 = vadd.f32 %v2638, %v2798
        %v2800 = vpop.f32.mrb[0].mxu0
        %2801 = vdwg.mxu0
        %v2802 = vadd.f32 %v2112, %v2676
        %v2803 = vadd.f32 %v2115, %v2679
        %v2804 = vadd.f32 %v2120, %v2684
        %v2805 = vadd.f32 %v2123, %v2687
        %v2806 = vadd.f32 %v2128, %v2692
        %v2807 = vadd.f32 %v2131, %v2695
        %v2808 = vadd.f32 %v2136, %v2700
        %v2809 = vadd.f32 %v2139, %v2703
        %v2810 = vadd.f32 %v2144, %v2708
        %v2811 = vadd.f32 %v2147, %v2711
        %v2812 = vadd.f32 %v2152, %v2716
        %v2813 = vadd.f32 %v2155, %v2719
        %v2814 = vadd.f32 %v2160, %v2724
        %v2815 = vadd.f32 %v2163, %v2727
        %v2816 = vadd.f32 %v2168, %v2732
        %v2817 = vadd.f32 %v2171, %v2735
        %v2818 = vadd.f32 %v2176, %v2740
        %v2819 = vadd.f32 %v2179, %v2743
        %v2820 = vadd.f32 %v2184, %v2748
        %v2821 = vadd.f32 %v2187, %v2751
        %v2822 = vadd.f32 %v2192, %v2756
        %v2823 = vadd.f32 %v2195, %v2759
        %v2824 = vadd.f32 %v2200, %v2764
        %v2825 = vadd.f32 %v2203, %v2767
        %v2826 = vadd.f32 %v2208, %v2772
        %v2827 = vadd.f32 %v2211, %v2775
        %v2828 = vadd.f32 %v2216, %v2780
        %v2829 = vadd.f32 %v2219, %v2783
        %v2830 = vadd.f32 %v2224, %v2788
        %v2831 = vadd.f32 %v2227, %v2791
        %v2832 = vadd.f32 %v2232, %v2796
        %v2833 = vadd.f32 %v2235, %v2799
        %v2834 = vld [vmem:[%s5] sm:$0x1]
        %v2836 = vlaneseq
        %v2837 = vshrl.u32 %v2836, 7
        %v2838 = vsub.s32 0, %v2837
        %v2839 = vrot.slane %v2834, %v2838
        %v2841 = vmul.f32 %v2802, %v2839
        %v2842 = vmul.f32 %v2803, %v2839
        %v2843 = vmul.f32 %v2804, %v2839
        %v2844 = vmul.f32 %v2805, %v2839
        %v2845 = vmul.f32 %v2806, %v2839
        %v2846 = vmul.f32 %v2807, %v2839
        %v2847 = vmul.f32 %v2808, %v2839
        %v2848 = vmul.f32 %v2809, %v2839
        %v2849 = vmul.f32 %v2810, %v2839
        %v2850 = vmul.f32 %v2811, %v2839
        %v2851 = vmul.f32 %v2812, %v2839
        %v2852 = vmul.f32 %v2813, %v2839
        %v2853 = vmul.f32 %v2814, %v2839
        %v2854 = vmul.f32 %v2815, %v2839
        %v2855 = vmul.f32 %v2816, %v2839
        %v2856 = vmul.f32 %v2817, %v2839
        %v2857 = vmul.f32 %v2818, %v2839
        %v2858 = vmul.f32 %v2819, %v2839
        %v2859 = vmul.f32 %v2820, %v2839
        %v2860 = vmul.f32 %v2821, %v2839
        %v2861 = vmul.f32 %v2822, %v2839
        %v2862 = vmul.f32 %v2823, %v2839
        %v2863 = vmul.f32 %v2824, %v2839
        %v2864 = vmul.f32 %v2825, %v2839
        %v2865 = vmul.f32 %v2826, %v2839
        %v2866 = vmul.f32 %v2827, %v2839
        %v2867 = vmul.f32 %v2828, %v2839
        %v2868 = vmul.f32 %v2829, %v2839
        %v2869 = vmul.f32 %v2830, %v2839
        %v2870 = vmul.f32 %v2831, %v2839
        %v2871 = vmul.f32 %v2832, %v2839
        %v2872 = vmul.f32 %v2833, %v2839
        %v2873 = vld [vmem:[%s6] sm:$0x1]
        %v2875 = vlaneseq
        %v2876 = vshrl.u32 %v2875, 7
        %v2877 = vsub.s32 0, %v2876
        %v2878 = vrot.slane %v2873, %v2877
        %v2880 = vadd.f32 %v2841, %v2878
        %v2881 = vadd.f32 %v2842, %v2878
        %v2882 = vadd.f32 %v2843, %v2878
        %v2883 = vadd.f32 %v2844, %v2878
        %v2884 = vadd.f32 %v2845, %v2878
        %v2885 = vadd.f32 %v2846, %v2878
        %v2886 = vadd.f32 %v2847, %v2878
        %v2887 = vadd.f32 %v2848, %v2878
        %v2888 = vadd.f32 %v2849, %v2878
        %v2889 = vadd.f32 %v2850, %v2878
        %v2890 = vadd.f32 %v2851, %v2878
        %v2891 = vadd.f32 %v2852, %v2878
        %v2892 = vadd.f32 %v2853, %v2878
        %v2893 = vadd.f32 %v2854, %v2878
        %v2894 = vadd.f32 %v2855, %v2878
        %v2895 = vadd.f32 %v2856, %v2878
        %v2896 = vadd.f32 %v2857, %v2878
        %v2897 = vadd.f32 %v2858, %v2878
        %v2898 = vadd.f32 %v2859, %v2878
        %v2899 = vadd.f32 %v2860, %v2878
        %v2900 = vadd.f32 %v2861, %v2878
        %v2901 = vadd.f32 %v2862, %v2878
        %v2902 = vadd.f32 %v2863, %v2878
        %v2903 = vadd.f32 %v2864, %v2878
        %v2904 = vadd.f32 %v2865, %v2878
        %v2905 = vadd.f32 %v2866, %v2878
        %v2906 = vadd.f32 %v2867, %v2878
        %v2907 = vadd.f32 %v2868, %v2878
        %v2908 = vadd.f32 %v2869, %v2878
        %v2909 = vadd.f32 %v2870, %v2878
        %v2910 = vadd.f32 %v2871, %v2878
        %v2911 = vadd.f32 %v2872, %v2878
        %v2912 = vmax.f32 %v2880, 0.0
        %v2913 = vmax.f32 %v2881, 0.0
        %v2914 = vmax.f32 %v2882, 0.0
        %v2915 = vmax.f32 %v2883, 0.0
        %v2916 = vmax.f32 %v2884, 0.0
        %v2917 = vmax.f32 %v2885, 0.0
        %v2918 = vmax.f32 %v2886, 0.0
        %v2919 = vmax.f32 %v2887, 0.0
        %v2920 = vmax.f32 %v2888, 0.0
        %v2921 = vmax.f32 %v2889, 0.0
        %v2922 = vmax.f32 %v2890, 0.0
        %v2923 = vmax.f32 %v2891, 0.0
        %v2924 = vmax.f32 %v2892, 0.0
        %v2925 = vmax.f32 %v2893, 0.0
        %v2926 = vmax.f32 %v2894, 0.0
        %v2927 = vmax.f32 %v2895, 0.0
        %v2928 = vmax.f32 %v2896, 0.0
        %v2929 = vmax.f32 %v2897, 0.0
        %v2930 = vmax.f32 %v2898, 0.0
        %v2931 = vmax.f32 %v2899, 0.0
        %v2932 = vmax.f32 %v2900, 0.0
        %v2933 = vmax.f32 %v2901, 0.0
        %v2934 = vmax.f32 %v2902, 0.0
        %v2935 = vmax.f32 %v2903, 0.0
        %v2936 = vmax.f32 %v2904, 0.0
        %v2937 = vmax.f32 %v2905, 0.0
        %v2938 = vmax.f32 %v2906, 0.0
        %v2939 = vmax.f32 %v2907, 0.0
        %v2940 = vmax.f32 %v2908, 0.0
        %v2941 = vmax.f32 %v2909, 0.0
        %v2942 = vmax.f32 %v2910, 0.0
        %v2943 = vmax.f32 %v2911, 0.0
        %v2944 = vmax.f32 %v2912, %v2914
        %v2945 = vmax.f32 %v2913, %v2915
        %v2946 = vmax.f32 %v2916, %v2918
        %v2947 = vmax.f32 %v2917, %v2919
        %v2948 = vmax.f32 %v2920, %v2922
        %v2949 = vmax.f32 %v2921, %v2923
        %v2950 = vmax.f32 %v2924, %v2926
        %v2951 = vmax.f32 %v2925, %v2927
        %v2952 = vmax.f32 %v2928, %v2930
        %v2953 = vmax.f32 %v2929, %v2931
        %v2954 = vmax.f32 %v2932, %v2934
        %v2955 = vmax.f32 %v2933, %v2935
        %v2956 = vmax.f32 %v2936, %v2938
        %v2957 = vmax.f32 %v2937, %v2939
        %v2958 = vmax.f32 %v2940, %v2942
        %v2959 = vmax.f32 %v2941, %v2943
        %v2976 = vcombine.high %v2944, %v2944
        %v2978 = vunpack.c.l.s4 1983009808
        %v2979 = vunpack.c.0.s8 %v2978
        %v2980 = vlaneseq
        %v2981 = vshrl.u32 %v2980, 7
        %v2982 = vsub.s32 %v2979, %v2981
        %v2983 = vrot.slane %v2944, %v2982
        %v2985 = vunpack.c.l.s4 1983009808
        %v2986 = vunpack.c.0.s8 %v2985
        %v2987 = vlaneseq
        %v2988 = vshrl.u32 %v2987, 7
        %v2989 = vsub.s32 %v2986, %v2988
        %v2990 = vrot.slane %v2976, %v2989
        %v2991 = vcombine.high %v2983, %v2983
        %v2992 = vcombine.high %v2990, %v2990
        %v2993 = vcombine.high %v2945, %v2945
        %v2995 = vunpack.c.l.s4 1983009808
        %v2996 = vunpack.c.0.s8 %v2995
        %v2997 = vlaneseq
        %v2998 = vshrl.u32 %v2997, 7
        %v2999 = vsub.s32 %v2996, %v2998
        %v3000 = vrot.slane %v2945, %v2999
        %v3002 = vunpack.c.l.s4 1983009808
        %v3003 = vunpack.c.0.s8 %v3002
        %v3004 = vlaneseq
        %v3005 = vshrl.u32 %v3004, 7
        %v3006 = vsub.s32 %v3003, %v3005
        %v3007 = vrot.slane %v2993, %v3006
        %v3008 = vcombine.high %v3000, %v3000
        %v3009 = vcombine.high %v3007, %v3007
        %v3010 = vcombine.high %v2946, %v2946
        %v3012 = vunpack.c.l.s4 1983009808
        %v3013 = vunpack.c.0.s8 %v3012
        %v3014 = vlaneseq
        %v3015 = vshrl.u32 %v3014, 7
        %v3016 = vsub.s32 %v3013, %v3015
        %v3017 = vrot.slane %v2946, %v3016
        %v3019 = vunpack.c.l.s4 1983009808
        %v3020 = vunpack.c.0.s8 %v3019
        %v3021 = vlaneseq
        %v3022 = vshrl.u32 %v3021, 7
        %v3023 = vsub.s32 %v3020, %v3022
        %v3024 = vrot.slane %v3010, %v3023
        %v3025 = vcombine.high %v3017, %v3017
        %v3026 = vcombine.high %v3024, %v3024
        %v3027 = vcombine.high %v2947, %v2947
        %v3029 = vunpack.c.l.s4 1983009808
        %v3030 = vunpack.c.0.s8 %v3029
        %v3031 = vlaneseq
        %v3032 = vshrl.u32 %v3031, 7
        %v3033 = vsub.s32 %v3030, %v3032
        %v3034 = vrot.slane %v2947, %v3033
        %v3036 = vunpack.c.l.s4 1983009808
        %v3037 = vunpack.c.0.s8 %v3036
        %v3038 = vlaneseq
        %v3039 = vshrl.u32 %v3038, 7
        %v3040 = vsub.s32 %v3037, %v3039
        %v3041 = vrot.slane %v3027, %v3040
        %v3042 = vcombine.high %v3034, %v3034
        %v3043 = vcombine.high %v3041, %v3041
        %v3044 = vcombine.high %v2948, %v2948
        %v3046 = vunpack.c.l.s4 1983009808
        %v3047 = vunpack.c.0.s8 %v3046
        %v3048 = vlaneseq
        %v3049 = vshrl.u32 %v3048, 7
        %v3050 = vsub.s32 %v3047, %v3049
        %v3051 = vrot.slane %v2948, %v3050
        %v3053 = vunpack.c.l.s4 1983009808
        %v3054 = vunpack.c.0.s8 %v3053
        %v3055 = vlaneseq
        %v3056 = vshrl.u32 %v3055, 7
        %v3057 = vsub.s32 %v3054, %v3056
        %v3058 = vrot.slane %v3044, %v3057
        %v3059 = vcombine.high %v3051, %v3051
        %v3060 = vcombine.high %v3058, %v3058
        %v3061 = vcombine.high %v2949, %v2949
        %v3063 = vunpack.c.l.s4 1983009808
        %v3064 = vunpack.c.0.s8 %v3063
        %v3065 = vlaneseq
        %v3066 = vshrl.u32 %v3065, 7
        %v3067 = vsub.s32 %v3064, %v3066
        %v3068 = vrot.slane %v2949, %v3067
        %v3070 = vunpack.c.l.s4 1983009808
        %v3071 = vunpack.c.0.s8 %v3070
        %v3072 = vlaneseq
        %v3073 = vshrl.u32 %v3072, 7
        %v3074 = vsub.s32 %v3071, %v3073
        %v3075 = vrot.slane %v3061, %v3074
        %v3076 = vcombine.high %v3068, %v3068
        %v3077 = vcombine.high %v3075, %v3075
        %v3078 = vcombine.high %v2950, %v2950
        %v3080 = vunpack.c.l.s4 1983009808
        %v3081 = vunpack.c.0.s8 %v3080
        %v3082 = vlaneseq
        %v3083 = vshrl.u32 %v3082, 7
        %v3084 = vsub.s32 %v3081, %v3083
        %v3085 = vrot.slane %v2950, %v3084
        %v3087 = vunpack.c.l.s4 1983009808
        %v3088 = vunpack.c.0.s8 %v3087
        %v3089 = vlaneseq
        %v3090 = vshrl.u32 %v3089, 7
        %v3091 = vsub.s32 %v3088, %v3090
        %v3092 = vrot.slane %v3078, %v3091
        %v3093 = vcombine.high %v3085, %v3085
        %v3094 = vcombine.high %v3092, %v3092
        %v3095 = vcombine.high %v2951, %v2951
        %v3097 = vunpack.c.l.s4 1983009808
        %v3098 = vunpack.c.0.s8 %v3097
        %v3099 = vlaneseq
        %v3100 = vshrl.u32 %v3099, 7
        %v3101 = vsub.s32 %v3098, %v3100
        %v3102 = vrot.slane %v2951, %v3101
        %v3104 = vunpack.c.l.s4 1983009808
        %v3105 = vunpack.c.0.s8 %v3104
        %v3106 = vlaneseq
        %v3107 = vshrl.u32 %v3106, 7
        %v3108 = vsub.s32 %v3105, %v3107
        %v3109 = vrot.slane %v3095, %v3108
        %v3110 = vcombine.high %v3102, %v3102
        %v3111 = vcombine.high %v3109, %v3109
        %v3112 = vcombine.high %v2952, %v2952
        %v3114 = vunpack.c.l.s4 1983009808
        %v3115 = vunpack.c.0.s8 %v3114
        %v3116 = vlaneseq
        %v3117 = vshrl.u32 %v3116, 7
        %v3118 = vsub.s32 %v3115, %v3117
        %v3119 = vrot.slane %v2952, %v3118
        %v3121 = vunpack.c.l.s4 1983009808
        %v3122 = vunpack.c.0.s8 %v3121
        %v3123 = vlaneseq
        %v3124 = vshrl.u32 %v3123, 7
        %v3125 = vsub.s32 %v3122, %v3124
        %v3126 = vrot.slane %v3112, %v3125
        %v3127 = vcombine.high %v3119, %v3119
        %v3128 = vcombine.high %v3126, %v3126
        %v3129 = vcombine.high %v2953, %v2953
        %v3131 = vunpack.c.l.s4 1983009808
        %v3132 = vunpack.c.0.s8 %v3131
        %v3133 = vlaneseq
        %v3134 = vshrl.u32 %v3133, 7
        %v3135 = vsub.s32 %v3132, %v3134
        %v3136 = vrot.slane %v2953, %v3135
        %v3138 = vunpack.c.l.s4 1983009808
        %v3139 = vunpack.c.0.s8 %v3138
        %v3140 = vlaneseq
        %v3141 = vshrl.u32 %v3140, 7
        %v3142 = vsub.s32 %v3139, %v3141
        %v3143 = vrot.slane %v3129, %v3142
        %v3144 = vcombine.high %v3136, %v3136
        %v3145 = vcombine.high %v3143, %v3143
        %v3146 = vcombine.high %v2954, %v2954
        %v3148 = vunpack.c.l.s4 1983009808
        %v3149 = vunpack.c.0.s8 %v3148
        %v3150 = vlaneseq
        %v3151 = vshrl.u32 %v3150, 7
        %v3152 = vsub.s32 %v3149, %v3151
        %v3153 = vrot.slane %v2954, %v3152
        %v3155 = vunpack.c.l.s4 1983009808
        %v3156 = vunpack.c.0.s8 %v3155
        %v3157 = vlaneseq
        %v3158 = vshrl.u32 %v3157, 7
        %v3159 = vsub.s32 %v3156, %v3158
        %v3160 = vrot.slane %v3146, %v3159
        %v3161 = vcombine.high %v3153, %v3153
        %v3162 = vcombine.high %v3160, %v3160
        %v3163 = vcombine.high %v2955, %v2955
        %v3165 = vunpack.c.l.s4 1983009808
        %v3166 = vunpack.c.0.s8 %v3165
        %v3167 = vlaneseq
        %v3168 = vshrl.u32 %v3167, 7
        %v3169 = vsub.s32 %v3166, %v3168
        %v3170 = vrot.slane %v2955, %v3169
        %v3172 = vunpack.c.l.s4 1983009808
        %v3173 = vunpack.c.0.s8 %v3172
        %v3174 = vlaneseq
        %v3175 = vshrl.u32 %v3174, 7
        %v3176 = vsub.s32 %v3173, %v3175
        %v3177 = vrot.slane %v3163, %v3176
        %v3178 = vcombine.high %v3170, %v3170
        %v3179 = vcombine.high %v3177, %v3177
        %v3180 = vcombine.high %v2956, %v2956
        %v3182 = vunpack.c.l.s4 1983009808
        %v3183 = vunpack.c.0.s8 %v3182
        %v3184 = vlaneseq
        %v3185 = vshrl.u32 %v3184, 7
        %v3186 = vsub.s32 %v3183, %v3185
        %v3187 = vrot.slane %v2956, %v3186
        %v3189 = vunpack.c.l.s4 1983009808
        %v3190 = vunpack.c.0.s8 %v3189
        %v3191 = vlaneseq
        %v3192 = vshrl.u32 %v3191, 7
        %v3193 = vsub.s32 %v3190, %v3192
        %v3194 = vrot.slane %v3180, %v3193
        %v3195 = vcombine.high %v3187, %v3187
        %v3196 = vcombine.high %v3194, %v3194
        %v3197 = vcombine.high %v2957, %v2957
        %v3199 = vunpack.c.l.s4 1983009808
        %v3200 = vunpack.c.0.s8 %v3199
        %v3201 = vlaneseq
        %v3202 = vshrl.u32 %v3201, 7
        %v3203 = vsub.s32 %v3200, %v3202
        %v3204 = vrot.slane %v2957, %v3203
        %v3206 = vunpack.c.l.s4 1983009808
        %v3207 = vunpack.c.0.s8 %v3206
        %v3208 = vlaneseq
        %v3209 = vshrl.u32 %v3208, 7
        %v3210 = vsub.s32 %v3207, %v3209
        %v3211 = vrot.slane %v3197, %v3210
        %v3212 = vcombine.high %v3204, %v3204
        %v3213 = vcombine.high %v3211, %v3211
        %v3214 = vcombine.high %v2958, %v2958
        %v3216 = vunpack.c.l.s4 1983009808
        %v3217 = vunpack.c.0.s8 %v3216
        %v3218 = vlaneseq
        %v3219 = vshrl.u32 %v3218, 7
        %v3220 = vsub.s32 %v3217, %v3219
        %v3221 = vrot.slane %v2958, %v3220
        %v3223 = vunpack.c.l.s4 1983009808
        %v3224 = vunpack.c.0.s8 %v3223
        %v3225 = vlaneseq
        %v3226 = vshrl.u32 %v3225, 7
        %v3227 = vsub.s32 %v3224, %v3226
        %v3228 = vrot.slane %v3214, %v3227
        %v3229 = vcombine.high %v3221, %v3221
        %v3230 = vcombine.high %v3228, %v3228
        %v3231 = vcombine.high %v2959, %v2959
        %v3233 = vunpack.c.l.s4 1983009808
        %v3234 = vunpack.c.0.s8 %v3233
        %v3235 = vlaneseq
        %v3236 = vshrl.u32 %v3235, 7
        %v3237 = vsub.s32 %v3234, %v3236
        %v3238 = vrot.slane %v2959, %v3237
        %v3240 = vunpack.c.l.s4 1983009808
        %v3241 = vunpack.c.0.s8 %v3240
        %v3242 = vlaneseq
        %v3243 = vshrl.u32 %v3242, 7
        %v3244 = vsub.s32 %v3241, %v3243
        %v3245 = vrot.slane %v3231, %v3244
        %v3246 = vcombine.high %v3238, %v3238
        %v3247 = vcombine.high %v3245, %v3245
        %v3312 = vsel %vm508, %v2983, -inf
        %v3313 = vrot.slane %v3312, 4
        %v3314 = vmax.f32 %v3312, %v3313
        %v3315 = vrot.slane %v3314, 2
        %v3316 = vmax.f32 %v3314, %v3315
        %v3317 = vrot.slane %v3316, 1
        %v3318 = vmax.f32 %v3316, %v3317
        %v3319 = vsel %vm508, %v2991, -inf
        %v3320 = vrot.slane %v3319, 4
        %v3321 = vmax.f32 %v3319, %v3320
        %v3322 = vrot.slane %v3321, 2
        %v3323 = vmax.f32 %v3321, %v3322
        %v3324 = vrot.slane %v3323, 1
        %v3325 = vmax.f32 %v3323, %v3324
        %v3326 = vsel %vm508, %v2990, -inf
        %v3327 = vrot.slane %v3326, 4
        %v3328 = vmax.f32 %v3326, %v3327
        %v3329 = vrot.slane %v3328, 2
        %v3330 = vmax.f32 %v3328, %v3329
        %v3331 = vrot.slane %v3330, 1
        %v3332 = vmax.f32 %v3330, %v3331
        %v3333 = vsel %vm508, %v2992, -inf
        %v3334 = vrot.slane %v3333, 4
        %v3335 = vmax.f32 %v3333, %v3334
        %v3336 = vrot.slane %v3335, 2
        %v3337 = vmax.f32 %v3335, %v3336
        %v3338 = vrot.slane %v3337, 1
        %v3339 = vmax.f32 %v3337, %v3338
        %v3340 = vsel %vm508, %v3000, -inf
        %v3341 = vrot.slane %v3340, 4
        %v3342 = vmax.f32 %v3340, %v3341
        %v3343 = vrot.slane %v3342, 2
        %v3344 = vmax.f32 %v3342, %v3343
        %v3345 = vrot.slane %v3344, 1
        %v3346 = vmax.f32 %v3344, %v3345
        %v3347 = vsel %vm508, %v3008, -inf
        %v3348 = vrot.slane %v3347, 4
        %v3349 = vmax.f32 %v3347, %v3348
        %v3350 = vrot.slane %v3349, 2
        %v3351 = vmax.f32 %v3349, %v3350
        %v3352 = vrot.slane %v3351, 1
        %v3353 = vmax.f32 %v3351, %v3352
        %v3354 = vsel %vm508, %v3007, -inf
        %v3355 = vrot.slane %v3354, 4
        %v3356 = vmax.f32 %v3354, %v3355
        %v3357 = vrot.slane %v3356, 2
        %v3358 = vmax.f32 %v3356, %v3357
        %v3359 = vrot.slane %v3358, 1
        %v3360 = vmax.f32 %v3358, %v3359
        %v3361 = vsel %vm508, %v3009, -inf
        %v3362 = vrot.slane %v3361, 4
        %v3363 = vmax.f32 %v3361, %v3362
        %v3364 = vrot.slane %v3363, 2
        %v3365 = vmax.f32 %v3363, %v3364
        %v3366 = vrot.slane %v3365, 1
        %v3367 = vmax.f32 %v3365, %v3366
        %v3368 = vsel %vm508, %v3017, -inf
        %v3369 = vrot.slane %v3368, 4
        %v3370 = vmax.f32 %v3368, %v3369
        %v3371 = vrot.slane %v3370, 2
        %v3372 = vmax.f32 %v3370, %v3371
        %v3373 = vrot.slane %v3372, 1
        %v3374 = vmax.f32 %v3372, %v3373
        %v3375 = vsel %vm508, %v3025, -inf
        %v3376 = vrot.slane %v3375, 4
        %v3377 = vmax.f32 %v3375, %v3376
        %v3378 = vrot.slane %v3377, 2
        %v3379 = vmax.f32 %v3377, %v3378
        %v3380 = vrot.slane %v3379, 1
        %v3381 = vmax.f32 %v3379, %v3380
        %v3382 = vsel %vm508, %v3024, -inf
        %v3383 = vrot.slane %v3382, 4
        %v3384 = vmax.f32 %v3382, %v3383
        %v3385 = vrot.slane %v3384, 2
        %v3386 = vmax.f32 %v3384, %v3385
        %v3387 = vrot.slane %v3386, 1
        %v3388 = vmax.f32 %v3386, %v3387
        %v3389 = vsel %vm508, %v3026, -inf
        %v3390 = vrot.slane %v3389, 4
        %v3391 = vmax.f32 %v3389, %v3390
        %v3392 = vrot.slane %v3391, 2
        %v3393 = vmax.f32 %v3391, %v3392
        %v3394 = vrot.slane %v3393, 1
        %v3395 = vmax.f32 %v3393, %v3394
        %v3396 = vsel %vm508, %v3034, -inf
        %v3397 = vrot.slane %v3396, 4
        %v3398 = vmax.f32 %v3396, %v3397
        %v3399 = vrot.slane %v3398, 2
        %v3400 = vmax.f32 %v3398, %v3399
        %v3401 = vrot.slane %v3400, 1
        %v3402 = vmax.f32 %v3400, %v3401
        %v3403 = vsel %vm508, %v3042, -inf
        %v3404 = vrot.slane %v3403, 4
        %v3405 = vmax.f32 %v3403, %v3404
        %v3406 = vrot.slane %v3405, 2
        %v3407 = vmax.f32 %v3405, %v3406
        %v3408 = vrot.slane %v3407, 1
        %v3409 = vmax.f32 %v3407, %v3408
        %v3410 = vsel %vm508, %v3041, -inf
        %v3411 = vrot.slane %v3410, 4
        %v3412 = vmax.f32 %v3410, %v3411
        %v3413 = vrot.slane %v3412, 2
        %v3414 = vmax.f32 %v3412, %v3413
        %v3415 = vrot.slane %v3414, 1
        %v3416 = vmax.f32 %v3414, %v3415
        %v3417 = vsel %vm508, %v3043, -inf
        %v3418 = vrot.slane %v3417, 4
        %v3419 = vmax.f32 %v3417, %v3418
        %v3420 = vrot.slane %v3419, 2
        %v3421 = vmax.f32 %v3419, %v3420
        %v3422 = vrot.slane %v3421, 1
        %v3423 = vmax.f32 %v3421, %v3422
        %v3424 = vsel %vm508, %v3051, -inf
        %v3425 = vrot.slane %v3424, 4
        %v3426 = vmax.f32 %v3424, %v3425
        %v3427 = vrot.slane %v3426, 2
        %v3428 = vmax.f32 %v3426, %v3427
        %v3429 = vrot.slane %v3428, 1
        %v3430 = vmax.f32 %v3428, %v3429
        %v3431 = vsel %vm508, %v3059, -inf
        %v3432 = vrot.slane %v3431, 4
        %v3433 = vmax.f32 %v3431, %v3432
        %v3434 = vrot.slane %v3433, 2
        %v3435 = vmax.f32 %v3433, %v3434
        %v3436 = vrot.slane %v3435, 1
        %v3437 = vmax.f32 %v3435, %v3436
        %v3438 = vsel %vm508, %v3058, -inf
        %v3439 = vrot.slane %v3438, 4
        %v3440 = vmax.f32 %v3438, %v3439
        %v3441 = vrot.slane %v3440, 2
        %v3442 = vmax.f32 %v3440, %v3441
        %v3443 = vrot.slane %v3442, 1
        %v3444 = vmax.f32 %v3442, %v3443
        %v3445 = vsel %vm508, %v3060, -inf
        %v3446 = vrot.slane %v3445, 4
        %v3447 = vmax.f32 %v3445, %v3446
        %v3448 = vrot.slane %v3447, 2
        %v3449 = vmax.f32 %v3447, %v3448
        %v3450 = vrot.slane %v3449, 1
        %v3451 = vmax.f32 %v3449, %v3450
        %v3452 = vsel %vm508, %v3068, -inf
        %v3453 = vrot.slane %v3452, 4
        %v3454 = vmax.f32 %v3452, %v3453
        %v3455 = vrot.slane %v3454, 2
        %v3456 = vmax.f32 %v3454, %v3455
        %v3457 = vrot.slane %v3456, 1
        %v3458 = vmax.f32 %v3456, %v3457
        %v3459 = vsel %vm508, %v3076, -inf
        %v3460 = vrot.slane %v3459, 4
        %v3461 = vmax.f32 %v3459, %v3460
        %v3462 = vrot.slane %v3461, 2
        %v3463 = vmax.f32 %v3461, %v3462
        %v3464 = vrot.slane %v3463, 1
        %v3465 = vmax.f32 %v3463, %v3464
        %v3466 = vsel %vm508, %v3075, -inf
        %v3467 = vrot.slane %v3466, 4
        %v3468 = vmax.f32 %v3466, %v3467
        %v3469 = vrot.slane %v3468, 2
        %v3470 = vmax.f32 %v3468, %v3469
        %v3471 = vrot.slane %v3470, 1
        %v3472 = vmax.f32 %v3470, %v3471
        %v3473 = vsel %vm508, %v3077, -inf
        %v3474 = vrot.slane %v3473, 4
        %v3475 = vmax.f32 %v3473, %v3474
        %v3476 = vrot.slane %v3475, 2
        %v3477 = vmax.f32 %v3475, %v3476
        %v3478 = vrot.slane %v3477, 1
        %v3479 = vmax.f32 %v3477, %v3478
        %v3480 = vsel %vm508, %v3085, -inf
        %v3481 = vrot.slane %v3480, 4
        %v3482 = vmax.f32 %v3480, %v3481
        %v3483 = vrot.slane %v3482, 2
        %v3484 = vmax.f32 %v3482, %v3483
        %v3485 = vrot.slane %v3484, 1
        %v3486 = vmax.f32 %v3484, %v3485
        %v3487 = vsel %vm508, %v3093, -inf
        %v3488 = vrot.slane %v3487, 4
        %v3489 = vmax.f32 %v3487, %v3488
        %v3490 = vrot.slane %v3489, 2
        %v3491 = vmax.f32 %v3489, %v3490
        %v3492 = vrot.slane %v3491, 1
        %v3493 = vmax.f32 %v3491, %v3492
        %v3494 = vsel %vm508, %v3092, -inf
        %v3495 = vrot.slane %v3494, 4
        %v3496 = vmax.f32 %v3494, %v3495
        %v3497 = vrot.slane %v3496, 2
        %v3498 = vmax.f32 %v3496, %v3497
        %v3499 = vrot.slane %v3498, 1
        %v3500 = vmax.f32 %v3498, %v3499
        %v3501 = vsel %vm508, %v3094, -inf
        %v3502 = vrot.slane %v3501, 4
        %v3503 = vmax.f32 %v3501, %v3502
        %v3504 = vrot.slane %v3503, 2
        %v3505 = vmax.f32 %v3503, %v3504
        %v3506 = vrot.slane %v3505, 1
        %v3507 = vmax.f32 %v3505, %v3506
        %v3508 = vsel %vm508, %v3102, -inf
        %v3509 = vrot.slane %v3508, 4
        %v3510 = vmax.f32 %v3508, %v3509
        %v3511 = vrot.slane %v3510, 2
        %v3512 = vmax.f32 %v3510, %v3511
        %v3513 = vrot.slane %v3512, 1
        %v3514 = vmax.f32 %v3512, %v3513
        %v3515 = vsel %vm508, %v3110, -inf
        %v3516 = vrot.slane %v3515, 4
        %v3517 = vmax.f32 %v3515, %v3516
        %v3518 = vrot.slane %v3517, 2
        %v3519 = vmax.f32 %v3517, %v3518
        %v3520 = vrot.slane %v3519, 1
        %v3521 = vmax.f32 %v3519, %v3520
        %v3522 = vsel %vm508, %v3109, -inf
        %v3523 = vrot.slane %v3522, 4
        %v3524 = vmax.f32 %v3522, %v3523
        %v3525 = vrot.slane %v3524, 2
        %v3526 = vmax.f32 %v3524, %v3525
        %v3527 = vrot.slane %v3526, 1
        %v3528 = vmax.f32 %v3526, %v3527
        %v3529 = vsel %vm508, %v3111, -inf
        %v3530 = vrot.slane %v3529, 4
        %v3531 = vmax.f32 %v3529, %v3530
        %v3532 = vrot.slane %v3531, 2
        %v3533 = vmax.f32 %v3531, %v3532
        %v3534 = vrot.slane %v3533, 1
        %v3535 = vmax.f32 %v3533, %v3534
        %v3536 = vsel %vm508, %v3119, -inf
        %v3537 = vrot.slane %v3536, 4
        %v3538 = vmax.f32 %v3536, %v3537
        %v3539 = vrot.slane %v3538, 2
        %v3540 = vmax.f32 %v3538, %v3539
        %v3541 = vrot.slane %v3540, 1
        %v3542 = vmax.f32 %v3540, %v3541
        %v3543 = vsel %vm508, %v3127, -inf
        %v3544 = vrot.slane %v3543, 4
        %v3545 = vmax.f32 %v3543, %v3544
        %v3546 = vrot.slane %v3545, 2
        %v3547 = vmax.f32 %v3545, %v3546
        %v3548 = vrot.slane %v3547, 1
        %v3549 = vmax.f32 %v3547, %v3548
        %v3550 = vsel %vm508, %v3126, -inf
        %v3551 = vrot.slane %v3550, 4
        %v3552 = vmax.f32 %v3550, %v3551
        %v3553 = vrot.slane %v3552, 2
        %v3554 = vmax.f32 %v3552, %v3553
        %v3555 = vrot.slane %v3554, 1
        %v3556 = vmax.f32 %v3554, %v3555
        %v3557 = vsel %vm508, %v3128, -inf
        %v3558 = vrot.slane %v3557, 4
        %v3559 = vmax.f32 %v3557, %v3558
        %v3560 = vrot.slane %v3559, 2
        %v3561 = vmax.f32 %v3559, %v3560
        %v3562 = vrot.slane %v3561, 1
        %v3563 = vmax.f32 %v3561, %v3562
        %v3564 = vsel %vm508, %v3136, -inf
        %v3565 = vrot.slane %v3564, 4
        %v3566 = vmax.f32 %v3564, %v3565
        %v3567 = vrot.slane %v3566, 2
        %v3568 = vmax.f32 %v3566, %v3567
        %v3569 = vrot.slane %v3568, 1
        %v3570 = vmax.f32 %v3568, %v3569
        %v3571 = vsel %vm508, %v3144, -inf
        %v3572 = vrot.slane %v3571, 4
        %v3573 = vmax.f32 %v3571, %v3572
        %v3574 = vrot.slane %v3573, 2
        %v3575 = vmax.f32 %v3573, %v3574
        %v3576 = vrot.slane %v3575, 1
        %v3577 = vmax.f32 %v3575, %v3576
        %v3578 = vsel %vm508, %v3143, -inf
        %v3579 = vrot.slane %v3578, 4
        %v3580 = vmax.f32 %v3578, %v3579
        %v3581 = vrot.slane %v3580, 2
        %v3582 = vmax.f32 %v3580, %v3581
        %v3583 = vrot.slane %v3582, 1
        %v3584 = vmax.f32 %v3582, %v3583
        %v3585 = vsel %vm508, %v3145, -inf
        %v3586 = vrot.slane %v3585, 4
        %v3587 = vmax.f32 %v3585, %v3586
        %v3588 = vrot.slane %v3587, 2
        %v3589 = vmax.f32 %v3587, %v3588
        %v3590 = vrot.slane %v3589, 1
        %v3591 = vmax.f32 %v3589, %v3590
        %v3592 = vsel %vm508, %v3153, -inf
        %v3593 = vrot.slane %v3592, 4
        %v3594 = vmax.f32 %v3592, %v3593
        %v3595 = vrot.slane %v3594, 2
        %v3596 = vmax.f32 %v3594, %v3595
        %v3597 = vrot.slane %v3596, 1
        %v3598 = vmax.f32 %v3596, %v3597
        %v3599 = vsel %vm508, %v3161, -inf
        %v3600 = vrot.slane %v3599, 4
        %v3601 = vmax.f32 %v3599, %v3600
        %v3602 = vrot.slane %v3601, 2
        %v3603 = vmax.f32 %v3601, %v3602
        %v3604 = vrot.slane %v3603, 1
        %v3605 = vmax.f32 %v3603, %v3604
        %v3606 = vsel %vm508, %v3160, -inf
        %v3607 = vrot.slane %v3606, 4
        %v3608 = vmax.f32 %v3606, %v3607
        %v3609 = vrot.slane %v3608, 2
        %v3610 = vmax.f32 %v3608, %v3609
        %v3611 = vrot.slane %v3610, 1
        %v3612 = vmax.f32 %v3610, %v3611
        %v3613 = vsel %vm508, %v3162, -inf
        %v3614 = vrot.slane %v3613, 4
        %v3615 = vmax.f32 %v3613, %v3614
        %v3616 = vrot.slane %v3615, 2
        %v3617 = vmax.f32 %v3615, %v3616
        %v3618 = vrot.slane %v3617, 1
        %v3619 = vmax.f32 %v3617, %v3618
        %v3620 = vsel %vm508, %v3170, -inf
        %v3621 = vrot.slane %v3620, 4
        %v3622 = vmax.f32 %v3620, %v3621
        %v3623 = vrot.slane %v3622, 2
        %v3624 = vmax.f32 %v3622, %v3623
        %v3625 = vrot.slane %v3624, 1
        %v3626 = vmax.f32 %v3624, %v3625
        %v3627 = vsel %vm508, %v3178, -inf
        %v3628 = vrot.slane %v3627, 4
        %v3629 = vmax.f32 %v3627, %v3628
        %v3630 = vrot.slane %v3629, 2
        %v3631 = vmax.f32 %v3629, %v3630
        %v3632 = vrot.slane %v3631, 1
        %v3633 = vmax.f32 %v3631, %v3632
        %v3634 = vsel %vm508, %v3177, -inf
        %v3635 = vrot.slane %v3634, 4
        %v3636 = vmax.f32 %v3634, %v3635
        %v3637 = vrot.slane %v3636, 2
        %v3638 = vmax.f32 %v3636, %v3637
        %v3639 = vrot.slane %v3638, 1
        %v3640 = vmax.f32 %v3638, %v3639
        %v3641 = vsel %vm508, %v3179, -inf
        %v3642 = vrot.slane %v3641, 4
        %v3643 = vmax.f32 %v3641, %v3642
        %v3644 = vrot.slane %v3643, 2
        %v3645 = vmax.f32 %v3643, %v3644
        %v3646 = vrot.slane %v3645, 1
        %v3647 = vmax.f32 %v3645, %v3646
        %v3648 = vsel %vm508, %v3187, -inf
        %v3649 = vrot.slane %v3648, 4
        %v3650 = vmax.f32 %v3648, %v3649
        %v3651 = vrot.slane %v3650, 2
        %v3652 = vmax.f32 %v3650, %v3651
        %v3653 = vrot.slane %v3652, 1
        %v3654 = vmax.f32 %v3652, %v3653
        %v3655 = vsel %vm508, %v3195, -inf
        %v3656 = vrot.slane %v3655, 4
        %v3657 = vmax.f32 %v3655, %v3656
        %v3658 = vrot.slane %v3657, 2
        %v3659 = vmax.f32 %v3657, %v3658
        %v3660 = vrot.slane %v3659, 1
        %v3661 = vmax.f32 %v3659, %v3660
        %v3662 = vsel %vm508, %v3194, -inf
        %v3663 = vrot.slane %v3662, 4
        %v3664 = vmax.f32 %v3662, %v3663
        %v3665 = vrot.slane %v3664, 2
        %v3666 = vmax.f32 %v3664, %v3665
        %v3667 = vrot.slane %v3666, 1
        %v3668 = vmax.f32 %v3666, %v3667
        %v3669 = vsel %vm508, %v3196, -inf
        %v3670 = vrot.slane %v3669, 4
        %v3671 = vmax.f32 %v3669, %v3670
        %v3672 = vrot.slane %v3671, 2
        %v3673 = vmax.f32 %v3671, %v3672
        %v3674 = vrot.slane %v3673, 1
        %v3675 = vmax.f32 %v3673, %v3674
        %v3676 = vsel %vm508, %v3204, -inf
        %v3677 = vrot.slane %v3676, 4
        %v3678 = vmax.f32 %v3676, %v3677
        %v3679 = vrot.slane %v3678, 2
        %v3680 = vmax.f32 %v3678, %v3679
        %v3681 = vrot.slane %v3680, 1
        %v3682 = vmax.f32 %v3680, %v3681
        %v3683 = vsel %vm508, %v3212, -inf
        %v3684 = vrot.slane %v3683, 4
        %v3685 = vmax.f32 %v3683, %v3684
        %v3686 = vrot.slane %v3685, 2
        %v3687 = vmax.f32 %v3685, %v3686
        %v3688 = vrot.slane %v3687, 1
        %v3689 = vmax.f32 %v3687, %v3688
        %v3690 = vsel %vm508, %v3211, -inf
        %v3691 = vrot.slane %v3690, 4
        %v3692 = vmax.f32 %v3690, %v3691
        %v3693 = vrot.slane %v3692, 2
        %v3694 = vmax.f32 %v3692, %v3693
        %v3695 = vrot.slane %v3694, 1
        %v3696 = vmax.f32 %v3694, %v3695
        %v3697 = vsel %vm508, %v3213, -inf
        %v3698 = vrot.slane %v3697, 4
        %v3699 = vmax.f32 %v3697, %v3698
        %v3700 = vrot.slane %v3699, 2
        %v3701 = vmax.f32 %v3699, %v3700
        %v3702 = vrot.slane %v3701, 1
        %v3703 = vmax.f32 %v3701, %v3702
        %v3704 = vsel %vm508, %v3221, -inf
        %v3705 = vrot.slane %v3704, 4
        %v3706 = vmax.f32 %v3704, %v3705
        %v3707 = vrot.slane %v3706, 2
        %v3708 = vmax.f32 %v3706, %v3707
        %v3709 = vrot.slane %v3708, 1
        %v3710 = vmax.f32 %v3708, %v3709
        %v3711 = vsel %vm508, %v3229, -inf
        %v3712 = vrot.slane %v3711, 4
        %v3713 = vmax.f32 %v3711, %v3712
        %v3714 = vrot.slane %v3713, 2
        %v3715 = vmax.f32 %v3713, %v3714
        %v3716 = vrot.slane %v3715, 1
        %v3717 = vmax.f32 %v3715, %v3716
        %v3718 = vsel %vm508, %v3228, -inf
        %v3719 = vrot.slane %v3718, 4
        %v3720 = vmax.f32 %v3718, %v3719
        %v3721 = vrot.slane %v3720, 2
        %v3722 = vmax.f32 %v3720, %v3721
        %v3723 = vrot.slane %v3722, 1
        %v3724 = vmax.f32 %v3722, %v3723
        %v3725 = vsel %vm508, %v3230, -inf
        %v3726 = vrot.slane %v3725, 4
        %v3727 = vmax.f32 %v3725, %v3726
        %v3728 = vrot.slane %v3727, 2
        %v3729 = vmax.f32 %v3727, %v3728
        %v3730 = vrot.slane %v3729, 1
        %v3731 = vmax.f32 %v3729, %v3730
        %v3732 = vsel %vm508, %v3238, -inf
        %v3733 = vrot.slane %v3732, 4
        %v3734 = vmax.f32 %v3732, %v3733
        %v3735 = vrot.slane %v3734, 2
        %v3736 = vmax.f32 %v3734, %v3735
        %v3737 = vrot.slane %v3736, 1
        %v3738 = vmax.f32 %v3736, %v3737
        %v3739 = vsel %vm508, %v3246, -inf
        %v3740 = vrot.slane %v3739, 4
        %v3741 = vmax.f32 %v3739, %v3740
        %v3742 = vrot.slane %v3741, 2
        %v3743 = vmax.f32 %v3741, %v3742
        %v3744 = vrot.slane %v3743, 1
        %v3745 = vmax.f32 %v3743, %v3744
        %v3746 = vsel %vm508, %v3245, -inf
        %v3747 = vrot.slane %v3746, 4
        %v3748 = vmax.f32 %v3746, %v3747
        %v3749 = vrot.slane %v3748, 2
        %v3750 = vmax.f32 %v3748, %v3749
        %v3751 = vrot.slane %v3750, 1
        %v3752 = vmax.f32 %v3750, %v3751
        %v3753 = vsel %vm508, %v3247, -inf
        %v3754 = vrot.slane %v3753, 4
        %v3755 = vmax.f32 %v3753, %v3754
        %v3756 = vrot.slane %v3755, 2
        %v3757 = vmax.f32 %v3755, %v3756
        %v3758 = vrot.slane %v3757, 1
        %v3759 = vmax.f32 %v3757, %v3758
        %vm3824 = vcmask 1041409
        %v3825 = vsel %vm3824, %v3325, %v3318
        %vm3826 = vcmask 1042434
        %v3827 = vsel %vm3826, %v3332, %v3825
        %vm3828 = vcmask 1043459
        %v3829 = vsel %vm3828, %v3339, %v3827
        %vm3830 = vcmask 1044484
        %v3831 = vsel %vm3830, %v3346, %v3829
        %vm3832 = vcmask 1045509
        %v3833 = vsel %vm3832, %v3353, %v3831
        %vm3834 = vcmask 1046534
        %v3835 = vsel %vm3834, %v3360, %v3833
        %vm3836 = vcmask 1047559
        %v3837 = vsel %vm3836, %v3367, %v3835
        %v3838 = vsel %vm3824, %v3381, %v3374
        %v3839 = vsel %vm3826, %v3388, %v3838
        %v3840 = vsel %vm3828, %v3395, %v3839
        %v3841 = vsel %vm3830, %v3402, %v3840
        %v3842 = vsel %vm3832, %v3409, %v3841
        %v3843 = vsel %vm3834, %v3416, %v3842
        %v3844 = vsel %vm3836, %v3423, %v3843
        %v3845 = vsel %vm3824, %v3437, %v3430
        %v3846 = vsel %vm3826, %v3444, %v3845
        %v3847 = vsel %vm3828, %v3451, %v3846
        %v3848 = vsel %vm3830, %v3458, %v3847
        %v3849 = vsel %vm3832, %v3465, %v3848
        %v3850 = vsel %vm3834, %v3472, %v3849
        %v3851 = vsel %vm3836, %v3479, %v3850
        %v3852 = vsel %vm3824, %v3493, %v3486
        %v3853 = vsel %vm3826, %v3500, %v3852
        %v3854 = vsel %vm3828, %v3507, %v3853
        %v3855 = vsel %vm3830, %v3514, %v3854
        %v3856 = vsel %vm3832, %v3521, %v3855
        %v3857 = vsel %vm3834, %v3528, %v3856
        %v3858 = vsel %vm3836, %v3535, %v3857
        %v3859 = vsel %vm3824, %v3549, %v3542
        %v3860 = vsel %vm3826, %v3556, %v3859
        %v3861 = vsel %vm3828, %v3563, %v3860
        %v3862 = vsel %vm3830, %v3570, %v3861
        %v3863 = vsel %vm3832, %v3577, %v3862
        %v3864 = vsel %vm3834, %v3584, %v3863
        %v3865 = vsel %vm3836, %v3591, %v3864
        %v3866 = vsel %vm3824, %v3605, %v3598
        %v3867 = vsel %vm3826, %v3612, %v3866
        %v3868 = vsel %vm3828, %v3619, %v3867
        %v3869 = vsel %vm3830, %v3626, %v3868
        %v3870 = vsel %vm3832, %v3633, %v3869
        %v3871 = vsel %vm3834, %v3640, %v3870
        %v3872 = vsel %vm3836, %v3647, %v3871
        %v3873 = vsel %vm3824, %v3661, %v3654
        %v3874 = vsel %vm3826, %v3668, %v3873
        %v3875 = vsel %vm3828, %v3675, %v3874
        %v3876 = vsel %vm3830, %v3682, %v3875
        %v3877 = vsel %vm3832, %v3689, %v3876
        %v3878 = vsel %vm3834, %v3696, %v3877
        %v3879 = vsel %vm3836, %v3703, %v3878
        %v3880 = vsel %vm3824, %v3717, %v3710
        %v3881 = vsel %vm3826, %v3724, %v3880
        %v3882 = vsel %vm3828, %v3731, %v3881
        %v3883 = vsel %vm3830, %v3738, %v3882
        %v3884 = vsel %vm3832, %v3745, %v3883
        %v3885 = vsel %vm3834, %v3752, %v3884
        %v3886 = vsel %vm3836, %v3759, %v3885
        %3895 = vst [vmem:[%s325] sm:$0xff] %v3837
        %3896 = vst [vmem:[%s325 + $0x8] sm:$0xff] %v3844
        %3897 = vst [vmem:[%s325 + $0x10] sm:$0xff] %v3851
        %3898 = vst [vmem:[%s325 + $0x18] sm:$0xff] %v3858
        %3899 = vst [vmem:[%s325 + $0x20] sm:$0xff] %v3865
        %3900 = vst [vmem:[%s325 + $0x28] sm:$0xff] %v3872
        %3901 = vst [vmem:[%s325 + $0x30] sm:$0xff] %v3879
        %3902 = vst [vmem:[%s325 + $0x38] sm:$0xff] %v3886
        %s3903 = sand.u32 %s185, 1
        %s3904 = scalar_lea.sflag [#allocation5], %s3903
        %s3905 = sand.u32 %s185, 1
        %s3906 = smul.addr %s3905, 64
        %s3907 = scalar_lea.vmem [#allocation9], %s3906
        // Predicated region
        $region61: #{tpu_custom_call.1} parent=47 // pred_check
          %p3908 = pneg %p195
        $region62: #{tpu_custom_call.1} parent=47 // pred_check_branch
          %3910 = sbr.rel (%p3908) target = $region64
        $region63: #{tpu_custom_call.1} parent=47 // pred_region
          %s3912 = ssub.s32 1024, 1024
          %3913 = vsyncadd %s3904, %s3912
          %s3914 = smul.addr %s25, 8
          %s3915 = smul.addr %s3914, 128
          %s3916 = scalar_lea.hbm %s7, %s3915
          %s3917 = sshll.u32 %s3907, 4
          %s3918 = int_to_ptr.vmem [resolvable:$true] %s3917
          %3923 = dma.vmem_to_hbm [thread:$0]  %s3918, 1024, %s3916, %s3904, 128, 128, 8
        $region64: #{tpu_custom_call.1} parent=47 // pred_fallthru
          _
      $region48: #{tpu_custom_call.1} parent=5 // pred_fallthru
        _
      %p3924 = scmp.le.s32.totalorder 2, %s20
      // Predicated region
      $region65: #{tpu_custom_call.1} parent=5 // pred_check
        %p3925 = pneg %p3924
      $region66: #{tpu_custom_call.1} parent=5 // pred_check_branch
        %3927 = sbr.rel (%p3925) target = $region68
      $region67: #{tpu_custom_call.1} parent=5 // pred_region
        %s3928 = ssub.s32 %s20, 2
        // Predicated region
        $region69: #{tpu_custom_call.1} parent=67 // pred_check
          %p3929 = pneg %p201
        $region70: #{tpu_custom_call.1} parent=67 // pred_check_branch
          %3931 = sbr.rel (%p3929) target = $region72
        $region71: #{tpu_custom_call.1} parent=67 // pred_region
          %s3932 = sand.u32 %s186, 1
          %s3933 = scalar_lea.sflag [#allocation5], %s3932
          %s3934 = sand.u32 %s186, 1
          %s3935 = smul.addr %s3934, 64
          %s3936 = scalar_lea.vmem [#allocation9], %s3935
          %3937 = dma.done %s3933, 1024
        $region72: #{tpu_custom_call.1} parent=67 // pred_fallthru
          _
      $region68: #{tpu_custom_call.1} parent=5 // pred_fallthru
        _
    $region6: #{tpu_custom_call.1} parent=1 // loop_footer
      %s24 = sadd.s32 1, %s20
    $region7: #{tpu_custom_call.1} parent=1 // loop_footer_branch
      %19 = sbr.rel target = $region3
    $region8: #{tpu_custom_call.1} parent=1 // loop_exit
      _
    %3938 = vsyncpa [#allocation4], 1
    %s3939 = scalar_lea.sflag [#allocation4], 1
    %3940 = vsyncpa %s3939, 1
    %3941 = vsyncpa [#allocation7], 1
    %3942 = vsyncpa [#allocation5], 1
    %s3943 = scalar_lea.sflag [#allocation5], 1
    %3944 = vsyncpa %s3943, 1

</llo_original>
